<compile_context>
chip_gen: v6e
topology: v6e:2x2x1
jax: 0.10.0
libtpu: 0.0.40
codegen_flags: <defaults>
</compile_context>

<pallas_src>
import jax
import jax.numpy as jnp
from jax.experimental import pallas as pl
from jax.experimental.pallas import tpu as pltpu

# ----------------------------- config (small) -------------------------------
B = 2          # batch
C = 3          # input channels (RGB)
IMG = 16       # image height/width
P = 8          # patch size
N_PATCH = (IMG // P) ** 2          # 4 patches
D = 32         # embed dim
NH = 2         # attention heads
HD = D // NH   # head dim
DEPTH = 2      # transformer blocks
MLP_H = 64     # SwiGLU hidden size (fc1 produces 2*MLP_H)
N_REG = 4      # register tokens
T = 1 + N_REG + N_PATCH            # 9 tokens
BT = B * T                         # 18 resident rows
CPP = C * P * P                    # 192 patch features
EPS = 1e-6
NEG_BIG = -1e30
F32 = jnp.float32
BF16 = jnp.bfloat16


# ------------------------------ kernel helpers -------------------------------
def _ln(x):
    # plain (affine-free) LayerNorm in f32; gamma/beta are folded into the
    # following matmul weights at init time.
    mu = jnp.mean(x, axis=-1, keepdims=True)
    var = jnp.mean((x - mu) ** 2, axis=-1, keepdims=True)
    return (x - mu) * jax.lax.rsqrt(var + EPS)


# ------------------------------ fused kernel ---------------------------------
def fused_vit_kernel(patches_ref, patch_w_ref, const_ref,
                     w_qkv_ref, b_qkv_ref, w_proj_ref, b_po_ref,
                     w_fc1_ref, b_fc1_ref, w_fc2_ref,
                     o_ref):
    # const_ref rows: [0:BT] = base sequence (cls+pos0, registers, pos_patch+conv_b,
    # tiled over batch), [BT] = final norm gamma, [BT+1] = final norm beta.
    base = const_ref[0:BT]                 # (BT, D) f32
    norm_w = const_ref[BT:BT + 1]          # (1, D)
    norm_b = const_ref[BT + 1:BT + 2]      # (1, D)

    # ---- patch embed: padded patch rows land directly in their sequence slots ----
    # prefix rows of `patches` are zero, so matmul contributes 0 there; `base`
    # already holds cls/reg/pos/conv-bias content.  bf16 x bf16 -> f32 accumulate.
    x = jnp.dot(patches_ref[...], patch_w_ref[...],
                preferred_element_type=jnp.float32) + base            # (BT, D) f32

    # ---- block-diagonal batch mask built in-kernel (no HBM input) ----------------
    r = jax.lax.broadcasted_iota(jnp.int32, (BT, BT), 0)
    c = jax.lax.broadcasted_iota(jnp.int32, (BT, BT), 1)
    same = None
    for b in range(B):                      # static, B=2
        blk = ((r >= b * T) & (r < (b + 1) * T)
               & (c >= b * T) & (c < (b + 1) * T))
        same = blk if same is None else (same | blk)
    attn_bias = jnp.where(same, 0.0, NEG_BIG).astype(F32)             # (BT, BT) f32

    # ---- transformer blocks (static unrolled; weights stacked on layer axis) -----
    for l in range(DEPTH):
        # attention branch: norm1 affine, 1/sqrt(HD) and LayerScale1 are pre-folded.
        h = _ln(x).astype(BF16)             # single bf16 cast reused by q/k/v
        attn = None
        for hi in range(NH):                # head-major weight slots: no lane slicing
            qh = jnp.dot(h, w_qkv_ref[l, 0 * NH + hi],
                         preferred_element_type=jnp.float32) + b_qkv_ref[l, 0 * NH + hi]
            kh = jnp.dot(h, w_qkv_ref[l, 1 * NH + hi],
                         preferred_element_type=jnp.float32) + b_qkv_ref[l, 1 * NH + hi]
            vh = jnp.dot(h, w_qkv_ref[l, 2 * NH + hi],
                         preferred_element_type=jnp.float32) + b_qkv_ref[l, 2 * NH + hi]
            # scores/softmax stay f32; only the matmul operands are bf16.
            s = jax.lax.dot_general(qh.astype(BF16), kh.astype(BF16),
                                    (((1,), (1,)), ((), ())),
                                    preferred_element_type=jnp.float32) + attn_bias
            p = jax.nn.softmax(s, axis=-1)
            oh = jnp.dot(p.astype(BF16), vh.astype(BF16),
                         preferred_element_type=jnp.float32)          # (BT, HD)
            # per-head output-projection block (rows hi*HD:(hi+1)*HD of proj, ls1-scaled)
            contrib = jnp.dot(oh.astype(BF16), w_proj_ref[l, hi],
                              preferred_element_type=jnp.float32)     # (BT, D)
            attn = contrib if attn is None else attn + contrib
        x = x + attn + b_po_ref[l, 0]       # proj bias (ls1-folded)

        # SwiGLU MLP branch: norm2 affine and LayerScale2 are pre-folded.
        h2 = _ln(x).astype(BF16)
        a = jnp.dot(h2, w_fc1_ref[l, 0],
                    preferred_element_type=jnp.float32) + b_fc1_ref[l, 0]
        g = jnp.dot(h2, w_fc1_ref[l, 1],
                    preferred_element_type=jnp.float32) + b_fc1_ref[l, 1]
        m = jax.nn.silu(a) * g                                         # f32 elementwise
        m = jnp.dot(m.astype(BF16), w_fc2_ref[l],
                    preferred_element_type=jnp.float32)
        x = x + m + b_po_ref[l, 1]          # fc2 bias (ls2-folded)

    # ---- final LayerNorm (affine kept), single output write ----------------------
    o_ref[...] = _ln(x) * norm_w + norm_b


# ------------------------------ parameter init --------------------------------
def init_params(key):
    keys = iter(jax.random.split(key, 32))
    nrm = lambda shape, s=0.02: s * jax.random.normal(next(keys), shape, dtype=F32)

    # ---- raw (PyTorch-layout-equivalent) parameters ----
    patch_w = nrm((CPP, D))                 # Conv2d weight flattened (C, kh, kw) -> rows
    patch_b = nrm((1, D))
    cls = nrm((1, D))
    reg = nrm((N_REG, D))
    pos = nrm((1 + N_PATCH, D))             # pos-embed for CLS + patches (registers: none)
    final_nw = jnp.ones((1, D), F32)
    final_nb = jnp.zeros((1, D), F32)

    n1w = jnp.ones((DEPTH, D), F32);  n1b = jnp.zeros((DEPTH, D), F32)
    n2w = jnp.ones((DEPTH, D), F32);  n2b = jnp.zeros((DEPTH, D), F32)
    qkv_w = nrm((DEPTH, D, 3 * D));   qkv_b = nrm((DEPTH, 3 * D))
    proj_w = nrm((DEPTH, D, D));      proj_b = nrm((DEPTH, D))
    fc1_w = nrm((DEPTH, D, 2 * MLP_H)); fc1_b = nrm((DEPTH, 2 * MLP_H))
    fc2_w = nrm((DEPTH, MLP_H, D));     fc2_b = nrm((DEPTH, D))
    ls1 = 1e-2 * jnp.ones((DEPTH, D), F32)
    ls2 = 1e-2 * jnp.ones((DEPTH, D), F32)

    # ---- compile-time folds (zero runtime cost) ----
    # norm1 affine -> qkv (rows *= gamma1, bias += beta1 @ W); 1/sqrt(HD) -> q columns.
    q_scale = jnp.concatenate([jnp.full((D,), HD ** -0.5, F32),
                               jnp.ones((2 * D,), F32)])
    qkv_w_f = (qkv_w * n1w[:, :, None]) * q_scale
    qkv_b_f = (qkv_b + jnp.einsum('ld,ldc->lc', n1b, qkv_w)) * q_scale
    # LayerScale1 -> proj columns/bias.
    proj_w_f = proj_w * ls1[:, None, :]
    proj_b_f = proj_b * ls1
    # norm2 affine -> fc1.
    fc1_w_f = fc1_w * n2w[:, :, None]
    fc1_b_f = fc1_b + jnp.einsum('ld,ldc->lc', n2b, fc1_w)
    # LayerScale2 -> fc2 columns/bias.
    fc2_w_f = fc2_w * ls2[:, None, :]
    fc2_b_f = fc2_b * ls2

    # ---- pack into a handful of kernel inputs (head-major, leading-axis sliced) ----
    # qkv slots: slot = kind*NH + head, kind in (q, k, v).
    w_qkv = (qkv_w_f.reshape(DEPTH, D, 3, NH, HD)
             .transpose(0, 2, 3, 1, 4).reshape(DEPTH, 3 * NH, D, HD).astype(BF16))
    b_qkv = qkv_b_f.reshape(DEPTH, 3 * NH, 1, HD)
    w_proj = proj_w_f.reshape(DEPTH, NH, HD, D).astype(BF16)
    w_fc1 = fc1_w_f.reshape(DEPTH, D, 2, MLP_H).transpose(0, 2, 1, 3).astype(BF16)
    b_fc1 = fc1_b_f.reshape(DEPTH, 2, 1, MLP_H)
    w_fc2 = fc2_w_f.astype(BF16)
    b_po = jnp.stack([proj_b_f, fc2_b_f], axis=1).reshape(DEPTH, 2, 1, D)

    # Resident base sequence (cls+pos0, registers, pos_patch + conv bias) tiled over
    # batch, plus the final-norm affine rows, all in ONE constant array.
    prefix = jnp.concatenate([cls + pos[:1], reg], axis=0)             # (1+N_REG, D)
    per_batch = jnp.concatenate([prefix, pos[1:] + patch_b], axis=0)   # (T, D)
    const_c = jnp.concatenate([jnp.tile(per_batch, (B, 1)), final_nw, final_nb],
                              axis=0)                                  # (BT+2, D)

    return dict(patch_w=patch_w.astype(BF16), const_c=const_c,
                w_qkv=w_qkv, b_qkv=b_qkv, w_proj=w_proj, b_po=b_po,
                w_fc1=w_fc1, b_fc1=b_fc1, w_fc2=w_fc2)


# ------------------------------ forward ----------------------------------------
@jax.jit
def hoptimus_forward(image, params):
    # image: [B, C, IMG, IMG] (NCHW). Tensor input -> no Normalize applied, matching
    # the PyTorch module's behavior for tensor inputs.
    x = image.reshape(B, C, IMG // P, P, IMG // P, P)
    x = jnp.transpose(x, (0, 2, 4, 1, 3, 5)).reshape(B, N_PATCH, CPP)
    # Zero rows for [cls + registers]: the in-kernel patch-embed matmul then writes
    # patch embeddings directly into their sequence rows (prefix rows come from base).
    patches = jnp.pad(x, ((0, 0), (1 + N_REG, 0), (0, 0))).reshape(BT, CPP).astype(BF16)

    args = (patches, params["patch_w"], params["const_c"],
            params["w_qkv"], params["b_qkv"], params["w_proj"], params["b_po"],
            params["w_fc1"], params["b_fc1"], params["w_fc2"])

    flops = 2 * BT * CPP * D + 2 * DEPTH * (
        BT * D * 3 * D + 2 * NH * BT * BT * HD + BT * D * D
        + BT * D * 2 * MLP_H + BT * MLP_H * D)
    transcendentals = DEPTH * (NH * BT * BT + BT * MLP_H)
    bytes_accessed = int(sum(a.size * a.dtype.itemsize for a in args)) + BT * D * 4

    vmem = pl.BlockSpec(memory_space=pltpu.MemorySpace.VMEM)
    out = pl.pallas_call(
        fused_vit_kernel,
        out_shape=jax.ShapeDtypeStruct((BT, D), F32),
        in_specs=[vmem] * len(args),
        out_specs=vmem,
        cost_estimate=pl.CostEstimate(flops=flops, transcendentals=transcendentals,
                                      bytes_accessed=bytes_accessed),
    )(*args)

    out = out.reshape(B, T, D)
    return {
        "x_norm_cls_token": out[:, 0, :],
        "x_norm_patch_tokens": out[:, 1 + N_REG:, :],
    }
    # TODO(synk): on v7x, split the batch across the 2 TensorCores via grid=(B,) with
    # dimension_semantics=("parallel",) (gated per-generation; no benefit on v5e/v6e).
    # TODO(synk): at real H-optimus-0 scale (D=1536, depth=40) stream layer weights
    # over a DEPTH grid axis with pl.Buffered double-buffering instead of keeping
    # them resident.


# ------------------------------ main --------------------------------------------
if __name__ == "__main__":
    key = jax.random.PRNGKey(0)
    k_img, k_par = jax.random.split(key)
    image = jax.random.normal(k_img, (B, C, IMG, IMG), dtype=F32)
    params = init_params(k_par)

    out = hoptimus_forward(image, params)
    jax.block_until_ready(out)

    assert out["x_norm_cls_token"].shape == (B, D)
    assert out["x_norm_patch_tokens"].shape == (B, N_PATCH, D)
    assert bool(jnp.all(jnp.isfinite(out["x_norm_cls_token"])))
    assert bool(jnp.all(jnp.isfinite(out["x_norm_patch_tokens"])))
    # TODO(synk): pretrained H-optimus-0 weights / PIL ToTensor+Normalize path not
    # reproduced (synthetic PRNG weights; tensor-input branch only).
    print("KERNEL_OK")
</pallas_src>

<mosaic_0001>
module attributes {stable_mosaic.version = 11 : i64} {
  func.func @fused_vit_kernel(%arg0: memref<18x192xbf16, #tpu.memory_space<vmem>>, %arg1: memref<192x32xbf16, #tpu.memory_space<vmem>>, %arg2: memref<20x32xf32, #tpu.memory_space<vmem>>, %arg3: memref<2x6x32x16xbf16, #tpu.memory_space<vmem>>, %arg4: memref<2x6x1x16xf32, #tpu.memory_space<vmem>>, %arg5: memref<2x2x16x32xbf16, #tpu.memory_space<vmem>>, %arg6: memref<2x2x1x32xf32, #tpu.memory_space<vmem>>, %arg7: memref<2x2x32x64xbf16, #tpu.memory_space<vmem>>, %arg8: memref<2x2x1x64xf32, #tpu.memory_space<vmem>>, %arg9: memref<2x64x32xbf16, #tpu.memory_space<vmem>>, %arg10: memref<18x32xf32, #tpu.memory_space<vmem>>) attributes {dimension_semantics = [], scalar_prefetch = 0 : i64, scratch_operands = 0 : i64, tpu.core_type = #tpu.core_type<tc>} {
    %c0 = arith.constant 0 : index
    %c0_0 = arith.constant 0 : index
    %0 = vector.load %arg2[%c0, %c0_0] : memref<20x32xf32, #tpu.memory_space<vmem>>, vector<18x32xf32>
    %c18 = arith.constant 18 : index
    %c0_1 = arith.constant 0 : index
    %1 = vector.load %arg2[%c18, %c0_1] : memref<20x32xf32, #tpu.memory_space<vmem>>, vector<1x32xf32>
    %c19 = arith.constant 19 : index
    %c0_2 = arith.constant 0 : index
    %2 = vector.load %arg2[%c19, %c0_2] : memref<20x32xf32, #tpu.memory_space<vmem>>, vector<1x32xf32>
    %c0_3 = arith.constant 0 : index
    %c0_4 = arith.constant 0 : index
    %3 = vector.load %arg0[%c0_3, %c0_4] : memref<18x192xbf16, #tpu.memory_space<vmem>>, vector<18x192xbf16>
    %c0_5 = arith.constant 0 : index
    %c0_6 = arith.constant 0 : index
    %4 = vector.load %arg1[%c0_5, %c0_6] : memref<192x32xbf16, #tpu.memory_space<vmem>>, vector<192x32xbf16>
    %cst = arith.constant dense<0.000000e+00> : vector<18x32xf32>
    %5 = tpu.matmul %3, %4, %cst {dimension_numbers = #tpu.dot_dimension_numbers<[1], [0], [0], [1], [0, 0, 1, 1], [], []>} : vector<18x192xbf16>, vector<192x32xbf16>, vector<18x32xf32> -> vector<18x32xf32>
    %6 = arith.addf %5, %0 : vector<18x32xf32>
    %7 = tpu.iota {dimensions = array<i32: 0>} : vector<18x18xi32>
    %8 = tpu.iota {dimensions = array<i32: 1>} : vector<18x18xi32>
    %c0_i32 = arith.constant 0 : i32
    %9 = vector.broadcast %c0_i32 : i32 to vector<18x18xi32>
    %10 = arith.cmpi sge, %7, %9 : vector<18x18xi32>
    %c9_i32 = arith.constant 9 : i32
    %11 = vector.broadcast %c9_i32 : i32 to vector<18x18xi32>
    %12 = arith.cmpi slt, %7, %11 : vector<18x18xi32>
    %13 = arith.andi %10, %12 : vector<18x18xi1>
    %c0_i32_7 = arith.constant 0 : i32
    %14 = vector.broadcast %c0_i32_7 : i32 to vector<18x18xi32>
    %15 = arith.cmpi sge, %8, %14 : vector<18x18xi32>
    %16 = arith.andi %13, %15 : vector<18x18xi1>
    %c9_i32_8 = arith.constant 9 : i32
    %17 = vector.broadcast %c9_i32_8 : i32 to vector<18x18xi32>
    %18 = arith.cmpi slt, %8, %17 : vector<18x18xi32>
    %19 = arith.andi %16, %18 : vector<18x18xi1>
    %c9_i32_9 = arith.constant 9 : i32
    %20 = vector.broadcast %c9_i32_9 : i32 to vector<18x18xi32>
    %21 = arith.cmpi sge, %7, %20 : vector<18x18xi32>
    %c18_i32 = arith.constant 18 : i32
    %22 = vector.broadcast %c18_i32 : i32 to vector<18x18xi32>
    %23 = arith.cmpi slt, %7, %22 : vector<18x18xi32>
    %24 = arith.andi %21, %23 : vector<18x18xi1>
    %c9_i32_10 = arith.constant 9 : i32
    %25 = vector.broadcast %c9_i32_10 : i32 to vector<18x18xi32>
    %26 = arith.cmpi sge, %8, %25 : vector<18x18xi32>
    %27 = arith.andi %24, %26 : vector<18x18xi1>
    %c18_i32_11 = arith.constant 18 : i32
    %28 = vector.broadcast %c18_i32_11 : i32 to vector<18x18xi32>
    %29 = arith.cmpi slt, %8, %28 : vector<18x18xi32>
    %30 = arith.andi %27, %29 : vector<18x18xi1>
    %31 = arith.ori %19, %30 : vector<18x18xi1>
    %cst_12 = arith.constant 0.000000e+00 : f32
    %cst_13 = arith.constant -1.000000e+30 : f32
    %32 = vector.broadcast %cst_12 : f32 to vector<18x18xf32>
    %33 = vector.broadcast %cst_13 : f32 to vector<18x18xf32>
    %34 = arith.select %31, %32, %33 : vector<18x18xi1>, vector<18x18xf32>
    %cst_14 = arith.constant dense<0.000000e+00> : vector<18xf32>
    %35 = vector.multi_reduction <add>, %6, %cst_14 [1] : vector<18x32xf32> to vector<18xf32>
    %36 = vector.shape_cast %35 : vector<18xf32> to vector<18x1xf32>
    %cst_15 = arith.constant 3.200000e+01 : f32
    %37 = vector.broadcast %cst_15 : f32 to vector<18x1xf32>
    %38 = arith.divf %36, %37 : vector<18x1xf32>
    %39 = vector.broadcast %38 : vector<18x1xf32> to vector<18x32xf32>
    %40 = arith.subf %6, %39 : vector<18x32xf32>
    %41 = arith.mulf %40, %40 : vector<18x32xf32>
    %cst_16 = arith.constant dense<0.000000e+00> : vector<18xf32>
    %42 = vector.multi_reduction <add>, %41, %cst_16 [1] : vector<18x32xf32> to vector<18xf32>
    %43 = vector.shape_cast %42 : vector<18xf32> to vector<18x1xf32>
    %cst_17 = arith.constant 3.200000e+01 : f32
    %44 = vector.broadcast %cst_17 : f32 to vector<18x1xf32>
    %45 = arith.divf %43, %44 : vector<18x1xf32>
    %46 = vector.broadcast %38 : vector<18x1xf32> to vector<18x32xf32>
    %47 = arith.subf %6, %46 : vector<18x32xf32>
    %cst_18 = arith.constant 9.99999997E-7 : f32
    %48 = vector.broadcast %cst_18 : f32 to vector<18x1xf32>
    %49 = arith.addf %45, %48 : vector<18x1xf32>
    %50 = math.rsqrt %49 : vector<18x1xf32>
    %51 = vector.broadcast %50 : vector<18x1xf32> to vector<18x32xf32>
    %52 = arith.mulf %47, %51 : vector<18x32xf32>
    %53 = arith.truncf %52 : vector<18x32xf32> to vector<18x32xbf16>
    %c0_19 = arith.constant 0 : index
    %c0_20 = arith.constant 0 : index
    %c0_21 = arith.constant 0 : index
    %c0_22 = arith.constant 0 : index
    %54 = vector.load %arg3[%c0_19, %c0_20, %c0_21, %c0_22] : memref<2x6x32x16xbf16, #tpu.memory_space<vmem>>, vector<1x1x32x16xbf16>
    %55 = vector.shape_cast %54 : vector<1x1x32x16xbf16> to vector<32x16xbf16>
    %cst_23 = arith.constant dense<0.000000e+00> : vector<18x16xf32>
    %56 = tpu.matmul %53, %55, %cst_23 {dimension_numbers = #tpu.dot_dimension_numbers<[1], [0], [0], [1], [0, 0, 1, 1], [], []>} : vector<18x32xbf16>, vector<32x16xbf16>, vector<18x16xf32> -> vector<18x16xf32>
    %c0_24 = arith.constant 0 : index
    %c0_25 = arith.constant 0 : index
    %c0_26 = arith.constant 0 : index
    %c0_27 = arith.constant 0 : index
    %57 = vector.load %arg4[%c0_24, %c0_25, %c0_26, %c0_27] : memref<2x6x1x16xf32, #tpu.memory_space<vmem>>, vector<1x1x1x16xf32>
    %58 = vector.shape_cast %57 : vector<1x1x1x16xf32> to vector<1x16xf32>
    %59 = vector.broadcast %58 : vector<1x16xf32> to vector<18x16xf32>
    %60 = arith.addf %56, %59 : vector<18x16xf32>
    %c0_28 = arith.constant 0 : index
    %c2 = arith.constant 2 : index
    %c0_29 = arith.constant 0 : index
    %c0_30 = arith.constant 0 : index
    %61 = vector.load %arg3[%c0_28, %c2, %c0_29, %c0_30] : memref<2x6x32x16xbf16, #tpu.memory_space<vmem>>, vector<1x1x32x16xbf16>
    %62 = vector.shape_cast %61 : vector<1x1x32x16xbf16> to vector<32x16xbf16>
    %cst_31 = arith.constant dense<0.000000e+00> : vector<18x16xf32>
    %63 = tpu.matmul %53, %62, %cst_31 {dimension_numbers = #tpu.dot_dimension_numbers<[1], [0], [0], [1], [0, 0, 1, 1], [], []>} : vector<18x32xbf16>, vector<32x16xbf16>, vector<18x16xf32> -> vector<18x16xf32>
    %c0_32 = arith.constant 0 : index
    %c2_33 = arith.constant 2 : index
    %c0_34 = arith.constant 0 : index
    %c0_35 = arith.constant 0 : index
    %64 = vector.load %arg4[%c0_32, %c2_33, %c0_34, %c0_35] : memref<2x6x1x16xf32, #tpu.memory_space<vmem>>, vector<1x1x1x16xf32>
    %65 = vector.shape_cast %64 : vector<1x1x1x16xf32> to vector<1x16xf32>
    %66 = vector.broadcast %65 : vector<1x16xf32> to vector<18x16xf32>
    %67 = arith.addf %63, %66 : vector<18x16xf32>
    %c0_36 = arith.constant 0 : index
    %c4 = arith.constant 4 : index
    %c0_37 = arith.constant 0 : index
    %c0_38 = arith.constant 0 : index
    %68 = vector.load %arg3[%c0_36, %c4, %c0_37, %c0_38] : memref<2x6x32x16xbf16, #tpu.memory_space<vmem>>, vector<1x1x32x16xbf16>
    %69 = vector.shape_cast %68 : vector<1x1x32x16xbf16> to vector<32x16xbf16>
    %cst_39 = arith.constant dense<0.000000e+00> : vector<18x16xf32>
    %70 = tpu.matmul %53, %69, %cst_39 {dimension_numbers = #tpu.dot_dimension_numbers<[1], [0], [0], [1], [0, 0, 1, 1], [], []>} : vector<18x32xbf16>, vector<32x16xbf16>, vector<18x16xf32> -> vector<18x16xf32>
    %c0_40 = arith.constant 0 : index
    %c4_41 = arith.constant 4 : index
    %c0_42 = arith.constant 0 : index
    %c0_43 = arith.constant 0 : index
    %71 = vector.load %arg4[%c0_40, %c4_41, %c0_42, %c0_43] : memref<2x6x1x16xf32, #tpu.memory_space<vmem>>, vector<1x1x1x16xf32>
    %72 = vector.shape_cast %71 : vector<1x1x1x16xf32> to vector<1x16xf32>
    %73 = vector.broadcast %72 : vector<1x16xf32> to vector<18x16xf32>
    %74 = arith.addf %70, %73 : vector<18x16xf32>
    %75 = arith.truncf %60 : vector<18x16xf32> to vector<18x16xbf16>
    %76 = arith.truncf %67 : vector<18x16xf32> to vector<18x16xbf16>
    %cst_44 = arith.constant dense<0.000000e+00> : vector<18x18xf32>
    %77 = tpu.matmul %75, %76, %cst_44 {dimension_numbers = #tpu.dot_dimension_numbers<[1], [1], [0], [0], [0, 0, 1, 0], [], []>} : vector<18x16xbf16>, vector<18x16xbf16>, vector<18x18xf32> -> vector<18x18xf32>
    %78 = arith.addf %77, %34 : vector<18x18xf32>
    %cst_45 = arith.constant dense<0xFF800000> : vector<18xf32>
    %79 = vector.multi_reduction <maximumf>, %78, %cst_45 [1] : vector<18x18xf32> to vector<18xf32>
    %cst_46 = arith.constant 0xFF800000 : f32
    %80 = vector.broadcast %cst_46 : f32 to vector<18xf32>
    %81 = arith.maximumf %80, %79 : vector<18xf32>
    %82 = vector.shape_cast %81 : vector<18xf32> to vector<18x1xf32>
    %83 = vector.broadcast %82 : vector<18x1xf32> to vector<18x18xf32>
    %84 = arith.subf %78, %83 : vector<18x18xf32>
    %85 = math.exp %84 : vector<18x18xf32>
    %cst_47 = arith.constant dense<0.000000e+00> : vector<18xf32>
    %86 = vector.multi_reduction <add>, %85, %cst_47 [1] : vector<18x18xf32> to vector<18xf32>
    %87 = vector.shape_cast %86 : vector<18xf32> to vector<18x1xf32>
    %88 = vector.broadcast %87 : vector<18x1xf32> to vector<18x18xf32>
    %89 = arith.divf %85, %88 : vector<18x18xf32>
    %90 = arith.truncf %89 : vector<18x18xf32> to vector<18x18xbf16>
    %91 = arith.truncf %74 : vector<18x16xf32> to vector<18x16xbf16>
    %cst_48 = arith.constant dense<0.000000e+00> : vector<18x16xf32>
    %92 = tpu.matmul %90, %91, %cst_48 {dimension_numbers = #tpu.dot_dimension_numbers<[1], [0], [0], [1], [0, 0, 1, 1], [], []>} : vector<18x18xbf16>, vector<18x16xbf16>, vector<18x16xf32> -> vector<18x16xf32>
    %93 = arith.truncf %92 : vector<18x16xf32> to vector<18x16xbf16>
    %c0_49 = arith.constant 0 : index
    %c0_50 = arith.constant 0 : index
    %c0_51 = arith.constant 0 : index
    %c0_52 = arith.constant 0 : index
    %94 = vector.load %arg5[%c0_49, %c0_50, %c0_51, %c0_52] : memref<2x2x16x32xbf16, #tpu.memory_space<vmem>>, vector<1x1x16x32xbf16>
    %95 = vector.shape_cast %94 : vector<1x1x16x32xbf16> to vector<16x32xbf16>
    %cst_53 = arith.constant dense<0.000000e+00> : vector<18x32xf32>
    %96 = tpu.matmul %93, %95, %cst_53 {dimension_numbers = #tpu.dot_dimension_numbers<[1], [0], [0], [1], [0, 0, 1, 1], [], []>} : vector<18x16xbf16>, vector<16x32xbf16>, vector<18x32xf32> -> vector<18x32xf32>
    %c0_54 = arith.constant 0 : index
    %c1 = arith.constant 1 : index
    %c0_55 = arith.constant 0 : index
    %c0_56 = arith.constant 0 : index
    %97 = vector.load %arg3[%c0_54, %c1, %c0_55, %c0_56] : memref<2x6x32x16xbf16, #tpu.memory_space<vmem>>, vector<1x1x32x16xbf16>
    %98 = vector.shape_cast %97 : vector<1x1x32x16xbf16> to vector<32x16xbf16>
    %cst_57 = arith.constant dense<0.000000e+00> : vector<18x16xf32>
    %99 = tpu.matmul %53, %98, %cst_57 {dimension_numbers = #tpu.dot_dimension_numbers<[1], [0], [0], [1], [0, 0, 1, 1], [], []>} : vector<18x32xbf16>, vector<32x16xbf16>, vector<18x16xf32> -> vector<18x16xf32>
    %c0_58 = arith.constant 0 : index
    %c1_59 = arith.constant 1 : index
    %c0_60 = arith.constant 0 : index
    %c0_61 = arith.constant 0 : index
    %100 = vector.load %arg4[%c0_58, %c1_59, %c0_60, %c0_61] : memref<2x6x1x16xf32, #tpu.memory_space<vmem>>, vector<1x1x1x16xf32>
    %101 = vector.shape_cast %100 : vector<1x1x1x16xf32> to vector<1x16xf32>
    %102 = vector.broadcast %101 : vector<1x16xf32> to vector<18x16xf32>
    %103 = arith.addf %99, %102 : vector<18x16xf32>
    %c0_62 = arith.constant 0 : index
    %c3 = arith.constant 3 : index
    %c0_63 = arith.constant 0 : index
    %c0_64 = arith.constant 0 : index
    %104 = vector.load %arg3[%c0_62, %c3, %c0_63, %c0_64] : memref<2x6x32x16xbf16, #tpu.memory_space<vmem>>, vector<1x1x32x16xbf16>
    %105 = vector.shape_cast %104 : vector<1x1x32x16xbf16> to vector<32x16xbf16>
    %cst_65 = arith.constant dense<0.000000e+00> : vector<18x16xf32>
    %106 = tpu.matmul %53, %105, %cst_65 {dimension_numbers = #tpu.dot_dimension_numbers<[1], [0], [0], [1], [0, 0, 1, 1], [], []>} : vector<18x32xbf16>, vector<32x16xbf16>, vector<18x16xf32> -> vector<18x16xf32>
    %c0_66 = arith.constant 0 : index
    %c3_67 = arith.constant 3 : index
    %c0_68 = arith.constant 0 : index
    %c0_69 = arith.constant 0 : index
    %107 = vector.load %arg4[%c0_66, %c3_67, %c0_68, %c0_69] : memref<2x6x1x16xf32, #tpu.memory_space<vmem>>, vector<1x1x1x16xf32>
    %108 = vector.shape_cast %107 : vector<1x1x1x16xf32> to vector<1x16xf32>
    %109 = vector.broadcast %108 : vector<1x16xf32> to vector<18x16xf32>
    %110 = arith.addf %106, %109 : vector<18x16xf32>
    %c0_70 = arith.constant 0 : index
    %c5 = arith.constant 5 : index
    %c0_71 = arith.constant 0 : index
    %c0_72 = arith.constant 0 : index
    %111 = vector.load %arg3[%c0_70, %c5, %c0_71, %c0_72] : memref<2x6x32x16xbf16, #tpu.memory_space<vmem>>, vector<1x1x32x16xbf16>
    %112 = vector.shape_cast %111 : vector<1x1x32x16xbf16> to vector<32x16xbf16>
    %cst_73 = arith.constant dense<0.000000e+00> : vector<18x16xf32>
    %113 = tpu.matmul %53, %112, %cst_73 {dimension_numbers = #tpu.dot_dimension_numbers<[1], [0], [0], [1], [0, 0, 1, 1], [], []>} : vector<18x32xbf16>, vector<32x16xbf16>, vector<18x16xf32> -> vector<18x16xf32>
    %c0_74 = arith.constant 0 : index
    %c5_75 = arith.constant 5 : index
    %c0_76 = arith.constant 0 : index
    %c0_77 = arith.constant 0 : index
    %114 = vector.load %arg4[%c0_74, %c5_75, %c0_76, %c0_77] : memref<2x6x1x16xf32, #tpu.memory_space<vmem>>, vector<1x1x1x16xf32>
    %115 = vector.shape_cast %114 : vector<1x1x1x16xf32> to vector<1x16xf32>
    %116 = vector.broadcast %115 : vector<1x16xf32> to vector<18x16xf32>
    %117 = arith.addf %113, %116 : vector<18x16xf32>
    %118 = arith.truncf %103 : vector<18x16xf32> to vector<18x16xbf16>
    %119 = arith.truncf %110 : vector<18x16xf32> to vector<18x16xbf16>
    %cst_78 = arith.constant dense<0.000000e+00> : vector<18x18xf32>
    %120 = tpu.matmul %118, %119, %cst_78 {dimension_numbers = #tpu.dot_dimension_numbers<[1], [1], [0], [0], [0, 0, 1, 0], [], []>} : vector<18x16xbf16>, vector<18x16xbf16>, vector<18x18xf32> -> vector<18x18xf32>
    %121 = arith.addf %120, %34 : vector<18x18xf32>
    %cst_79 = arith.constant dense<0xFF800000> : vector<18xf32>
    %122 = vector.multi_reduction <maximumf>, %121, %cst_79 [1] : vector<18x18xf32> to vector<18xf32>
    %cst_80 = arith.constant 0xFF800000 : f32
    %123 = vector.broadcast %cst_80 : f32 to vector<18xf32>
    %124 = arith.maximumf %123, %122 : vector<18xf32>
    %125 = vector.shape_cast %124 : vector<18xf32> to vector<18x1xf32>
    %126 = vector.broadcast %125 : vector<18x1xf32> to vector<18x18xf32>
    %127 = arith.subf %121, %126 : vector<18x18xf32>
    %128 = math.exp %127 : vector<18x18xf32>
    %cst_81 = arith.constant dense<0.000000e+00> : vector<18xf32>
    %129 = vector.multi_reduction <add>, %128, %cst_81 [1] : vector<18x18xf32> to vector<18xf32>
    %130 = vector.shape_cast %129 : vector<18xf32> to vector<18x1xf32>
    %131 = vector.broadcast %130 : vector<18x1xf32> to vector<18x18xf32>
    %132 = arith.divf %128, %131 : vector<18x18xf32>
    %133 = arith.truncf %132 : vector<18x18xf32> to vector<18x18xbf16>
    %134 = arith.truncf %117 : vector<18x16xf32> to vector<18x16xbf16>
    %cst_82 = arith.constant dense<0.000000e+00> : vector<18x16xf32>
    %135 = tpu.matmul %133, %134, %cst_82 {dimension_numbers = #tpu.dot_dimension_numbers<[1], [0], [0], [1], [0, 0, 1, 1], [], []>} : vector<18x18xbf16>, vector<18x16xbf16>, vector<18x16xf32> -> vector<18x16xf32>
    %136 = arith.truncf %135 : vector<18x16xf32> to vector<18x16xbf16>
    %c0_83 = arith.constant 0 : index
    %c1_84 = arith.constant 1 : index
    %c0_85 = arith.constant 0 : index
    %c0_86 = arith.constant 0 : index
    %137 = vector.load %arg5[%c0_83, %c1_84, %c0_85, %c0_86] : memref<2x2x16x32xbf16, #tpu.memory_space<vmem>>, vector<1x1x16x32xbf16>
    %138 = vector.shape_cast %137 : vector<1x1x16x32xbf16> to vector<16x32xbf16>
    %cst_87 = arith.constant dense<0.000000e+00> : vector<18x32xf32>
    %139 = tpu.matmul %136, %138, %cst_87 {dimension_numbers = #tpu.dot_dimension_numbers<[1], [0], [0], [1], [0, 0, 1, 1], [], []>} : vector<18x16xbf16>, vector<16x32xbf16>, vector<18x32xf32> -> vector<18x32xf32>
    %140 = arith.addf %96, %139 : vector<18x32xf32>
    %141 = arith.addf %6, %140 : vector<18x32xf32>
    %c0_88 = arith.constant 0 : index
    %c0_89 = arith.constant 0 : index
    %c0_90 = arith.constant 0 : index
    %c0_91 = arith.constant 0 : index
    %142 = vector.load %arg6[%c0_88, %c0_89, %c0_90, %c0_91] : memref<2x2x1x32xf32, #tpu.memory_space<vmem>>, vector<1x1x1x32xf32>
    %143 = vector.shape_cast %142 : vector<1x1x1x32xf32> to vector<1x32xf32>
    %144 = vector.broadcast %143 : vector<1x32xf32> to vector<18x32xf32>
    %145 = arith.addf %141, %144 : vector<18x32xf32>
    %cst_92 = arith.constant dense<0.000000e+00> : vector<18xf32>
    %146 = vector.multi_reduction <add>, %145, %cst_92 [1] : vector<18x32xf32> to vector<18xf32>
    %147 = vector.shape_cast %146 : vector<18xf32> to vector<18x1xf32>
    %cst_93 = arith.constant 3.200000e+01 : f32
    %148 = vector.broadcast %cst_93 : f32 to vector<18x1xf32>
    %149 = arith.divf %147, %148 : vector<18x1xf32>
    %150 = vector.broadcast %149 : vector<18x1xf32> to vector<18x32xf32>
    %151 = arith.subf %145, %150 : vector<18x32xf32>
    %152 = arith.mulf %151, %151 : vector<18x32xf32>
    %cst_94 = arith.constant dense<0.000000e+00> : vector<18xf32>
    %153 = vector.multi_reduction <add>, %152, %cst_94 [1] : vector<18x32xf32> to vector<18xf32>
    %154 = vector.shape_cast %153 : vector<18xf32> to vector<18x1xf32>
    %cst_95 = arith.constant 3.200000e+01 : f32
    %155 = vector.broadcast %cst_95 : f32 to vector<18x1xf32>
    %156 = arith.divf %154, %155 : vector<18x1xf32>
    %157 = vector.broadcast %149 : vector<18x1xf32> to vector<18x32xf32>
    %158 = arith.subf %145, %157 : vector<18x32xf32>
    %cst_96 = arith.constant 9.99999997E-7 : f32
    %159 = vector.broadcast %cst_96 : f32 to vector<18x1xf32>
    %160 = arith.addf %156, %159 : vector<18x1xf32>
    %161 = math.rsqrt %160 : vector<18x1xf32>
    %162 = vector.broadcast %161 : vector<18x1xf32> to vector<18x32xf32>
    %163 = arith.mulf %158, %162 : vector<18x32xf32>
    %164 = arith.truncf %163 : vector<18x32xf32> to vector<18x32xbf16>
    %c0_97 = arith.constant 0 : index
    %c0_98 = arith.constant 0 : index
    %c0_99 = arith.constant 0 : index
    %c0_100 = arith.constant 0 : index
    %165 = vector.load %arg7[%c0_97, %c0_98, %c0_99, %c0_100] : memref<2x2x32x64xbf16, #tpu.memory_space<vmem>>, vector<1x1x32x64xbf16>
    %166 = vector.shape_cast %165 : vector<1x1x32x64xbf16> to vector<32x64xbf16>
    %cst_101 = arith.constant dense<0.000000e+00> : vector<18x64xf32>
    %167 = tpu.matmul %164, %166, %cst_101 {dimension_numbers = #tpu.dot_dimension_numbers<[1], [0], [0], [1], [0, 0, 1, 1], [], []>} : vector<18x32xbf16>, vector<32x64xbf16>, vector<18x64xf32> -> vector<18x64xf32>
    %c0_102 = arith.constant 0 : index
    %c0_103 = arith.constant 0 : index
    %c0_104 = arith.constant 0 : index
    %c0_105 = arith.constant 0 : index
    %168 = vector.load %arg8[%c0_102, %c0_103, %c0_104, %c0_105] : memref<2x2x1x64xf32, #tpu.memory_space<vmem>>, vector<1x1x1x64xf32>
    %169 = vector.shape_cast %168 : vector<1x1x1x64xf32> to vector<1x64xf32>
    %170 = vector.broadcast %169 : vector<1x64xf32> to vector<18x64xf32>
    %171 = arith.addf %167, %170 : vector<18x64xf32>
    %c0_106 = arith.constant 0 : index
    %c1_107 = arith.constant 1 : index
    %c0_108 = arith.constant 0 : index
    %c0_109 = arith.constant 0 : index
    %172 = vector.load %arg7[%c0_106, %c1_107, %c0_108, %c0_109] : memref<2x2x32x64xbf16, #tpu.memory_space<vmem>>, vector<1x1x32x64xbf16>
    %173 = vector.shape_cast %172 : vector<1x1x32x64xbf16> to vector<32x64xbf16>
    %cst_110 = arith.constant dense<0.000000e+00> : vector<18x64xf32>
    %174 = tpu.matmul %164, %173, %cst_110 {dimension_numbers = #tpu.dot_dimension_numbers<[1], [0], [0], [1], [0, 0, 1, 1], [], []>} : vector<18x32xbf16>, vector<32x64xbf16>, vector<18x64xf32> -> vector<18x64xf32>
    %c0_111 = arith.constant 0 : index
    %c1_112 = arith.constant 1 : index
    %c0_113 = arith.constant 0 : index
    %c0_114 = arith.constant 0 : index
    %175 = vector.load %arg8[%c0_111, %c1_112, %c0_113, %c0_114] : memref<2x2x1x64xf32, #tpu.memory_space<vmem>>, vector<1x1x1x64xf32>
    %176 = vector.shape_cast %175 : vector<1x1x1x64xf32> to vector<1x64xf32>
    %177 = vector.broadcast %176 : vector<1x64xf32> to vector<18x64xf32>
    %178 = arith.addf %174, %177 : vector<18x64xf32>
    %179 = arith.negf %171 : vector<18x64xf32>
    %180 = math.exp %179 : vector<18x64xf32>
    %cst_115 = arith.constant 1.000000e+00 : f32
    %181 = vector.broadcast %cst_115 : f32 to vector<18x64xf32>
    %182 = arith.addf %181, %180 : vector<18x64xf32>
    %183 = arith.divf %181, %182 : vector<18x64xf32>
    %184 = arith.mulf %171, %183 : vector<18x64xf32>
    %185 = arith.mulf %184, %178 : vector<18x64xf32>
    %186 = arith.truncf %185 : vector<18x64xf32> to vector<18x64xbf16>
    %c0_116 = arith.constant 0 : index
    %c0_117 = arith.constant 0 : index
    %c0_118 = arith.constant 0 : index
    %187 = vector.load %arg9[%c0_116, %c0_117, %c0_118] : memref<2x64x32xbf16, #tpu.memory_space<vmem>>, vector<1x64x32xbf16>
    %188 = vector.shape_cast %187 : vector<1x64x32xbf16> to vector<64x32xbf16>
    %cst_119 = arith.constant dense<0.000000e+00> : vector<18x32xf32>
    %189 = tpu.matmul %186, %188, %cst_119 {dimension_numbers = #tpu.dot_dimension_numbers<[1], [0], [0], [1], [0, 0, 1, 1], [], []>} : vector<18x64xbf16>, vector<64x32xbf16>, vector<18x32xf32> -> vector<18x32xf32>
    %190 = arith.addf %145, %189 : vector<18x32xf32>
    %c0_120 = arith.constant 0 : index
    %c1_121 = arith.constant 1 : index
    %c0_122 = arith.constant 0 : index
    %c0_123 = arith.constant 0 : index
    %191 = vector.load %arg6[%c0_120, %c1_121, %c0_122, %c0_123] : memref<2x2x1x32xf32, #tpu.memory_space<vmem>>, vector<1x1x1x32xf32>
    %192 = vector.shape_cast %191 : vector<1x1x1x32xf32> to vector<1x32xf32>
    %193 = vector.broadcast %192 : vector<1x32xf32> to vector<18x32xf32>
    %194 = arith.addf %190, %193 : vector<18x32xf32>
    %cst_124 = arith.constant dense<0.000000e+00> : vector<18xf32>
    %195 = vector.multi_reduction <add>, %194, %cst_124 [1] : vector<18x32xf32> to vector<18xf32>
    %196 = vector.shape_cast %195 : vector<18xf32> to vector<18x1xf32>
    %cst_125 = arith.constant 3.200000e+01 : f32
    %197 = vector.broadcast %cst_125 : f32 to vector<18x1xf32>
    %198 = arith.divf %196, %197 : vector<18x1xf32>
    %199 = vector.broadcast %198 : vector<18x1xf32> to vector<18x32xf32>
    %200 = arith.subf %194, %199 : vector<18x32xf32>
    %201 = arith.mulf %200, %200 : vector<18x32xf32>
    %cst_126 = arith.constant dense<0.000000e+00> : vector<18xf32>
    %202 = vector.multi_reduction <add>, %201, %cst_126 [1] : vector<18x32xf32> to vector<18xf32>
    %203 = vector.shape_cast %202 : vector<18xf32> to vector<18x1xf32>
    %cst_127 = arith.constant 3.200000e+01 : f32
    %204 = vector.broadcast %cst_127 : f32 to vector<18x1xf32>
    %205 = arith.divf %203, %204 : vector<18x1xf32>
    %206 = vector.broadcast %198 : vector<18x1xf32> to vector<18x32xf32>
    %207 = arith.subf %194, %206 : vector<18x32xf32>
    %cst_128 = arith.constant 9.99999997E-7 : f32
    %208 = vector.broadcast %cst_128 : f32 to vector<18x1xf32>
    %209 = arith.addf %205, %208 : vector<18x1xf32>
    %210 = math.rsqrt %209 : vector<18x1xf32>
    %211 = vector.broadcast %210 : vector<18x1xf32> to vector<18x32xf32>
    %212 = arith.mulf %207, %211 : vector<18x32xf32>
    %213 = arith.truncf %212 : vector<18x32xf32> to vector<18x32xbf16>
    %c1_129 = arith.constant 1 : index
    %c0_130 = arith.constant 0 : index
    %c0_131 = arith.constant 0 : index
    %c0_132 = arith.constant 0 : index
    %214 = vector.load %arg3[%c1_129, %c0_130, %c0_131, %c0_132] : memref<2x6x32x16xbf16, #tpu.memory_space<vmem>>, vector<1x1x32x16xbf16>
    %215 = vector.shape_cast %214 : vector<1x1x32x16xbf16> to vector<32x16xbf16>
    %cst_133 = arith.constant dense<0.000000e+00> : vector<18x16xf32>
    %216 = tpu.matmul %213, %215, %cst_133 {dimension_numbers = #tpu.dot_dimension_numbers<[1], [0], [0], [1], [0, 0, 1, 1], [], []>} : vector<18x32xbf16>, vector<32x16xbf16>, vector<18x16xf32> -> vector<18x16xf32>
    %c1_134 = arith.constant 1 : index
    %c0_135 = arith.constant 0 : index
    %c0_136 = arith.constant 0 : index
    %c0_137 = arith.constant 0 : index
    %217 = vector.load %arg4[%c1_134, %c0_135, %c0_136, %c0_137] : memref<2x6x1x16xf32, #tpu.memory_space<vmem>>, vector<1x1x1x16xf32>
    %218 = vector.shape_cast %217 : vector<1x1x1x16xf32> to vector<1x16xf32>
    %219 = vector.broadcast %218 : vector<1x16xf32> to vector<18x16xf32>
    %220 = arith.addf %216, %219 : vector<18x16xf32>
    %c1_138 = arith.constant 1 : index
    %c2_139 = arith.constant 2 : index
    %c0_140 = arith.constant 0 : index
    %c0_141 = arith.constant 0 : index
    %221 = vector.load %arg3[%c1_138, %c2_139, %c0_140, %c0_141] : memref<2x6x32x16xbf16, #tpu.memory_space<vmem>>, vector<1x1x32x16xbf16>
    %222 = vector.shape_cast %221 : vector<1x1x32x16xbf16> to vector<32x16xbf16>
    %cst_142 = arith.constant dense<0.000000e+00> : vector<18x16xf32>
    %223 = tpu.matmul %213, %222, %cst_142 {dimension_numbers = #tpu.dot_dimension_numbers<[1], [0], [0], [1], [0, 0, 1, 1], [], []>} : vector<18x32xbf16>, vector<32x16xbf16>, vector<18x16xf32> -> vector<18x16xf32>
    %c1_143 = arith.constant 1 : index
    %c2_144 = arith.constant 2 : index
    %c0_145 = arith.constant 0 : index
    %c0_146 = arith.constant 0 : index
    %224 = vector.load %arg4[%c1_143, %c2_144, %c0_145, %c0_146] : memref<2x6x1x16xf32, #tpu.memory_space<vmem>>, vector<1x1x1x16xf32>
    %225 = vector.shape_cast %224 : vector<1x1x1x16xf32> to vector<1x16xf32>
    %226 = vector.broadcast %225 : vector<1x16xf32> to vector<18x16xf32>
    %227 = arith.addf %223, %226 : vector<18x16xf32>
    %c1_147 = arith.constant 1 : index
    %c4_148 = arith.constant 4 : index
    %c0_149 = arith.constant 0 : index
    %c0_150 = arith.constant 0 : index
    %228 = vector.load %arg3[%c1_147, %c4_148, %c0_149, %c0_150] : memref<2x6x32x16xbf16, #tpu.memory_space<vmem>>, vector<1x1x32x16xbf16>
    %229 = vector.shape_cast %228 : vector<1x1x32x16xbf16> to vector<32x16xbf16>
    %cst_151 = arith.constant dense<0.000000e+00> : vector<18x16xf32>
    %230 = tpu.matmul %213, %229, %cst_151 {dimension_numbers = #tpu.dot_dimension_numbers<[1], [0], [0], [1], [0, 0, 1, 1], [], []>} : vector<18x32xbf16>, vector<32x16xbf16>, vector<18x16xf32> -> vector<18x16xf32>
    %c1_152 = arith.constant 1 : index
    %c4_153 = arith.constant 4 : index
    %c0_154 = arith.constant 0 : index
    %c0_155 = arith.constant 0 : index
    %231 = vector.load %arg4[%c1_152, %c4_153, %c0_154, %c0_155] : memref<2x6x1x16xf32, #tpu.memory_space<vmem>>, vector<1x1x1x16xf32>
    %232 = vector.shape_cast %231 : vector<1x1x1x16xf32> to vector<1x16xf32>
    %233 = vector.broadcast %232 : vector<1x16xf32> to vector<18x16xf32>
    %234 = arith.addf %230, %233 : vector<18x16xf32>
    %235 = arith.truncf %220 : vector<18x16xf32> to vector<18x16xbf16>
    %236 = arith.truncf %227 : vector<18x16xf32> to vector<18x16xbf16>
    %cst_156 = arith.constant dense<0.000000e+00> : vector<18x18xf32>
    %237 = tpu.matmul %235, %236, %cst_156 {dimension_numbers = #tpu.dot_dimension_numbers<[1], [1], [0], [0], [0, 0, 1, 0], [], []>} : vector<18x16xbf16>, vector<18x16xbf16>, vector<18x18xf32> -> vector<18x18xf32>
    %238 = arith.addf %237, %34 : vector<18x18xf32>
    %cst_157 = arith.constant dense<0xFF800000> : vector<18xf32>
    %239 = vector.multi_reduction <maximumf>, %238, %cst_157 [1] : vector<18x18xf32> to vector<18xf32>
    %cst_158 = arith.constant 0xFF800000 : f32
    %240 = vector.broadcast %cst_158 : f32 to vector<18xf32>
    %241 = arith.maximumf %240, %239 : vector<18xf32>
    %242 = vector.shape_cast %241 : vector<18xf32> to vector<18x1xf32>
    %243 = vector.broadcast %242 : vector<18x1xf32> to vector<18x18xf32>
    %244 = arith.subf %238, %243 : vector<18x18xf32>
    %245 = math.exp %244 : vector<18x18xf32>
    %cst_159 = arith.constant dense<0.000000e+00> : vector<18xf32>
    %246 = vector.multi_reduction <add>, %245, %cst_159 [1] : vector<18x18xf32> to vector<18xf32>
    %247 = vector.shape_cast %246 : vector<18xf32> to vector<18x1xf32>
    %248 = vector.broadcast %247 : vector<18x1xf32> to vector<18x18xf32>
    %249 = arith.divf %245, %248 : vector<18x18xf32>
    %250 = arith.truncf %249 : vector<18x18xf32> to vector<18x18xbf16>
    %251 = arith.truncf %234 : vector<18x16xf32> to vector<18x16xbf16>
    %cst_160 = arith.constant dense<0.000000e+00> : vector<18x16xf32>
    %252 = tpu.matmul %250, %251, %cst_160 {dimension_numbers = #tpu.dot_dimension_numbers<[1], [0], [0], [1], [0, 0, 1, 1], [], []>} : vector<18x18xbf16>, vector<18x16xbf16>, vector<18x16xf32> -> vector<18x16xf32>
    %253 = arith.truncf %252 : vector<18x16xf32> to vector<18x16xbf16>
    %c1_161 = arith.constant 1 : index
    %c0_162 = arith.constant 0 : index
    %c0_163 = arith.constant 0 : index
    %c0_164 = arith.constant 0 : index
    %254 = vector.load %arg5[%c1_161, %c0_162, %c0_163, %c0_164] : memref<2x2x16x32xbf16, #tpu.memory_space<vmem>>, vector<1x1x16x32xbf16>
    %255 = vector.shape_cast %254 : vector<1x1x16x32xbf16> to vector<16x32xbf16>
    %cst_165 = arith.constant dense<0.000000e+00> : vector<18x32xf32>
    %256 = tpu.matmul %253, %255, %cst_165 {dimension_numbers = #tpu.dot_dimension_numbers<[1], [0], [0], [1], [0, 0, 1, 1], [], []>} : vector<18x16xbf16>, vector<16x32xbf16>, vector<18x32xf32> -> vector<18x32xf32>
    %c1_166 = arith.constant 1 : index
    %c1_167 = arith.constant 1 : index
    %c0_168 = arith.constant 0 : index
    %c0_169 = arith.constant 0 : index
    %257 = vector.load %arg3[%c1_166, %c1_167, %c0_168, %c0_169] : memref<2x6x32x16xbf16, #tpu.memory_space<vmem>>, vector<1x1x32x16xbf16>
    %258 = vector.shape_cast %257 : vector<1x1x32x16xbf16> to vector<32x16xbf16>
    %cst_170 = arith.constant dense<0.000000e+00> : vector<18x16xf32>
    %259 = tpu.matmul %213, %258, %cst_170 {dimension_numbers = #tpu.dot_dimension_numbers<[1], [0], [0], [1], [0, 0, 1, 1], [], []>} : vector<18x32xbf16>, vector<32x16xbf16>, vector<18x16xf32> -> vector<18x16xf32>
    %c1_171 = arith.constant 1 : index
    %c1_172 = arith.constant 1 : index
    %c0_173 = arith.constant 0 : index
    %c0_174 = arith.constant 0 : index
    %260 = vector.load %arg4[%c1_171, %c1_172, %c0_173, %c0_174] : memref<2x6x1x16xf32, #tpu.memory_space<vmem>>, vector<1x1x1x16xf32>
    %261 = vector.shape_cast %260 : vector<1x1x1x16xf32> to vector<1x16xf32>
    %262 = vector.broadcast %261 : vector<1x16xf32> to vector<18x16xf32>
    %263 = arith.addf %259, %262 : vector<18x16xf32>
    %c1_175 = arith.constant 1 : index
    %c3_176 = arith.constant 3 : index
    %c0_177 = arith.constant 0 : index
    %c0_178 = arith.constant 0 : index
    %264 = vector.load %arg3[%c1_175, %c3_176, %c0_177, %c0_178] : memref<2x6x32x16xbf16, #tpu.memory_space<vmem>>, vector<1x1x32x16xbf16>
    %265 = vector.shape_cast %264 : vector<1x1x32x16xbf16> to vector<32x16xbf16>
    %cst_179 = arith.constant dense<0.000000e+00> : vector<18x16xf32>
    %266 = tpu.matmul %213, %265, %cst_179 {dimension_numbers = #tpu.dot_dimension_numbers<[1], [0], [0], [1], [0, 0, 1, 1], [], []>} : vector<18x32xbf16>, vector<32x16xbf16>, vector<18x16xf32> -> vector<18x16xf32>
    %c1_180 = arith.constant 1 : index
    %c3_181 = arith.constant 3 : index
    %c0_182 = arith.constant 0 : index
    %c0_183 = arith.constant 0 : index
    %267 = vector.load %arg4[%c1_180, %c3_181, %c0_182, %c0_183] : memref<2x6x1x16xf32, #tpu.memory_space<vmem>>, vector<1x1x1x16xf32>
    %268 = vector.shape_cast %267 : vector<1x1x1x16xf32> to vector<1x16xf32>
    %269 = vector.broadcast %268 : vector<1x16xf32> to vector<18x16xf32>
    %270 = arith.addf %266, %269 : vector<18x16xf32>
    %c1_184 = arith.constant 1 : index
    %c5_185 = arith.constant 5 : index
    %c0_186 = arith.constant 0 : index
    %c0_187 = arith.constant 0 : index
    %271 = vector.load %arg3[%c1_184, %c5_185, %c0_186, %c0_187] : memref<2x6x32x16xbf16, #tpu.memory_space<vmem>>, vector<1x1x32x16xbf16>
    %272 = vector.shape_cast %271 : vector<1x1x32x16xbf16> to vector<32x16xbf16>
    %cst_188 = arith.constant dense<0.000000e+00> : vector<18x16xf32>
    %273 = tpu.matmul %213, %272, %cst_188 {dimension_numbers = #tpu.dot_dimension_numbers<[1], [0], [0], [1], [0, 0, 1, 1], [], []>} : vector<18x32xbf16>, vector<32x16xbf16>, vector<18x16xf32> -> vector<18x16xf32>
    %c1_189 = arith.constant 1 : index
    %c5_190 = arith.constant 5 : index
    %c0_191 = arith.constant 0 : index
    %c0_192 = arith.constant 0 : index
    %274 = vector.load %arg4[%c1_189, %c5_190, %c0_191, %c0_192] : memref<2x6x1x16xf32, #tpu.memory_space<vmem>>, vector<1x1x1x16xf32>
    %275 = vector.shape_cast %274 : vector<1x1x1x16xf32> to vector<1x16xf32>
    %276 = vector.broadcast %275 : vector<1x16xf32> to vector<18x16xf32>
    %277 = arith.addf %273, %276 : vector<18x16xf32>
    %278 = arith.truncf %263 : vector<18x16xf32> to vector<18x16xbf16>
    %279 = arith.truncf %270 : vector<18x16xf32> to vector<18x16xbf16>
    %cst_193 = arith.constant dense<0.000000e+00> : vector<18x18xf32>
    %280 = tpu.matmul %278, %279, %cst_193 {dimension_numbers = #tpu.dot_dimension_numbers<[1], [1], [0], [0], [0, 0, 1, 0], [], []>} : vector<18x16xbf16>, vector<18x16xbf16>, vector<18x18xf32> -> vector<18x18xf32>
    %281 = arith.addf %280, %34 : vector<18x18xf32>
    %cst_194 = arith.constant dense<0xFF800000> : vector<18xf32>
    %282 = vector.multi_reduction <maximumf>, %281, %cst_194 [1] : vector<18x18xf32> to vector<18xf32>
    %cst_195 = arith.constant 0xFF800000 : f32
    %283 = vector.broadcast %cst_195 : f32 to vector<18xf32>
    %284 = arith.maximumf %283, %282 : vector<18xf32>
    %285 = vector.shape_cast %284 : vector<18xf32> to vector<18x1xf32>
    %286 = vector.broadcast %285 : vector<18x1xf32> to vector<18x18xf32>
    %287 = arith.subf %281, %286 : vector<18x18xf32>
    %288 = math.exp %287 : vector<18x18xf32>
    %cst_196 = arith.constant dense<0.000000e+00> : vector<18xf32>
    %289 = vector.multi_reduction <add>, %288, %cst_196 [1] : vector<18x18xf32> to vector<18xf32>
    %290 = vector.shape_cast %289 : vector<18xf32> to vector<18x1xf32>
    %291 = vector.broadcast %290 : vector<18x1xf32> to vector<18x18xf32>
    %292 = arith.divf %288, %291 : vector<18x18xf32>
    %293 = arith.truncf %292 : vector<18x18xf32> to vector<18x18xbf16>
    %294 = arith.truncf %277 : vector<18x16xf32> to vector<18x16xbf16>
    %cst_197 = arith.constant dense<0.000000e+00> : vector<18x16xf32>
    %295 = tpu.matmul %293, %294, %cst_197 {dimension_numbers = #tpu.dot_dimension_numbers<[1], [0], [0], [1], [0, 0, 1, 1], [], []>} : vector<18x18xbf16>, vector<18x16xbf16>, vector<18x16xf32> -> vector<18x16xf32>
    %296 = arith.truncf %295 : vector<18x16xf32> to vector<18x16xbf16>
    %c1_198 = arith.constant 1 : index
    %c1_199 = arith.constant 1 : index
    %c0_200 = arith.constant 0 : index
    %c0_201 = arith.constant 0 : index
    %297 = vector.load %arg5[%c1_198, %c1_199, %c0_200, %c0_201] : memref<2x2x16x32xbf16, #tpu.memory_space<vmem>>, vector<1x1x16x32xbf16>
    %298 = vector.shape_cast %297 : vector<1x1x16x32xbf16> to vector<16x32xbf16>
    %cst_202 = arith.constant dense<0.000000e+00> : vector<18x32xf32>
    %299 = tpu.matmul %296, %298, %cst_202 {dimension_numbers = #tpu.dot_dimension_numbers<[1], [0], [0], [1], [0, 0, 1, 1], [], []>} : vector<18x16xbf16>, vector<16x32xbf16>, vector<18x32xf32> -> vector<18x32xf32>
    %300 = arith.addf %256, %299 : vector<18x32xf32>
    %301 = arith.addf %194, %300 : vector<18x32xf32>
    %c1_203 = arith.constant 1 : index
    %c0_204 = arith.constant 0 : index
    %c0_205 = arith.constant 0 : index
    %c0_206 = arith.constant 0 : index
    %302 = vector.load %arg6[%c1_203, %c0_204, %c0_205, %c0_206] : memref<2x2x1x32xf32, #tpu.memory_space<vmem>>, vector<1x1x1x32xf32>
    %303 = vector.shape_cast %302 : vector<1x1x1x32xf32> to vector<1x32xf32>
    %304 = vector.broadcast %303 : vector<1x32xf32> to vector<18x32xf32>
    %305 = arith.addf %301, %304 : vector<18x32xf32>
    %cst_207 = arith.constant dense<0.000000e+00> : vector<18xf32>
    %306 = vector.multi_reduction <add>, %305, %cst_207 [1] : vector<18x32xf32> to vector<18xf32>
    %307 = vector.shape_cast %306 : vector<18xf32> to vector<18x1xf32>
    %cst_208 = arith.constant 3.200000e+01 : f32
    %308 = vector.broadcast %cst_208 : f32 to vector<18x1xf32>
    %309 = arith.divf %307, %308 : vector<18x1xf32>
    %310 = vector.broadcast %309 : vector<18x1xf32> to vector<18x32xf32>
    %311 = arith.subf %305, %310 : vector<18x32xf32>
    %312 = arith.mulf %311, %311 : vector<18x32xf32>
    %cst_209 = arith.constant dense<0.000000e+00> : vector<18xf32>
    %313 = vector.multi_reduction <add>, %312, %cst_209 [1] : vector<18x32xf32> to vector<18xf32>
    %314 = vector.shape_cast %313 : vector<18xf32> to vector<18x1xf32>
    %cst_210 = arith.constant 3.200000e+01 : f32
    %315 = vector.broadcast %cst_210 : f32 to vector<18x1xf32>
    %316 = arith.divf %314, %315 : vector<18x1xf32>
    %317 = vector.broadcast %309 : vector<18x1xf32> to vector<18x32xf32>
    %318 = arith.subf %305, %317 : vector<18x32xf32>
    %cst_211 = arith.constant 9.99999997E-7 : f32
    %319 = vector.broadcast %cst_211 : f32 to vector<18x1xf32>
    %320 = arith.addf %316, %319 : vector<18x1xf32>
    %321 = math.rsqrt %320 : vector<18x1xf32>
    %322 = vector.broadcast %321 : vector<18x1xf32> to vector<18x32xf32>
    %323 = arith.mulf %318, %322 : vector<18x32xf32>
    %324 = arith.truncf %323 : vector<18x32xf32> to vector<18x32xbf16>
    %c1_212 = arith.constant 1 : index
    %c0_213 = arith.constant 0 : index
    %c0_214 = arith.constant 0 : index
    %c0_215 = arith.constant 0 : index
    %325 = vector.load %arg7[%c1_212, %c0_213, %c0_214, %c0_215] : memref<2x2x32x64xbf16, #tpu.memory_space<vmem>>, vector<1x1x32x64xbf16>
    %326 = vector.shape_cast %325 : vector<1x1x32x64xbf16> to vector<32x64xbf16>
    %cst_216 = arith.constant dense<0.000000e+00> : vector<18x64xf32>
    %327 = tpu.matmul %324, %326, %cst_216 {dimension_numbers = #tpu.dot_dimension_numbers<[1], [0], [0], [1], [0, 0, 1, 1], [], []>} : vector<18x32xbf16>, vector<32x64xbf16>, vector<18x64xf32> -> vector<18x64xf32>
    %c1_217 = arith.constant 1 : index
    %c0_218 = arith.constant 0 : index
    %c0_219 = arith.constant 0 : index
    %c0_220 = arith.constant 0 : index
    %328 = vector.load %arg8[%c1_217, %c0_218, %c0_219, %c0_220] : memref<2x2x1x64xf32, #tpu.memory_space<vmem>>, vector<1x1x1x64xf32>
    %329 = vector.shape_cast %328 : vector<1x1x1x64xf32> to vector<1x64xf32>
    %330 = vector.broadcast %329 : vector<1x64xf32> to vector<18x64xf32>
    %331 = arith.addf %327, %330 : vector<18x64xf32>
    %c1_221 = arith.constant 1 : index
    %c1_222 = arith.constant 1 : index
    %c0_223 = arith.constant 0 : index
    %c0_224 = arith.constant 0 : index
    %332 = vector.load %arg7[%c1_221, %c1_222, %c0_223, %c0_224] : memref<2x2x32x64xbf16, #tpu.memory_space<vmem>>, vector<1x1x32x64xbf16>
    %333 = vector.shape_cast %332 : vector<1x1x32x64xbf16> to vector<32x64xbf16>
    %cst_225 = arith.constant dense<0.000000e+00> : vector<18x64xf32>
    %334 = tpu.matmul %324, %333, %cst_225 {dimension_numbers = #tpu.dot_dimension_numbers<[1], [0], [0], [1], [0, 0, 1, 1], [], []>} : vector<18x32xbf16>, vector<32x64xbf16>, vector<18x64xf32> -> vector<18x64xf32>
    %c1_226 = arith.constant 1 : index
    %c1_227 = arith.constant 1 : index
    %c0_228 = arith.constant 0 : index
    %c0_229 = arith.constant 0 : index
    %335 = vector.load %arg8[%c1_226, %c1_227, %c0_228, %c0_229] : memref<2x2x1x64xf32, #tpu.memory_space<vmem>>, vector<1x1x1x64xf32>
    %336 = vector.shape_cast %335 : vector<1x1x1x64xf32> to vector<1x64xf32>
    %337 = vector.broadcast %336 : vector<1x64xf32> to vector<18x64xf32>
    %338 = arith.addf %334, %337 : vector<18x64xf32>
    %339 = arith.negf %331 : vector<18x64xf32>
    %340 = math.exp %339 : vector<18x64xf32>
    %cst_230 = arith.constant 1.000000e+00 : f32
    %341 = vector.broadcast %cst_230 : f32 to vector<18x64xf32>
    %342 = arith.addf %341, %340 : vector<18x64xf32>
    %343 = arith.divf %341, %342 : vector<18x64xf32>
    %344 = arith.mulf %331, %343 : vector<18x64xf32>
    %345 = arith.mulf %344, %338 : vector<18x64xf32>
    %346 = arith.truncf %345 : vector<18x64xf32> to vector<18x64xbf16>
    %c1_231 = arith.constant 1 : index
    %c0_232 = arith.constant 0 : index
    %c0_233 = arith.constant 0 : index
    %347 = vector.load %arg9[%c1_231, %c0_232, %c0_233] : memref<2x64x32xbf16, #tpu.memory_space<vmem>>, vector<1x64x32xbf16>
    %348 = vector.shape_cast %347 : vector<1x64x32xbf16> to vector<64x32xbf16>
    %cst_234 = arith.constant dense<0.000000e+00> : vector<18x32xf32>
    %349 = tpu.matmul %346, %348, %cst_234 {dimension_numbers = #tpu.dot_dimension_numbers<[1], [0], [0], [1], [0, 0, 1, 1], [], []>} : vector<18x64xbf16>, vector<64x32xbf16>, vector<18x32xf32> -> vector<18x32xf32>
    %350 = arith.addf %305, %349 : vector<18x32xf32>
    %c1_235 = arith.constant 1 : index
    %c1_236 = arith.constant 1 : index
    %c0_237 = arith.constant 0 : index
    %c0_238 = arith.constant 0 : index
    %351 = vector.load %arg6[%c1_235, %c1_236, %c0_237, %c0_238] : memref<2x2x1x32xf32, #tpu.memory_space<vmem>>, vector<1x1x1x32xf32>
    %352 = vector.shape_cast %351 : vector<1x1x1x32xf32> to vector<1x32xf32>
    %353 = vector.broadcast %352 : vector<1x32xf32> to vector<18x32xf32>
    %354 = arith.addf %350, %353 : vector<18x32xf32>
    %cst_239 = arith.constant dense<0.000000e+00> : vector<18xf32>
    %355 = vector.multi_reduction <add>, %354, %cst_239 [1] : vector<18x32xf32> to vector<18xf32>
    %356 = vector.shape_cast %355 : vector<18xf32> to vector<18x1xf32>
    %cst_240 = arith.constant 3.200000e+01 : f32
    %357 = vector.broadcast %cst_240 : f32 to vector<18x1xf32>
    %358 = arith.divf %356, %357 : vector<18x1xf32>
    %359 = vector.broadcast %358 : vector<18x1xf32> to vector<18x32xf32>
    %360 = arith.subf %354, %359 : vector<18x32xf32>
    %361 = arith.mulf %360, %360 : vector<18x32xf32>
    %cst_241 = arith.constant dense<0.000000e+00> : vector<18xf32>
    %362 = vector.multi_reduction <add>, %361, %cst_241 [1] : vector<18x32xf32> to vector<18xf32>
    %363 = vector.shape_cast %362 : vector<18xf32> to vector<18x1xf32>
    %cst_242 = arith.constant 3.200000e+01 : f32
    %364 = vector.broadcast %cst_242 : f32 to vector<18x1xf32>
    %365 = arith.divf %363, %364 : vector<18x1xf32>
    %366 = vector.broadcast %358 : vector<18x1xf32> to vector<18x32xf32>
    %367 = arith.subf %354, %366 : vector<18x32xf32>
    %cst_243 = arith.constant 9.99999997E-7 : f32
    %368 = vector.broadcast %cst_243 : f32 to vector<18x1xf32>
    %369 = arith.addf %365, %368 : vector<18x1xf32>
    %370 = math.rsqrt %369 : vector<18x1xf32>
    %371 = vector.broadcast %370 : vector<18x1xf32> to vector<18x32xf32>
    %372 = arith.mulf %367, %371 : vector<18x32xf32>
    %373 = vector.broadcast %1 : vector<1x32xf32> to vector<18x32xf32>
    %374 = arith.mulf %372, %373 : vector<18x32xf32>
    %375 = vector.broadcast %2 : vector<1x32xf32> to vector<18x32xf32>
    %376 = arith.addf %374, %375 : vector<18x32xf32>
    %c0_244 = arith.constant 0 : index
    %c0_245 = arith.constant 0 : index
    %377 = vector.load %arg10[%c0_244, %c0_245] : memref<18x32xf32, #tpu.memory_space<vmem>>, vector<18x32xf32>
    tpu.vector_store %arg10[%c0_244, %c0_245], %376 {strides = array<i32>} : memref<18x32xf32, #tpu.memory_space<vmem>>, vector<18x32xf32>,
    return
  }
}

</mosaic_0001>

<llo_original>
// kernel: hoptimus_forward.1
$region0: #{hoptimus_forward.1}
  #allocation0 [shape = 'u32[]', space=smem, size = 0x4, offset = 0x4, fixed_abs, tag = 'smem constant byte address 0x4 - core index']
  #allocation1 [shape = 'u32[144,128]{1,0:T(1,128)}', space=vmem, size = 0x12000, scoped, tag = 'internal scratch']
  %s0 = inlined_call_operand.vmem [shape: bf16[18,192], index: 0, kind: input, shape index: {}]
  %s1 = inlined_call_operand.vmem [shape: bf16[192,32], index: 1, kind: input, shape index: {}]
  %s2 = inlined_call_operand.vmem [shape: f32[20,32], index: 2, kind: input, shape index: {}]
  %s3 = inlined_call_operand.vmem [shape: bf16[2,6,32,16], index: 3, kind: input, shape index: {}]
  %s4 = inlined_call_operand.vmem [shape: f32[2,6,1,16], index: 4, kind: input, shape index: {}]
  %s5 = inlined_call_operand.vmem [shape: bf16[2,2,16,32], index: 5, kind: input, shape index: {}]
  %s6 = inlined_call_operand.vmem [shape: f32[2,2,1,32], index: 6, kind: input, shape index: {}]
  %s7 = inlined_call_operand.vmem [shape: bf16[2,2,32,64], index: 7, kind: input, shape index: {}]
  %s8 = inlined_call_operand.vmem [shape: f32[2,2,1,64], index: 8, kind: input, shape index: {}]
  %s9 = inlined_call_operand.vmem [shape: bf16[2,64,32], index: 9, kind: input, shape index: {}]
  %s10 = inlined_call_operand.vmem [shape: f32[18,32], index: 10, kind: output, shape index: {}]
  %s11 = sld [smem:[#allocation0]]
  $region50: #{hoptimus_forward.1} parent=0
    _
  %s13 = ssub.s32 1, %s11
  %s14 = scalar_select 0, %s13, %s11
  // Predicated region
  $region2: #{hoptimus_forward.1} parent=0 // pred_check
    _
  $region3: #{hoptimus_forward.1} parent=0 // pred_check_branch
    %16 = sbr.rel (0) target = $region5
  $region4: #{hoptimus_forward.1} parent=0 // pred_region
    _
  $region5: #{hoptimus_forward.1} parent=0 // pred_fallthru
    _
  // Predicated region
  $region6: #{hoptimus_forward.1} parent=0 // pred_check
    _
  $region7: #{hoptimus_forward.1} parent=0 // pred_check_branch
    %18 = sbr.rel (0) target = $region9
  $region8: #{hoptimus_forward.1} parent=0 // pred_region
    _
  $region9: #{hoptimus_forward.1} parent=0 // pred_fallthru
    _
  // Predicated region
  $region10: #{hoptimus_forward.1} parent=0 // pred_check
    _
  $region11: #{hoptimus_forward.1} parent=0 // pred_check_branch
    %20 = sbr.rel (0) target = $region13
  $region12: #{hoptimus_forward.1} parent=0 // pred_region
    _
  $region13: #{hoptimus_forward.1} parent=0 // pred_fallthru
    _
  // Predicated region
  $region14: #{hoptimus_forward.1} parent=0 // pred_check
    _
  $region15: #{hoptimus_forward.1} parent=0 // pred_check_branch
    %22 = sbr.rel (0) target = $region17
  $region16: #{hoptimus_forward.1} parent=0 // pred_region
    _
  $region17: #{hoptimus_forward.1} parent=0 // pred_fallthru
    _
  // Predicated region
  $region18: #{hoptimus_forward.1} parent=0 // pred_check
    _
  $region19: #{hoptimus_forward.1} parent=0 // pred_check_branch
    %24 = sbr.rel (0) target = $region21
  $region20: #{hoptimus_forward.1} parent=0 // pred_region
    _
  $region21: #{hoptimus_forward.1} parent=0 // pred_fallthru
    _
  // Predicated region
  $region22: #{hoptimus_forward.1} parent=0 // pred_check
    _
  $region23: #{hoptimus_forward.1} parent=0 // pred_check_branch
    %26 = sbr.rel (0) target = $region25
  $region24: #{hoptimus_forward.1} parent=0 // pred_region
    _
  $region25: #{hoptimus_forward.1} parent=0 // pred_fallthru
    _
  // Predicated region
  $region26: #{hoptimus_forward.1} parent=0 // pred_check
    _
  $region27: #{hoptimus_forward.1} parent=0 // pred_check_branch
    %28 = sbr.rel (0) target = $region29
  $region28: #{hoptimus_forward.1} parent=0 // pred_region
    _
  $region29: #{hoptimus_forward.1} parent=0 // pred_fallthru
    _
  // Predicated region
  $region30: #{hoptimus_forward.1} parent=0 // pred_check
    _
  $region31: #{hoptimus_forward.1} parent=0 // pred_check_branch
    %30 = sbr.rel (0) target = $region33
  $region32: #{hoptimus_forward.1} parent=0 // pred_region
    _
  $region33: #{hoptimus_forward.1} parent=0 // pred_fallthru
    _
  // Predicated region
  $region34: #{hoptimus_forward.1} parent=0 // pred_check
    _
  $region35: #{hoptimus_forward.1} parent=0 // pred_check_branch
    %32 = sbr.rel (0) target = $region37
  $region36: #{hoptimus_forward.1} parent=0 // pred_region
    _
  $region37: #{hoptimus_forward.1} parent=0 // pred_fallthru
    _
  // Predicated region
  $region38: #{hoptimus_forward.1} parent=0 // pred_check
    _
  $region39: #{hoptimus_forward.1} parent=0 // pred_check_branch
    %34 = sbr.rel (0) target = $region41
  $region40: #{hoptimus_forward.1} parent=0 // pred_region
    _
  $region41: #{hoptimus_forward.1} parent=0 // pred_fallthru
    _
  %v36 = vld [vmem:[%s2] sm:$0xff]
  %v37 = vld [vmem:[%s2 + $0x8] sm:$0xff]
  %v38 = vld [vmem:[%s2 + $0x10] sm:$0x3]
  %v39 = vld [vmem:[%s2 + $0x12] sm:$0x1]
  %v40 = vld [vmem:[%s2 + $0x13] sm:$0x1]
  %v41 = vld [vmem:[%s0] sm:$0xff]
  %v42 = vld [vmem:[%s0 + $0x8] sm:$0xff]
  %v43 = vld [vmem:[%s0 + $0x10] sm:$0x11]
  %v44 = vld [vmem:[%s1] sm:$0xf]
  %v45 = vld [vmem:[%s1 + $0x4] sm:$0xf]
  %v46 = vld [vmem:[%s1 + $0x8] sm:$0xf]
  %v47 = vld [vmem:[%s1 + $0xc] sm:$0xf]
  %v48 = vld [vmem:[%s1 + $0x10] sm:$0xf]
  %v49 = vld [vmem:[%s1 + $0x14] sm:$0xf]
  %v50 = vld [vmem:[%s1 + $0x18] sm:$0xf]
  %v51 = vld [vmem:[%s1 + $0x1c] sm:$0xf]
  %v52 = vld [vmem:[%s1 + $0x20] sm:$0xf]
  %v53 = vld [vmem:[%s1 + $0x24] sm:$0xf]
  %v54 = vld [vmem:[%s1 + $0x28] sm:$0xf]
  %v55 = vld [vmem:[%s1 + $0x2c] sm:$0xf]
  %v56 = vld [vmem:[%s1 + $0x30] sm:$0xf]
  %v57 = vld [vmem:[%s1 + $0x34] sm:$0xf]
  %v58 = vld [vmem:[%s1 + $0x38] sm:$0xf]
  %v59 = vld [vmem:[%s1 + $0x3c] sm:$0xf]
  %v60 = vld [vmem:[%s1 + $0x40] sm:$0xf]
  %v61 = vld [vmem:[%s1 + $0x44] sm:$0xf]
  %v62 = vld [vmem:[%s1 + $0x48] sm:$0xf]
  %v63 = vld [vmem:[%s1 + $0x4c] sm:$0xf]
  %v64 = vld [vmem:[%s1 + $0x50] sm:$0xf]
  %v65 = vld [vmem:[%s1 + $0x54] sm:$0xf]
  %v66 = vld [vmem:[%s1 + $0x58] sm:$0xf]
  %v67 = vld [vmem:[%s1 + $0x5c] sm:$0xf]
  %v71 = vunpack.c.l.b16 %v41
  %v72 = vunpack.c.h.b16 %v41
  %v73 = vunpack.c.l.b16 %v42
  %v74 = vunpack.c.h.b16 %v42
  %v75 = vunpack.c.l.b16 %v43
  %v76 = vunpack.c.h.b16 %v43
  %v77 = vpack.c.b16 %v73, %v71
  %v78 = vpack.c.b16 %v74, %v72
  %v79 = vpack.c.b16 %v75, %v75
  %v80 = vpack.c.b16 %v76, %v76
  %v107 = vunpack.c.l.b16 %v44
  %v108 = vunpack.c.l.b16 %v45
  %v109 = vunpack.c.l.b16 %v46
  %v110 = vunpack.c.l.b16 %v47
  %v111 = vunpack.c.l.b16 %v48
  %v112 = vunpack.c.l.b16 %v49
  %v113 = vunpack.c.l.b16 %v50
  %v114 = vunpack.c.l.b16 %v51
  %v115 = vunpack.c.l.b16 %v52
  %v116 = vunpack.c.l.b16 %v53
  %v117 = vunpack.c.l.b16 %v54
  %v118 = vunpack.c.l.b16 %v55
  %v119 = vunpack.c.l.b16 %v56
  %v120 = vunpack.c.l.b16 %v57
  %v121 = vunpack.c.l.b16 %v58
  %v122 = vunpack.c.l.b16 %v59
  %v123 = vunpack.c.l.b16 %v60
  %v124 = vunpack.c.l.b16 %v61
  %v125 = vunpack.c.l.b16 %v62
  %v126 = vunpack.c.l.b16 %v63
  %v127 = vunpack.c.l.b16 %v64
  %v128 = vunpack.c.l.b16 %v65
  %v129 = vunpack.c.l.b16 %v66
  %v130 = vunpack.c.l.b16 %v67
  %v131 = vpack.c.b16 %v108, %v107
  %v132 = vpack.c.b16 %v110, %v109
  %v133 = vpack.c.b16 %v112, %v111
  %v134 = vpack.c.b16 %v114, %v113
  %v135 = vpack.c.b16 %v116, %v115
  %v136 = vpack.c.b16 %v118, %v117
  %v137 = vpack.c.b16 %v120, %v119
  %v138 = vpack.c.b16 %v122, %v121
  %v139 = vpack.c.b16 %v124, %v123
  %v140 = vpack.c.b16 %v126, %v125
  %v141 = vpack.c.b16 %v128, %v127
  %v142 = vpack.c.b16 %v130, %v129
  %vm155 = vcmask 523264
  %v157 = vsel %vm155, %v78, 0
  %v160 = vsel %vm155, %v80, 0
  %162 = vmatprep.subr.bf16.mxu0 0
  %163 = vmatpush1.bf16.msra.mxu0 %v138
  %164 = vmatprep.subr.bf16.mxu0 0
  %165 = vmatpush1.bf16.msra.mxu0 %v137
  %166 = vmatprep.subr.bf16.mxu0 0
  %167 = vmatpush1.bf16.msra.mxu0 %v136
  %168 = vmatprep.subr.bf16.mxu0 0
  %169 = vmatpush1.bf16.msra.mxu0 %v135
  %170 = vmatprep.subr.bf16.mxu0 0
  %171 = vmatpush1.bf16.msra.mxu0 %v134
  %172 = vmatprep.subr.bf16.mxu0 0
  %173 = vmatpush1.bf16.msra.mxu0 %v133
  %174 = vmatprep.subr.bf16.mxu0 0
  %175 = vmatpush1.bf16.msra.mxu0 %v132
  %176 = vmatprep.subr.bf16.mxu0 0
  %177 = vmatpush1.bf16.msra.mxu0 %v131
  %178 = vmatprep.subr.bf16.mxu0 0
  %179 = vmatpush2.bf16.msra.mxu0 0
  %180 = vmatprep.subr.bf16.mxu0 0
  %181 = vmatpush2.bf16.msra.mxu0 0
  %182 = vmatprep.subr.bf16.mxu0 0
  %183 = vmatpush2.bf16.msra.mxu0 0
  %184 = vmatprep.subr.bf16.mxu0 0
  %185 = vmatpush2.bf16.msra.mxu0 0
  %186 = vmatprep.subr.bf16.mxu0 0
  %187 = vmatpush2.bf16.msra.mxu0 %v142
  %188 = vmatprep.subr.bf16.mxu0 0
  %189 = vmatpush2.bf16.msra.mxu0 %v141
  %190 = vmatprep.subr.bf16.mxu0 0
  %191 = vmatpush2.bf16.msra.mxu0 %v140
  %192 = vmatprep.subr.bf16.mxu0 0
  %193 = vmatpush2.bf16.msra.mxu0 %v139
  %194 = vmatprep.mubr.bf16.mxu0 %v157
  %195 = vmatmul.mubr.bf16.gmra.mxu0 %v77
  %v196 = vpop.f32.mrf.mxu0
  %v197 = vadd.f32 %v36, %v196
  %v198 = vpop.f32.mrf.mxu0
  %v199 = vpop.f32.mrf.mxu0
  %v200 = vadd.f32 %v37, %v199
  %v201 = vpop.f32.mrf.mxu0
  %202 = vmatprep.mubr.bf16.mxu0 %v160
  %203 = vmatmul.mubr.bf16.gmra.mxu0 %v79
  %v204 = vpop.f32.mrf.mxu0
  %v205 = vadd.f32 %v38, %v204
  %v206 = vpop.f32.mrf.mxu0
  %v207 = vpop.f32.mrf.mxu0
  %v208 = vpop.f32.mrf.mxu0
  %209 = vdwg.mxu0
  %v210 = vlaneseq
  %v211 = vshrl.u32 %v210, 7
  %v212 = vadd.s32 %v211, 8
  %v213 = vadd.s32 %v211, 16
  %v214 = vlaneseq
  %v215 = vand.u32 %v214, 127
  %vm216 = vcmp.ge.s32.totalorder %v211, 0
  %vm217 = vcmp.ge.s32.totalorder %v212, 0
  %vm218 = vcmp.ge.s32.totalorder %v213, 0
  %vm219 = vcmp.lt.s32.totalorder %v211, 9
  %vm220 = vcmp.lt.s32.totalorder %v212, 9
  %vm221 = vcmp.lt.s32.totalorder %v213, 9
  %vm222 = vmand %vm216, %vm219
  %vm223 = vmand %vm217, %vm220
  %vm224 = vmand %vm218, %vm221
  %vm225 = vcmp.ge.s32.totalorder %v215, 0
  %vm226 = vmand %vm222, %vm225
  %vm227 = vmand %vm223, %vm225
  %vm228 = vmand %vm224, %vm225
  %vm229 = vcmp.lt.s32.totalorder %v215, 9
  %vm230 = vmand %vm226, %vm229
  %vm231 = vmand %vm227, %vm229
  %vm232 = vmand %vm228, %vm229
  %vm233 = vcmp.ge.s32.totalorder %v211, 9
  %vm234 = vcmp.ge.s32.totalorder %v212, 9
  %vm235 = vcmp.ge.s32.totalorder %v213, 9
  %vm236 = vcmp.lt.s32.totalorder %v211, 18
  %vm237 = vcmp.lt.s32.totalorder %v212, 18
  %vm238 = vcmp.lt.s32.totalorder %v213, 18
  %vm239 = vmand %vm233, %vm236
  %vm240 = vmand %vm234, %vm237
  %vm241 = vmand %vm235, %vm238
  %vm242 = vcmp.ge.s32.totalorder %v215, 9
  %vm243 = vmand %vm239, %vm242
  %vm244 = vmand %vm240, %vm242
  %vm245 = vmand %vm241, %vm242
  %vm246 = vcmp.lt.s32.totalorder %v215, 18
  %vm247 = vmand %vm243, %vm246
  %vm248 = vmand %vm244, %vm246
  %vm249 = vmand %vm245, %vm246
  %vm250 = vmor %vm230, %vm247
  %vm251 = vmor %vm231, %vm248
  %vm252 = vmor %vm232, %vm249
  %v253 = vsel %vm250, 0.0, -1e+30
  %v254 = vsel %vm251, 0.0, -1e+30
  %v255 = vsel %vm252, 0.0, -1e+30
  %vm256 = vcmask 261120
  %v257 = vsel %vm256, %v197, 0.0
  %258 = vadd.xlane.f32.xlu0 %v257
  %v259 = vpop.xlane.xlu0 %258
  %v260 = vsel %vm256, %v200, 0.0
  %261 = vadd.xlane.f32.xlu0 %v260
  %v262 = vpop.xlane.xlu0 %261
  %vm263 = vcmask 254976
  %v264 = vsel %vm263, %v205, 0.0
  %265 = vadd.xlane.f32.xlu0 %v264
  %v266 = vpop.xlane.xlu0 %265
  %v267 = vrcp.pop 32.0
  %v268 = vmul.f32 %v259, %v267
  %v269 = vmul.f32 %v262, %v267
  %v270 = vmul.f32 %v266, %v267
  %v271 = vsub.f32 %v197, %v268
  %v272 = vsub.f32 %v200, %v269
  %v273 = vsub.f32 %v205, %v270
  %v274 = vmul.f32 %v271, %v271
  %v275 = vmul.f32 %v272, %v272
  %v276 = vmul.f32 %v273, %v273
  %v277 = vsel %vm256, %v274, 0.0
  %278 = vadd.xlane.f32.xlu0 %v277
  %v279 = vpop.xlane.xlu0 %278
  %v280 = vsel %vm256, %v275, 0.0
  %281 = vadd.xlane.f32.xlu0 %v280
  %v282 = vpop.xlane.xlu0 %281
  %v283 = vsel %vm263, %v276, 0.0
  %284 = vadd.xlane.f32.xlu0 %v283
  %v285 = vpop.xlane.xlu0 %284
  %v286 = vmul.f32 %v279, %v267
  %v287 = vmul.f32 %v282, %v267
  %v288 = vmul.f32 %v285, %v267
  %v289 = vadd.f32 %v286, 1e-06
  %v290 = vadd.f32 %v287, 1e-06
  %v291 = vadd.f32 %v288, 1e-06
  %v292 = vrsqrt.pop %v289
  %v293 = vrsqrt.pop %v290
  %v294 = vrsqrt.pop %v291
  %v295 = vmul.f32 %v271, %v292
  %v296 = vmul.f32 %v272, %v293
  %v297 = vmul.f32 %v273, %v294
  %v298 = vpack.c.bf16 %v296, %v295
  %v299 = vpack.c.bf16 %v297, %v297
  %v300 = vld [vmem:[%s3] sm:$0xf]
  %v301 = vld [vmem:[%s3 + $0x4] sm:$0xf]
  %v302 = vld [vmem:[%s3 + $0x8] sm:$0xf]
  %v303 = vld [vmem:[%s3 + $0xc] sm:$0xf]
  %v304 = vld [vmem:[%s4] sm:$0x1]
  %v306 = vlaneseq
  %v307 = vshrl.u32 %v306, 7
  %v308 = vsub.s32 0, %v307
  %v309 = vrot.slane %v304, %v308
  %v315 = vunpack.c.l.b16 %v300
  %v316 = vunpack.c.l.b16 %v301
  %v317 = vunpack.c.l.b16 %v302
  %v318 = vunpack.c.l.b16 %v303
  %v319 = vpack.c.b16 %v316, %v315
  %v320 = vpack.c.b16 %v318, %v317
  %v324 = vsel %vm256, %v298, 0
  %v327 = vsel %vm256, %v299, 0
  %329 = vmatprep.subr.bf16.mxu0 0
  %330 = vmatpush1.bf16.msra.mxu0 0
  %331 = vmatprep.subr.bf16.mxu0 0
  %332 = vmatpush1.bf16.msra.mxu0 0
  %333 = vmatprep.subr.bf16.mxu0 0
  %334 = vmatpush1.bf16.msra.mxu0 0
  %335 = vmatprep.subr.bf16.mxu0 0
  %336 = vmatpush1.bf16.msra.mxu0 0
  %337 = vmatprep.subr.bf16.mxu0 0
  %338 = vmatpush1.bf16.msra.mxu0 0
  %339 = vmatprep.subr.bf16.mxu0 0
  %340 = vmatpush1.bf16.msra.mxu0 0
  %341 = vmatprep.subr.bf16.mxu0 0
  %342 = vmatpush1.bf16.msra.mxu0 %v320
  %343 = vmatprep.subr.bf16.mxu0 0
  %344 = vmatpush1.bf16.msra.mxu0 %v319
  %345 = vmatprep.subr.bf16.mxu0 0
  %346 = vmatpush2.bf16.msra.mxu0 0
  %347 = vmatprep.subr.bf16.mxu0 0
  %348 = vmatpush2.bf16.msra.mxu0 0
  %349 = vmatprep.subr.bf16.mxu0 0
  %350 = vmatpush2.bf16.msra.mxu0 0
  %351 = vmatprep.subr.bf16.mxu0 0
  %352 = vmatpush2.bf16.msra.mxu0 0
  %353 = vmatprep.subr.bf16.mxu0 0
  %354 = vmatpush2.bf16.msra.mxu0 0
  %355 = vmatprep.subr.bf16.mxu0 0
  %356 = vmatpush2.bf16.msra.mxu0 0
  %357 = vmatprep.subr.bf16.mxu0 0
  %358 = vmatpush2.bf16.msra.mxu0 0
  %359 = vmatprep.subr.bf16.mxu0 0
  %360 = vmatpush2.bf16.msra.mxu0 0
  %361 = vmatprep.mubr.bf16.mxu0 0
  %362 = vmatmul.mubr.bf16.gmra.mxu0 %v324
  %v363 = vpop.f32.mrf.mxu0
  %v364 = vadd.f32 %v309, %v363
  %v365 = vpop.f32.mrf.mxu0
  %v366 = vpop.f32.mrf.mxu0
  %v367 = vadd.f32 %v309, %v366
  %v368 = vpop.f32.mrf.mxu0
  %369 = vmatprep.mubr.bf16.mxu0 0
  %370 = vmatmul.mubr.bf16.gmra.mxu0 %v327
  %v371 = vpop.f32.mrf.mxu0
  %v372 = vadd.f32 %v309, %v371
  %v373 = vpop.f32.mrf.mxu0
  %v374 = vpop.f32.mrf.mxu0
  %v375 = vpop.f32.mrf.mxu0
  %376 = vdwg.mxu0
  %s377 = scalar_lea.vmem %s3, 32
  %v378 = vld [vmem:[%s377] sm:$0xf]
  %v379 = vld [vmem:[%s377 + $0x4] sm:$0xf]
  %v380 = vld [vmem:[%s377 + $0x8] sm:$0xf]
  %v381 = vld [vmem:[%s377 + $0xc] sm:$0xf]
  %s382 = scalar_lea.vmem %s4, 2
  %v383 = vld [vmem:[%s382] sm:$0x1]
  %v385 = vlaneseq
  %v386 = vshrl.u32 %v385, 7
  %v387 = vsub.s32 0, %v386
  %v388 = vrot.slane %v383, %v387
  %v394 = vunpack.c.l.b16 %v378
  %v395 = vunpack.c.l.b16 %v379
  %v396 = vunpack.c.l.b16 %v380
  %v397 = vunpack.c.l.b16 %v381
  %v398 = vpack.c.b16 %v395, %v394
  %v399 = vpack.c.b16 %v397, %v396
  %402 = vmatprep.subr.bf16.mxu0 0
  %403 = vmatpush1.bf16.msra.mxu0 0
  %404 = vmatprep.subr.bf16.mxu0 0
  %405 = vmatpush1.bf16.msra.mxu0 0
  %406 = vmatprep.subr.bf16.mxu0 0
  %407 = vmatpush1.bf16.msra.mxu0 0
  %408 = vmatprep.subr.bf16.mxu0 0
  %409 = vmatpush1.bf16.msra.mxu0 0
  %410 = vmatprep.subr.bf16.mxu0 0
  %411 = vmatpush1.bf16.msra.mxu0 0
  %412 = vmatprep.subr.bf16.mxu0 0
  %413 = vmatpush1.bf16.msra.mxu0 0
  %414 = vmatprep.subr.bf16.mxu0 0
  %415 = vmatpush1.bf16.msra.mxu0 %v399
  %416 = vmatprep.subr.bf16.mxu0 0
  %417 = vmatpush1.bf16.msra.mxu0 %v398
  %418 = vmatprep.subr.bf16.mxu0 0
  %419 = vmatpush2.bf16.msra.mxu0 0
  %420 = vmatprep.subr.bf16.mxu0 0
  %421 = vmatpush2.bf16.msra.mxu0 0
  %422 = vmatprep.subr.bf16.mxu0 0
  %423 = vmatpush2.bf16.msra.mxu0 0
  %424 = vmatprep.subr.bf16.mxu0 0
  %425 = vmatpush2.bf16.msra.mxu0 0
  %426 = vmatprep.subr.bf16.mxu0 0
  %427 = vmatpush2.bf16.msra.mxu0 0
  %428 = vmatprep.subr.bf16.mxu0 0
  %429 = vmatpush2.bf16.msra.mxu0 0
  %430 = vmatprep.subr.bf16.mxu0 0
  %431 = vmatpush2.bf16.msra.mxu0 0
  %432 = vmatprep.subr.bf16.mxu0 0
  %433 = vmatpush2.bf16.msra.mxu0 0
  %434 = vmatprep.mubr.bf16.mxu0 0
  %435 = vmatmul.mubr.bf16.gmra.mxu0 %v324
  %v436 = vpop.f32.mrf.mxu0
  %v437 = vadd.f32 %v388, %v436
  %v438 = vpop.f32.mrf.mxu0
  %v439 = vpop.f32.mrf.mxu0
  %v440 = vadd.f32 %v388, %v439
  %v441 = vpop.f32.mrf.mxu0
  %442 = vmatprep.mubr.bf16.mxu0 0
  %443 = vmatmul.mubr.bf16.gmra.mxu0 %v327
  %v444 = vpop.f32.mrf.mxu0
  %v445 = vadd.f32 %v388, %v444
  %v446 = vpop.f32.mrf.mxu0
  %v447 = vpop.f32.mrf.mxu0
  %v448 = vpop.f32.mrf.mxu0
  %449 = vdwg.mxu0
  %s450 = scalar_lea.vmem %s3, 64
  %v451 = vld [vmem:[%s450] sm:$0xf]
  %v452 = vld [vmem:[%s450 + $0x4] sm:$0xf]
  %v453 = vld [vmem:[%s450 + $0x8] sm:$0xf]
  %v454 = vld [vmem:[%s450 + $0xc] sm:$0xf]
  %s455 = scalar_lea.vmem %s4, 4
  %v456 = vld [vmem:[%s455] sm:$0x1]
  %v458 = vlaneseq
  %v459 = vshrl.u32 %v458, 7
  %v460 = vsub.s32 0, %v459
  %v461 = vrot.slane %v456, %v460
  %v467 = vunpack.c.l.b16 %v451
  %v468 = vunpack.c.l.b16 %v452
  %v469 = vunpack.c.l.b16 %v453
  %v470 = vunpack.c.l.b16 %v454
  %v471 = vpack.c.b16 %v468, %v467
  %v472 = vpack.c.b16 %v470, %v469
  %475 = vmatprep.subr.bf16.mxu0 0
  %476 = vmatpush1.bf16.msra.mxu0 0
  %477 = vmatprep.subr.bf16.mxu0 0
  %478 = vmatpush1.bf16.msra.mxu0 0
  %479 = vmatprep.subr.bf16.mxu0 0
  %480 = vmatpush1.bf16.msra.mxu0 0
  %481 = vmatprep.subr.bf16.mxu0 0
  %482 = vmatpush1.bf16.msra.mxu0 0
  %483 = vmatprep.subr.bf16.mxu0 0
  %484 = vmatpush1.bf16.msra.mxu0 0
  %485 = vmatprep.subr.bf16.mxu0 0
  %486 = vmatpush1.bf16.msra.mxu0 0
  %487 = vmatprep.subr.bf16.mxu0 0
  %488 = vmatpush1.bf16.msra.mxu0 %v472
  %489 = vmatprep.subr.bf16.mxu0 0
  %490 = vmatpush1.bf16.msra.mxu0 %v471
  %491 = vmatprep.subr.bf16.mxu0 0
  %492 = vmatpush2.bf16.msra.mxu0 0
  %493 = vmatprep.subr.bf16.mxu0 0
  %494 = vmatpush2.bf16.msra.mxu0 0
  %495 = vmatprep.subr.bf16.mxu0 0
  %496 = vmatpush2.bf16.msra.mxu0 0
  %497 = vmatprep.subr.bf16.mxu0 0
  %498 = vmatpush2.bf16.msra.mxu0 0
  %499 = vmatprep.subr.bf16.mxu0 0
  %500 = vmatpush2.bf16.msra.mxu0 0
  %501 = vmatprep.subr.bf16.mxu0 0
  %502 = vmatpush2.bf16.msra.mxu0 0
  %503 = vmatprep.subr.bf16.mxu0 0
  %504 = vmatpush2.bf16.msra.mxu0 0
  %505 = vmatprep.subr.bf16.mxu0 0
  %506 = vmatpush2.bf16.msra.mxu0 0
  %507 = vmatprep.mubr.bf16.mxu0 0
  %508 = vmatmul.mubr.bf16.gmra.mxu0 %v324
  %v509 = vpop.f32.mrf.mxu0
  %v510 = vadd.f32 %v461, %v509
  %v511 = vpop.f32.mrf.mxu0
  %v512 = vpop.f32.mrf.mxu0
  %v513 = vadd.f32 %v461, %v512
  %v514 = vpop.f32.mrf.mxu0
  %515 = vmatprep.mubr.bf16.mxu0 0
  %516 = vmatmul.mubr.bf16.gmra.mxu0 %v327
  %v517 = vpop.f32.mrf.mxu0
  %v518 = vadd.f32 %v461, %v517
  %v519 = vpop.f32.mrf.mxu0
  %v520 = vpop.f32.mrf.mxu0
  %v521 = vpop.f32.mrf.mxu0
  %522 = vdwg.mxu0
  %v523 = vpack.c.bf16 %v367, %v364
  %v524 = vpack.c.bf16 %v372, %v372
  %v525 = vpack.c.bf16 %v440, %v437
  %v526 = vpack.c.bf16 %v445, %v445
  %vm527 = vcmask 130048
  %v529 = vsel %vm527, %v523, 0
  %v532 = vsel %vm527, %v524, 0
  %v535 = vsel %vm527, %v525, 0
  %v538 = vsel %vm527, %v526, 0
  %540 = vmatprep.subr.bf16.mxu0 0
  %541 = vmatpush1.bf16.xpose.msra.mxu0 0
  %542 = vmatprep.subr.bf16.mxu0 0
  %543 = vmatpush1.bf16.xpose.msra.mxu0 0
  %544 = vmatprep.subr.bf16.mxu0 0
  %545 = vmatpush1.bf16.xpose.msra.mxu0 0
  %546 = vmatprep.subr.bf16.mxu0 0
  %547 = vmatpush1.bf16.xpose.msra.mxu0 0
  %548 = vmatprep.subr.bf16.mxu0 0
  %549 = vmatpush1.bf16.xpose.msra.mxu0 0
  %550 = vmatprep.subr.bf16.mxu0 0
  %551 = vmatpush1.bf16.xpose.msra.mxu0 0
  %552 = vmatprep.subr.bf16.mxu0 0
  %553 = vmatpush1.bf16.xpose.msra.mxu0 %v538
  %554 = vmatprep.subr.bf16.mxu0 0
  %555 = vmatpush1.bf16.xpose.msra.mxu0 %v535
  %556 = vmatprep.subr.bf16.mxu0 0
  %557 = vmatpush2.bf16.xpose.msra.mxu0 0
  %558 = vmatprep.subr.bf16.mxu0 0
  %559 = vmatpush2.bf16.xpose.msra.mxu0 0
  %560 = vmatprep.subr.bf16.mxu0 0
  %561 = vmatpush2.bf16.xpose.msra.mxu0 0
  %562 = vmatprep.subr.bf16.mxu0 0
  %563 = vmatpush2.bf16.xpose.msra.mxu0 0
  %564 = vmatprep.subr.bf16.mxu0 0
  %565 = vmatpush2.bf16.xpose.msra.mxu0 0
  %566 = vmatprep.subr.bf16.mxu0 0
  %567 = vmatpush2.bf16.xpose.msra.mxu0 0
  %568 = vmatprep.subr.bf16.mxu0 0
  %569 = vmatpush2.bf16.xpose.msra.mxu0 0
  %570 = vmatprep.subr.bf16.mxu0 0
  %571 = vmatpush2.bf16.xpose.msra.mxu0 0
  %572 = vmatprep.mubr.bf16.mxu0 0
  %573 = vmatmul.mubr.bf16.gmra.mxu0 %v529
  %v574 = vpop.f32.mrf.mxu0
  %v575 = vadd.f32 %v253, %v574
  %v576 = vpop.f32.mrf.mxu0
  %v577 = vpop.f32.mrf.mxu0
  %v578 = vadd.f32 %v254, %v577
  %v579 = vpop.f32.mrf.mxu0
  %580 = vmatprep.mubr.bf16.mxu0 0
  %581 = vmatmul.mubr.bf16.gmra.mxu0 %v532
  %v582 = vpop.f32.mrf.mxu0
  %v583 = vadd.f32 %v255, %v582
  %v584 = vpop.f32.mrf.mxu0
  %v585 = vpop.f32.mrf.mxu0
  %v586 = vpop.f32.mrf.mxu0
  %587 = vdwg.mxu0
  %vm588 = vcmask 146432
  %v589 = vsel %vm588, %v575, -inf
  %590 = vmax.xlane.f32.xlu0 %v589
  %v591 = vpop.xlane.xlu0 %590
  %v592 = vsel %vm588, %v578, -inf
  %593 = vmax.xlane.f32.xlu0 %v592
  %v594 = vpop.xlane.xlu0 %593
  %vm595 = vcmask 140288
  %v596 = vsel %vm595, %v583, -inf
  %597 = vmax.xlane.f32.xlu0 %v596
  %v598 = vpop.xlane.xlu0 %597
  %v599 = vsub.f32 %v575, %v591
  %v600 = vsub.f32 %v578, %v594
  %v601 = vsub.f32 %v583, %v598
  %v602 = vmul.f32 %v599, 1.442695
  %v603 = vpow.pop %v602
  %v604 = vmul.f32 %v600, 1.442695
  %v605 = vpow.pop %v604
  %v606 = vmul.f32 %v601, 1.442695
  %v607 = vpow.pop %v606
  %v608 = vsel %vm588, %v603, 0.0
  %609 = vadd.xlane.f32.xlu0 %v608
  %v610 = vpop.xlane.xlu0 %609
  %v611 = vsel %vm588, %v605, 0.0
  %612 = vadd.xlane.f32.xlu0 %v611
  %v613 = vpop.xlane.xlu0 %612
  %v614 = vsel %vm595, %v607, 0.0
  %615 = vadd.xlane.f32.xlu0 %v614
  %v616 = vpop.xlane.xlu0 %615
  %v617 = vrcp.pop %v610
  %v618 = vmul.f32 %v603, %v617
  %v619 = vrcp.pop %v613
  %v620 = vmul.f32 %v605, %v619
  %v621 = vrcp.pop %v616
  %v622 = vmul.f32 %v607, %v621
  %v623 = vpack.c.bf16 %v620, %v618
  %v624 = vpack.c.bf16 %v622, %v622
  %v625 = vpack.c.bf16 %v513, %v510
  %v626 = vpack.c.bf16 %v518, %v518
  %v628 = vsel %vm588, %v623, 0
  %v631 = vsel %vm588, %v624, 0
  %vm633 = vcmask 1040384
  %v635 = vsel %vm633, %v626, 0
  %637 = vmatprep.subr.bf16.mxu0 0
  %638 = vmatpush1.bf16.msra.mxu0 0
  %639 = vmatprep.subr.bf16.mxu0 0
  %640 = vmatpush1.bf16.msra.mxu0 0
  %641 = vmatprep.subr.bf16.mxu0 0
  %642 = vmatpush1.bf16.msra.mxu0 0
  %643 = vmatprep.subr.bf16.mxu0 0
  %644 = vmatpush1.bf16.msra.mxu0 0
  %645 = vmatprep.subr.bf16.mxu0 0
  %646 = vmatpush1.bf16.msra.mxu0 0
  %647 = vmatprep.subr.bf16.mxu0 0
  %648 = vmatpush1.bf16.msra.mxu0 0
  %649 = vmatprep.subr.bf16.mxu0 0
  %650 = vmatpush1.bf16.msra.mxu0 %v635
  %651 = vmatprep.subr.bf16.mxu0 0
  %652 = vmatpush1.bf16.msra.mxu0 %v625
  %653 = vmatprep.subr.bf16.mxu0 0
  %654 = vmatpush2.bf16.msra.mxu0 0
  %655 = vmatprep.subr.bf16.mxu0 0
  %656 = vmatpush2.bf16.msra.mxu0 0
  %657 = vmatprep.subr.bf16.mxu0 0
  %658 = vmatpush2.bf16.msra.mxu0 0
  %659 = vmatprep.subr.bf16.mxu0 0
  %660 = vmatpush2.bf16.msra.mxu0 0
  %661 = vmatprep.subr.bf16.mxu0 0
  %662 = vmatpush2.bf16.msra.mxu0 0
  %663 = vmatprep.subr.bf16.mxu0 0
  %664 = vmatpush2.bf16.msra.mxu0 0
  %665 = vmatprep.subr.bf16.mxu0 0
  %666 = vmatpush2.bf16.msra.mxu0 0
  %667 = vmatprep.subr.bf16.mxu0 0
  %668 = vmatpush2.bf16.msra.mxu0 0
  %669 = vmatprep.mubr.bf16.mxu0 0
  %670 = vmatmul.mubr.bf16.gmra.mxu0 %v628
  %v671 = vpop.f32.mrf.mxu0
  %v672 = vadd.f32 0.0, %v671
  %v673 = vpop.f32.mrf.mxu0
  %v674 = vpop.f32.mrf.mxu0
  %v675 = vadd.f32 0.0, %v674
  %v676 = vpop.f32.mrf.mxu0
  %677 = vmatprep.mubr.bf16.mxu0 0
  %678 = vmatmul.mubr.bf16.gmra.mxu0 %v631
  %v679 = vpop.f32.mrf.mxu0
  %v680 = vadd.f32 0.0, %v679
  %v681 = vpop.f32.mrf.mxu0
  %v682 = vpop.f32.mrf.mxu0
  %v683 = vpop.f32.mrf.mxu0
  %684 = vdwg.mxu0
  %v685 = vpack.c.bf16 %v675, %v672
  %v686 = vpack.c.bf16 %v680, %v680
  %v687 = vld [vmem:[%s5] sm:$0xf]
  %v688 = vld [vmem:[%s5 + $0x4] sm:$0xf]
  %s689 = scalar_lea.vmem %s3, 16
  %v690 = vld [vmem:[%s689] sm:$0xf]
  %v691 = vld [vmem:[%s689 + $0x4] sm:$0xf]
  %v692 = vld [vmem:[%s689 + $0x8] sm:$0xf]
  %v693 = vld [vmem:[%s689 + $0xc] sm:$0xf]
  %s694 = scalar_lea.vmem %s4, 1
  %v695 = vld [vmem:[%s694] sm:$0x1]
  %v697 = vlaneseq
  %v698 = vshrl.u32 %v697, 7
  %v699 = vsub.s32 0, %v698
  %v700 = vrot.slane %v695, %v699
  %v706 = vunpack.c.l.b16 %v690
  %v707 = vunpack.c.l.b16 %v691
  %v708 = vunpack.c.l.b16 %v692
  %v709 = vunpack.c.l.b16 %v693
  %v710 = vpack.c.b16 %v707, %v706
  %v711 = vpack.c.b16 %v709, %v708
  %714 = vmatprep.subr.bf16.mxu0 0
  %715 = vmatpush1.bf16.msra.mxu0 0
  %716 = vmatprep.subr.bf16.mxu0 0
  %717 = vmatpush1.bf16.msra.mxu0 0
  %718 = vmatprep.subr.bf16.mxu0 0
  %719 = vmatpush1.bf16.msra.mxu0 0
  %720 = vmatprep.subr.bf16.mxu0 0
  %721 = vmatpush1.bf16.msra.mxu0 0
  %722 = vmatprep.subr.bf16.mxu0 0
  %723 = vmatpush1.bf16.msra.mxu0 0
  %724 = vmatprep.subr.bf16.mxu0 0
  %725 = vmatpush1.bf16.msra.mxu0 0
  %726 = vmatprep.subr.bf16.mxu0 0
  %727 = vmatpush1.bf16.msra.mxu0 %v711
  %728 = vmatprep.subr.bf16.mxu0 0
  %729 = vmatpush1.bf16.msra.mxu0 %v710
  %730 = vmatprep.subr.bf16.mxu0 0
  %731 = vmatpush2.bf16.msra.mxu0 0
  %732 = vmatprep.subr.bf16.mxu0 0
  %733 = vmatpush2.bf16.msra.mxu0 0
  %734 = vmatprep.subr.bf16.mxu0 0
  %735 = vmatpush2.bf16.msra.mxu0 0
  %736 = vmatprep.subr.bf16.mxu0 0
  %737 = vmatpush2.bf16.msra.mxu0 0
  %738 = vmatprep.subr.bf16.mxu0 0
  %739 = vmatpush2.bf16.msra.mxu0 0
  %740 = vmatprep.subr.bf16.mxu0 0
  %741 = vmatpush2.bf16.msra.mxu0 0
  %742 = vmatprep.subr.bf16.mxu0 0
  %743 = vmatpush2.bf16.msra.mxu0 0
  %744 = vmatprep.subr.bf16.mxu0 0
  %745 = vmatpush2.bf16.msra.mxu0 0
  %746 = vmatprep.mubr.bf16.mxu0 0
  %747 = vmatmul.mubr.bf16.gmra.mxu0 %v324
  %v748 = vpop.f32.mrf.mxu0
  %v749 = vadd.f32 %v700, %v748
  %v750 = vpop.f32.mrf.mxu0
  %v751 = vpop.f32.mrf.mxu0
  %v752 = vadd.f32 %v700, %v751
  %v753 = vpop.f32.mrf.mxu0
  %754 = vmatprep.mubr.bf16.mxu0 0
  %755 = vmatmul.mubr.bf16.gmra.mxu0 %v327
  %v756 = vpop.f32.mrf.mxu0
  %v757 = vadd.f32 %v700, %v756
  %v758 = vpop.f32.mrf.mxu0
  %v759 = vpop.f32.mrf.mxu0
  %v760 = vpop.f32.mrf.mxu0
  %761 = vdwg.mxu0
  %s762 = scalar_lea.vmem %s3, 48
  %v763 = vld [vmem:[%s762] sm:$0xf]
  %v764 = vld [vmem:[%s762 + $0x4] sm:$0xf]
  %v765 = vld [vmem:[%s762 + $0x8] sm:$0xf]
  %v766 = vld [vmem:[%s762 + $0xc] sm:$0xf]
  %s767 = scalar_lea.vmem %s4, 3
  %v768 = vld [vmem:[%s767] sm:$0x1]
  %v770 = vlaneseq
  %v771 = vshrl.u32 %v770, 7
  %v772 = vsub.s32 0, %v771
  %v773 = vrot.slane %v768, %v772
  %v779 = vunpack.c.l.b16 %v763
  %v780 = vunpack.c.l.b16 %v764
  %v781 = vunpack.c.l.b16 %v765
  %v782 = vunpack.c.l.b16 %v766
  %v783 = vpack.c.b16 %v780, %v779
  %v784 = vpack.c.b16 %v782, %v781
  %787 = vmatprep.subr.bf16.mxu0 0
  %788 = vmatpush1.bf16.msra.mxu0 0
  %789 = vmatprep.subr.bf16.mxu0 0
  %790 = vmatpush1.bf16.msra.mxu0 0
  %791 = vmatprep.subr.bf16.mxu0 0
  %792 = vmatpush1.bf16.msra.mxu0 0
  %793 = vmatprep.subr.bf16.mxu0 0
  %794 = vmatpush1.bf16.msra.mxu0 0
  %795 = vmatprep.subr.bf16.mxu0 0
  %796 = vmatpush1.bf16.msra.mxu0 0
  %797 = vmatprep.subr.bf16.mxu0 0
  %798 = vmatpush1.bf16.msra.mxu0 0
  %799 = vmatprep.subr.bf16.mxu0 0
  %800 = vmatpush1.bf16.msra.mxu0 %v784
  %801 = vmatprep.subr.bf16.mxu0 0
  %802 = vmatpush1.bf16.msra.mxu0 %v783
  %803 = vmatprep.subr.bf16.mxu0 0
  %804 = vmatpush2.bf16.msra.mxu0 0
  %805 = vmatprep.subr.bf16.mxu0 0
  %806 = vmatpush2.bf16.msra.mxu0 0
  %807 = vmatprep.subr.bf16.mxu0 0
  %808 = vmatpush2.bf16.msra.mxu0 0
  %809 = vmatprep.subr.bf16.mxu0 0
  %810 = vmatpush2.bf16.msra.mxu0 0
  %811 = vmatprep.subr.bf16.mxu0 0
  %812 = vmatpush2.bf16.msra.mxu0 0
  %813 = vmatprep.subr.bf16.mxu0 0
  %814 = vmatpush2.bf16.msra.mxu0 0
  %815 = vmatprep.subr.bf16.mxu0 0
  %816 = vmatpush2.bf16.msra.mxu0 0
  %817 = vmatprep.subr.bf16.mxu0 0
  %818 = vmatpush2.bf16.msra.mxu0 0
  %819 = vmatprep.mubr.bf16.mxu0 0
  %820 = vmatmul.mubr.bf16.gmra.mxu0 %v324
  %v821 = vpop.f32.mrf.mxu0
  %v822 = vadd.f32 %v773, %v821
  %v823 = vpop.f32.mrf.mxu0
  %v824 = vpop.f32.mrf.mxu0
  %v825 = vadd.f32 %v773, %v824
  %v826 = vpop.f32.mrf.mxu0
  %827 = vmatprep.mubr.bf16.mxu0 0
  %828 = vmatmul.mubr.bf16.gmra.mxu0 %v327
  %v829 = vpop.f32.mrf.mxu0
  %v830 = vadd.f32 %v773, %v829
  %v831 = vpop.f32.mrf.mxu0
  %v832 = vpop.f32.mrf.mxu0
  %v833 = vpop.f32.mrf.mxu0
  %834 = vdwg.mxu0
  %s835 = scalar_lea.vmem %s3, 80
  %v836 = vld [vmem:[%s835] sm:$0xf]
  %v837 = vld [vmem:[%s835 + $0x4] sm:$0xf]
  %v838 = vld [vmem:[%s835 + $0x8] sm:$0xf]
  %v839 = vld [vmem:[%s835 + $0xc] sm:$0xf]
  %s840 = scalar_lea.vmem %s4, 5
  %v841 = vld [vmem:[%s840] sm:$0x1]
  %v843 = vlaneseq
  %v844 = vshrl.u32 %v843, 7
  %v845 = vsub.s32 0, %v844
  %v846 = vrot.slane %v841, %v845
  %v852 = vunpack.c.l.b16 %v836
  %v853 = vunpack.c.l.b16 %v837
  %v854 = vunpack.c.l.b16 %v838
  %v855 = vunpack.c.l.b16 %v839
  %v856 = vpack.c.b16 %v853, %v852
  %v857 = vpack.c.b16 %v855, %v854
  %860 = vmatprep.subr.bf16.mxu0 0
  %861 = vmatpush1.bf16.msra.mxu0 0
  %862 = vmatprep.subr.bf16.mxu0 0
  %863 = vmatpush1.bf16.msra.mxu0 0
  %864 = vmatprep.subr.bf16.mxu0 0
  %865 = vmatpush1.bf16.msra.mxu0 0
  %866 = vmatprep.subr.bf16.mxu0 0
  %867 = vmatpush1.bf16.msra.mxu0 0
  %868 = vmatprep.subr.bf16.mxu0 0
  %869 = vmatpush1.bf16.msra.mxu0 0
  %870 = vmatprep.subr.bf16.mxu0 0
  %871 = vmatpush1.bf16.msra.mxu0 0
  %872 = vmatprep.subr.bf16.mxu0 0
  %873 = vmatpush1.bf16.msra.mxu0 %v857
  %874 = vmatprep.subr.bf16.mxu0 0
  %875 = vmatpush1.bf16.msra.mxu0 %v856
  %876 = vmatprep.subr.bf16.mxu0 0
  %877 = vmatpush2.bf16.msra.mxu0 0
  %878 = vmatprep.subr.bf16.mxu0 0
  %879 = vmatpush2.bf16.msra.mxu0 0
  %880 = vmatprep.subr.bf16.mxu0 0
  %881 = vmatpush2.bf16.msra.mxu0 0
  %882 = vmatprep.subr.bf16.mxu0 0
  %883 = vmatpush2.bf16.msra.mxu0 0
  %884 = vmatprep.subr.bf16.mxu0 0
  %885 = vmatpush2.bf16.msra.mxu0 0
  %886 = vmatprep.subr.bf16.mxu0 0
  %887 = vmatpush2.bf16.msra.mxu0 0
  %888 = vmatprep.subr.bf16.mxu0 0
  %889 = vmatpush2.bf16.msra.mxu0 0
  %890 = vmatprep.subr.bf16.mxu0 0
  %891 = vmatpush2.bf16.msra.mxu0 0
  %892 = vmatprep.mubr.bf16.mxu0 0
  %893 = vmatmul.mubr.bf16.gmra.mxu0 %v324
  %v894 = vpop.f32.mrf.mxu0
  %v895 = vadd.f32 %v846, %v894
  %v896 = vpop.f32.mrf.mxu0
  %v897 = vpop.f32.mrf.mxu0
  %v898 = vadd.f32 %v846, %v897
  %v899 = vpop.f32.mrf.mxu0
  %900 = vmatprep.mubr.bf16.mxu0 0
  %901 = vmatmul.mubr.bf16.gmra.mxu0 %v327
  %v902 = vpop.f32.mrf.mxu0
  %v903 = vadd.f32 %v846, %v902
  %v904 = vpop.f32.mrf.mxu0
  %v905 = vpop.f32.mrf.mxu0
  %v906 = vpop.f32.mrf.mxu0
  %907 = vdwg.mxu0
  %v908 = vpack.c.bf16 %v752, %v749
  %v909 = vpack.c.bf16 %v757, %v757
  %v910 = vpack.c.bf16 %v825, %v822
  %v911 = vpack.c.bf16 %v830, %v830
  %v913 = vsel %vm527, %v908, 0
  %v916 = vsel %vm527, %v909, 0
  %v919 = vsel %vm527, %v910, 0
  %v922 = vsel %vm527, %v911, 0
  %924 = vmatprep.subr.bf16.mxu0 0
  %925 = vmatpush1.bf16.xpose.msra.mxu0 0
  %926 = vmatprep.subr.bf16.mxu0 0
  %927 = vmatpush1.bf16.xpose.msra.mxu0 0
  %928 = vmatprep.subr.bf16.mxu0 0
  %929 = vmatpush1.bf16.xpose.msra.mxu0 0
  %930 = vmatprep.subr.bf16.mxu0 0
  %931 = vmatpush1.bf16.xpose.msra.mxu0 0
  %932 = vmatprep.subr.bf16.mxu0 0
  %933 = vmatpush1.bf16.xpose.msra.mxu0 0
  %934 = vmatprep.subr.bf16.mxu0 0
  %935 = vmatpush1.bf16.xpose.msra.mxu0 0
  %936 = vmatprep.subr.bf16.mxu0 0
  %937 = vmatpush1.bf16.xpose.msra.mxu0 %v922
  %938 = vmatprep.subr.bf16.mxu0 0
  %939 = vmatpush1.bf16.xpose.msra.mxu0 %v919
  %940 = vmatprep.subr.bf16.mxu0 0
  %941 = vmatpush2.bf16.xpose.msra.mxu0 0
  %942 = vmatprep.subr.bf16.mxu0 0
  %943 = vmatpush2.bf16.xpose.msra.mxu0 0
  %944 = vmatprep.subr.bf16.mxu0 0
  %945 = vmatpush2.bf16.xpose.msra.mxu0 0
  %946 = vmatprep.subr.bf16.mxu0 0
  %947 = vmatpush2.bf16.xpose.msra.mxu0 0
  %948 = vmatprep.subr.bf16.mxu0 0
  %949 = vmatpush2.bf16.xpose.msra.mxu0 0
  %950 = vmatprep.subr.bf16.mxu0 0
  %951 = vmatpush2.bf16.xpose.msra.mxu0 0
  %952 = vmatprep.subr.bf16.mxu0 0
  %953 = vmatpush2.bf16.xpose.msra.mxu0 0
  %954 = vmatprep.subr.bf16.mxu0 0
  %955 = vmatpush2.bf16.xpose.msra.mxu0 0
  %956 = vmatprep.mubr.bf16.mxu0 0
  %957 = vmatmul.mubr.bf16.gmra.mxu0 %v913
  %v958 = vpop.f32.mrf.mxu0
  %v959 = vadd.f32 %v253, %v958
  %v960 = vpop.f32.mrf.mxu0
  %v961 = vpop.f32.mrf.mxu0
  %v962 = vadd.f32 %v254, %v961
  %v963 = vpop.f32.mrf.mxu0
  %964 = vmatprep.mubr.bf16.mxu0 0
  %965 = vmatmul.mubr.bf16.gmra.mxu0 %v916
  %v966 = vpop.f32.mrf.mxu0
  %v967 = vadd.f32 %v255, %v966
  %v968 = vpop.f32.mrf.mxu0
  %v969 = vpop.f32.mrf.mxu0
  %v970 = vpop.f32.mrf.mxu0
  %971 = vdwg.mxu0
  %v972 = vsel %vm588, %v959, -inf
  %973 = vmax.xlane.f32.xlu0 %v972
  %v974 = vpop.xlane.xlu0 %973
  %v975 = vsel %vm588, %v962, -inf
  %976 = vmax.xlane.f32.xlu0 %v975
  %v977 = vpop.xlane.xlu0 %976
  %v978 = vsel %vm595, %v967, -inf
  %979 = vmax.xlane.f32.xlu0 %v978
  %v980 = vpop.xlane.xlu0 %979
  %v981 = vsub.f32 %v959, %v974
  %v982 = vsub.f32 %v962, %v977
  %v983 = vsub.f32 %v967, %v980
  %v984 = vmul.f32 %v981, 1.442695
  %v985 = vpow.pop %v984
  %v986 = vmul.f32 %v982, 1.442695
  %v987 = vpow.pop %v986
  %v988 = vmul.f32 %v983, 1.442695
  %v989 = vpow.pop %v988
  %v990 = vsel %vm588, %v985, 0.0
  %991 = vadd.xlane.f32.xlu0 %v990
  %v992 = vpop.xlane.xlu0 %991
  %v993 = vsel %vm588, %v987, 0.0
  %994 = vadd.xlane.f32.xlu0 %v993
  %v995 = vpop.xlane.xlu0 %994
  %v996 = vsel %vm595, %v989, 0.0
  %997 = vadd.xlane.f32.xlu0 %v996
  %v998 = vpop.xlane.xlu0 %997
  %v999 = vrcp.pop %v992
  %v1000 = vmul.f32 %v985, %v999
  %v1001 = vrcp.pop %v995
  %v1002 = vmul.f32 %v987, %v1001
  %v1003 = vrcp.pop %v998
  %v1004 = vmul.f32 %v989, %v1003
  %v1005 = vpack.c.bf16 %v1002, %v1000
  %v1006 = vpack.c.bf16 %v1004, %v1004
  %v1007 = vpack.c.bf16 %v898, %v895
  %v1008 = vpack.c.bf16 %v903, %v903
  %v1010 = vsel %vm588, %v1005, 0
  %v1013 = vsel %vm588, %v1006, 0
  %v1016 = vsel %vm633, %v1008, 0
  %1018 = vmatprep.subr.bf16.mxu0 0
  %1019 = vmatpush1.bf16.msra.mxu0 0
  %1020 = vmatprep.subr.bf16.mxu0 0
  %1021 = vmatpush1.bf16.msra.mxu0 0
  %1022 = vmatprep.subr.bf16.mxu0 0
  %1023 = vmatpush1.bf16.msra.mxu0 0
  %1024 = vmatprep.subr.bf16.mxu0 0
  %1025 = vmatpush1.bf16.msra.mxu0 0
  %1026 = vmatprep.subr.bf16.mxu0 0
  %1027 = vmatpush1.bf16.msra.mxu0 0
  %1028 = vmatprep.subr.bf16.mxu0 0
  %1029 = vmatpush1.bf16.msra.mxu0 0
  %1030 = vmatprep.subr.bf16.mxu0 0
  %1031 = vmatpush1.bf16.msra.mxu0 %v1016
  %1032 = vmatprep.subr.bf16.mxu0 0
  %1033 = vmatpush1.bf16.msra.mxu0 %v1007
  %1034 = vmatprep.subr.bf16.mxu0 0
  %1035 = vmatpush2.bf16.msra.mxu0 0
  %1036 = vmatprep.subr.bf16.mxu0 0
  %1037 = vmatpush2.bf16.msra.mxu0 0
  %1038 = vmatprep.subr.bf16.mxu0 0
  %1039 = vmatpush2.bf16.msra.mxu0 0
  %1040 = vmatprep.subr.bf16.mxu0 0
  %1041 = vmatpush2.bf16.msra.mxu0 0
  %1042 = vmatprep.subr.bf16.mxu0 0
  %1043 = vmatpush2.bf16.msra.mxu0 0
  %1044 = vmatprep.subr.bf16.mxu0 0
  %1045 = vmatpush2.bf16.msra.mxu0 0
  %1046 = vmatprep.subr.bf16.mxu0 0
  %1047 = vmatpush2.bf16.msra.mxu0 0
  %1048 = vmatprep.subr.bf16.mxu0 0
  %1049 = vmatpush2.bf16.msra.mxu0 0
  %1050 = vmatprep.mubr.bf16.mxu0 0
  %1051 = vmatmul.mubr.bf16.gmra.mxu0 %v1010
  %v1052 = vpop.f32.mrf.mxu0
  %v1053 = vadd.f32 0.0, %v1052
  %v1054 = vpop.f32.mrf.mxu0
  %v1055 = vpop.f32.mrf.mxu0
  %v1056 = vadd.f32 0.0, %v1055
  %v1057 = vpop.f32.mrf.mxu0
  %1058 = vmatprep.mubr.bf16.mxu0 0
  %1059 = vmatmul.mubr.bf16.gmra.mxu0 %v1013
  %v1060 = vpop.f32.mrf.mxu0
  %v1061 = vadd.f32 0.0, %v1060
  %v1062 = vpop.f32.mrf.mxu0
  %v1063 = vpop.f32.mrf.mxu0
  %v1064 = vpop.f32.mrf.mxu0
  %1065 = vdwg.mxu0
  %v1066 = vpack.c.bf16 %v1056, %v1053
  %v1067 = vpack.c.bf16 %v1061, %v1061
  %s1068 = scalar_lea.vmem %s5, 8
  %v1069 = vld [vmem:[%s1068] sm:$0xf]
  %v1070 = vld [vmem:[%s1068 + $0x4] sm:$0xf]
  %v1073 = vunpack.c.l.b16 %v1069
  %v1074 = vunpack.c.l.b16 %v1070
  %v1075 = vpack.c.b16 %v1074, %v1073
  %v1078 = vsel %vm527, %v1066, 0
  %v1081 = vsel %vm527, %v1067, 0
  %1083 = vmatprep.subr.bf16.mxu0 0
  %1084 = vmatpush1.bf16.msra.mxu0 0
  %1085 = vmatprep.subr.bf16.mxu0 0
  %1086 = vmatpush1.bf16.msra.mxu0 0
  %1087 = vmatprep.subr.bf16.mxu0 0
  %1088 = vmatpush1.bf16.msra.mxu0 0
  %1089 = vmatprep.subr.bf16.mxu0 0
  %1090 = vmatpush1.bf16.msra.mxu0 0
  %1091 = vmatprep.subr.bf16.mxu0 0
  %1092 = vmatpush1.bf16.msra.mxu0 0
  %1093 = vmatprep.subr.bf16.mxu0 0
  %1094 = vmatpush1.bf16.msra.mxu0 0
  %1095 = vmatprep.subr.bf16.mxu0 0
  %1096 = vmatpush1.bf16.msra.mxu0 0
  %1097 = vmatprep.subr.bf16.mxu0 0
  %1098 = vmatpush1.bf16.msra.mxu0 %v1075
  %1099 = vmatprep.subr.bf16.mxu0 0
  %1100 = vmatpush2.bf16.msra.mxu0 0
  %1101 = vmatprep.subr.bf16.mxu0 0
  %1102 = vmatpush2.bf16.msra.mxu0 0
  %1103 = vmatprep.subr.bf16.mxu0 0
  %1104 = vmatpush2.bf16.msra.mxu0 0
  %1105 = vmatprep.subr.bf16.mxu0 0
  %1106 = vmatpush2.bf16.msra.mxu0 0
  %1107 = vmatprep.subr.bf16.mxu0 0
  %1108 = vmatpush2.bf16.msra.mxu0 0
  %1109 = vmatprep.subr.bf16.mxu0 0
  %1110 = vmatpush2.bf16.msra.mxu0 0
  %1111 = vmatprep.subr.bf16.mxu0 0
  %1112 = vmatpush2.bf16.msra.mxu0 0
  %1113 = vmatprep.subr.bf16.mxu0 0
  %1114 = vmatpush2.bf16.msra.mxu0 0
  %1115 = vmatprep.mubr.bf16.mxu0 0
  %1116 = vmatmul.mubr.bf16.gmra.mxu0 %v1078
  %v1117 = vpop.f32.mrf.mxu0
  %v1118 = vadd.f32 0.0, %v1117
  %v1119 = vpop.f32.mrf.mxu0
  %v1120 = vpop.f32.mrf.mxu0
  %v1121 = vadd.f32 0.0, %v1120
  %v1122 = vpop.f32.mrf.mxu0
  %1123 = vmatprep.mubr.bf16.mxu0 0
  %1124 = vmatmul.mubr.bf16.gmra.mxu0 %v1081
  %v1125 = vpop.f32.mrf.mxu0
  %v1126 = vadd.f32 0.0, %v1125
  %v1127 = vpop.f32.mrf.mxu0
  %v1128 = vpop.f32.mrf.mxu0
  %v1129 = vpop.f32.mrf.mxu0
  %1130 = vdwg.mxu0
  %v1133 = vunpack.c.l.b16 %v687
  %v1134 = vunpack.c.l.b16 %v688
  %v1135 = vpack.c.b16 %v1134, %v1133
  %v1138 = vsel %vm527, %v685, 0
  %v1141 = vsel %vm527, %v686, 0
  %1143 = vmatprep.subr.bf16.mxu0 0
  %1144 = vmatpush1.bf16.msra.mxu0 0
  %1145 = vmatprep.subr.bf16.mxu0 0
  %1146 = vmatpush1.bf16.msra.mxu0 0
  %1147 = vmatprep.subr.bf16.mxu0 0
  %1148 = vmatpush1.bf16.msra.mxu0 0
  %1149 = vmatprep.subr.bf16.mxu0 0
  %1150 = vmatpush1.bf16.msra.mxu0 0
  %1151 = vmatprep.subr.bf16.mxu0 0
  %1152 = vmatpush1.bf16.msra.mxu0 0
  %1153 = vmatprep.subr.bf16.mxu0 0
  %1154 = vmatpush1.bf16.msra.mxu0 0
  %1155 = vmatprep.subr.bf16.mxu0 0
  %1156 = vmatpush1.bf16.msra.mxu0 0
  %1157 = vmatprep.subr.bf16.mxu0 0
  %1158 = vmatpush1.bf16.msra.mxu0 %v1135
  %1159 = vmatprep.subr.bf16.mxu0 0
  %1160 = vmatpush2.bf16.msra.mxu0 0
  %1161 = vmatprep.subr.bf16.mxu0 0
  %1162 = vmatpush2.bf16.msra.mxu0 0
  %1163 = vmatprep.subr.bf16.mxu0 0
  %1164 = vmatpush2.bf16.msra.mxu0 0
  %1165 = vmatprep.subr.bf16.mxu0 0
  %1166 = vmatpush2.bf16.msra.mxu0 0
  %1167 = vmatprep.subr.bf16.mxu0 0
  %1168 = vmatpush2.bf16.msra.mxu0 0
  %1169 = vmatprep.subr.bf16.mxu0 0
  %1170 = vmatpush2.bf16.msra.mxu0 0
  %1171 = vmatprep.subr.bf16.mxu0 0
  %1172 = vmatpush2.bf16.msra.mxu0 0
  %1173 = vmatprep.subr.bf16.mxu0 0
  %1174 = vmatpush2.bf16.msra.mxu0 0
  %1175 = vmatprep.mubr.bf16.mxu0 0
  %1176 = vmatmul.mubr.bf16.gmra.mxu0 %v1138
  %v1177 = vpop.f32.mrf.mxu0
  %v1178 = vadd.f32 %v1118, %v1177
  %v1179 = vpop.f32.mrf.mxu0
  %v1180 = vpop.f32.mrf.mxu0
  %v1181 = vadd.f32 %v1121, %v1180
  %v1182 = vpop.f32.mrf.mxu0
  %1183 = vmatprep.mubr.bf16.mxu0 0
  %1184 = vmatmul.mubr.bf16.gmra.mxu0 %v1141
  %v1185 = vpop.f32.mrf.mxu0
  %v1186 = vadd.f32 %v1126, %v1185
  %v1187 = vpop.f32.mrf.mxu0
  %v1188 = vpop.f32.mrf.mxu0
  %v1189 = vpop.f32.mrf.mxu0
  %1190 = vdwg.mxu0
  %v1191 = vadd.f32 %v197, %v1178
  %v1192 = vadd.f32 %v200, %v1181
  %v1193 = vadd.f32 %v205, %v1186
  %v1194 = vld [vmem:[%s6] sm:$0x1]
  %v1196 = vlaneseq
  %v1197 = vshrl.u32 %v1196, 7
  %v1198 = vsub.s32 0, %v1197
  %v1199 = vrot.slane %v1194, %v1198
  %v1201 = vadd.f32 %v1191, %v1199
  %v1202 = vadd.f32 %v1192, %v1199
  %v1203 = vadd.f32 %v1193, %v1199
  %v1204 = vsel %vm256, %v1201, 0.0
  %1205 = vadd.xlane.f32.xlu0 %v1204
  %v1206 = vpop.xlane.xlu0 %1205
  %v1207 = vsel %vm256, %v1202, 0.0
  %1208 = vadd.xlane.f32.xlu0 %v1207
  %v1209 = vpop.xlane.xlu0 %1208
  %v1210 = vsel %vm263, %v1203, 0.0
  %1211 = vadd.xlane.f32.xlu0 %v1210
  %v1212 = vpop.xlane.xlu0 %1211
  %v1213 = vmul.f32 %v1206, %v267
  %v1214 = vmul.f32 %v1209, %v267
  %v1215 = vmul.f32 %v1212, %v267
  %v1216 = vsub.f32 %v1201, %v1213
  %v1217 = vsub.f32 %v1202, %v1214
  %v1218 = vsub.f32 %v1203, %v1215
  %v1219 = vmul.f32 %v1216, %v1216
  %v1220 = vmul.f32 %v1217, %v1217
  %v1221 = vmul.f32 %v1218, %v1218
  %v1222 = vsel %vm256, %v1219, 0.0
  %1223 = vadd.xlane.f32.xlu0 %v1222
  %v1224 = vpop.xlane.xlu0 %1223
  %v1225 = vsel %vm256, %v1220, 0.0
  %1226 = vadd.xlane.f32.xlu0 %v1225
  %v1227 = vpop.xlane.xlu0 %1226
  %v1228 = vsel %vm263, %v1221, 0.0
  %1229 = vadd.xlane.f32.xlu0 %v1228
  %v1230 = vpop.xlane.xlu0 %1229
  %v1231 = vmul.f32 %v1224, %v267
  %v1232 = vmul.f32 %v1227, %v267
  %v1233 = vmul.f32 %v1230, %v267
  %v1234 = vadd.f32 %v1231, 1e-06
  %v1235 = vadd.f32 %v1232, 1e-06
  %v1236 = vadd.f32 %v1233, 1e-06
  %v1237 = vrsqrt.pop %v1234
  %v1238 = vrsqrt.pop %v1235
  %v1239 = vrsqrt.pop %v1236
  %v1240 = vmul.f32 %v1216, %v1237
  %v1241 = vmul.f32 %v1217, %v1238
  %v1242 = vmul.f32 %v1218, %v1239
  %v1243 = vpack.c.bf16 %v1241, %v1240
  %v1244 = vpack.c.bf16 %v1242, %v1242
  %v1245 = vld [vmem:[%s7] sm:$0xf]
  %v1246 = vld [vmem:[%s7 + $0x4] sm:$0xf]
  %v1247 = vld [vmem:[%s7 + $0x8] sm:$0xf]
  %v1248 = vld [vmem:[%s7 + $0xc] sm:$0xf]
  %v1249 = vld [vmem:[%s8] sm:$0x1]
  %v1251 = vlaneseq
  %v1252 = vshrl.u32 %v1251, 7
  %v1253 = vsub.s32 0, %v1252
  %v1254 = vrot.slane %v1249, %v1253
  %v1260 = vunpack.c.l.b16 %v1245
  %v1261 = vunpack.c.l.b16 %v1246
  %v1262 = vunpack.c.l.b16 %v1247
  %v1263 = vunpack.c.l.b16 %v1248
  %v1264 = vpack.c.b16 %v1261, %v1260
  %v1265 = vpack.c.b16 %v1263, %v1262
  %v1269 = vsel %vm256, %v1243, 0
  %v1272 = vsel %vm256, %v1244, 0
  %1274 = vmatprep.subr.bf16.mxu0 0
  %1275 = vmatpush1.bf16.msra.mxu0 0
  %1276 = vmatprep.subr.bf16.mxu0 0
  %1277 = vmatpush1.bf16.msra.mxu0 0
  %1278 = vmatprep.subr.bf16.mxu0 0
  %1279 = vmatpush1.bf16.msra.mxu0 0
  %1280 = vmatprep.subr.bf16.mxu0 0
  %1281 = vmatpush1.bf16.msra.mxu0 0
  %1282 = vmatprep.subr.bf16.mxu0 0
  %1283 = vmatpush1.bf16.msra.mxu0 0
  %1284 = vmatprep.subr.bf16.mxu0 0
  %1285 = vmatpush1.bf16.msra.mxu0 0
  %1286 = vmatprep.subr.bf16.mxu0 0
  %1287 = vmatpush1.bf16.msra.mxu0 %v1265
  %1288 = vmatprep.subr.bf16.mxu0 0
  %1289 = vmatpush1.bf16.msra.mxu0 %v1264
  %1290 = vmatprep.subr.bf16.mxu0 0
  %1291 = vmatpush2.bf16.msra.mxu0 0
  %1292 = vmatprep.subr.bf16.mxu0 0
  %1293 = vmatpush2.bf16.msra.mxu0 0
  %1294 = vmatprep.subr.bf16.mxu0 0
  %1295 = vmatpush2.bf16.msra.mxu0 0
  %1296 = vmatprep.subr.bf16.mxu0 0
  %1297 = vmatpush2.bf16.msra.mxu0 0
  %1298 = vmatprep.subr.bf16.mxu0 0
  %1299 = vmatpush2.bf16.msra.mxu0 0
  %1300 = vmatprep.subr.bf16.mxu0 0
  %1301 = vmatpush2.bf16.msra.mxu0 0
  %1302 = vmatprep.subr.bf16.mxu0 0
  %1303 = vmatpush2.bf16.msra.mxu0 0
  %1304 = vmatprep.subr.bf16.mxu0 0
  %1305 = vmatpush2.bf16.msra.mxu0 0
  %1306 = vmatprep.mubr.bf16.mxu0 0
  %1307 = vmatmul.mubr.bf16.gmra.mxu0 %v1269
  %v1308 = vpop.f32.mrf.mxu0
  %v1309 = vadd.f32 %v1254, %v1308
  %v1310 = vpop.f32.mrf.mxu0
  %v1311 = vpop.f32.mrf.mxu0
  %v1312 = vadd.f32 %v1254, %v1311
  %v1313 = vpop.f32.mrf.mxu0
  %1314 = vmatprep.mubr.bf16.mxu0 0
  %1315 = vmatmul.mubr.bf16.gmra.mxu0 %v1272
  %v1316 = vpop.f32.mrf.mxu0
  %v1317 = vadd.f32 %v1254, %v1316
  %v1318 = vpop.f32.mrf.mxu0
  %v1319 = vpop.f32.mrf.mxu0
  %v1320 = vpop.f32.mrf.mxu0
  %1321 = vdwg.mxu0
  %s1322 = scalar_lea.vmem %s7, 16
  %v1323 = vld [vmem:[%s1322] sm:$0xf]
  %v1324 = vld [vmem:[%s1322 + $0x4] sm:$0xf]
  %v1325 = vld [vmem:[%s1322 + $0x8] sm:$0xf]
  %v1326 = vld [vmem:[%s1322 + $0xc] sm:$0xf]
  %s1327 = scalar_lea.vmem %s8, 1
  %v1328 = vld [vmem:[%s1327] sm:$0x1]
  %v1330 = vlaneseq
  %v1331 = vshrl.u32 %v1330, 7
  %v1332 = vsub.s32 0, %v1331
  %v1333 = vrot.slane %v1328, %v1332
  %v1339 = vunpack.c.l.b16 %v1323
  %v1340 = vunpack.c.l.b16 %v1324
  %v1341 = vunpack.c.l.b16 %v1325
  %v1342 = vunpack.c.l.b16 %v1326
  %v1343 = vpack.c.b16 %v1340, %v1339
  %v1344 = vpack.c.b16 %v1342, %v1341
  %1347 = vmatprep.subr.bf16.mxu0 0
  %1348 = vmatpush1.bf16.msra.mxu0 0
  %1349 = vmatprep.subr.bf16.mxu0 0
  %1350 = vmatpush1.bf16.msra.mxu0 0
  %1351 = vmatprep.subr.bf16.mxu0 0
  %1352 = vmatpush1.bf16.msra.mxu0 0
  %1353 = vmatprep.subr.bf16.mxu0 0
  %1354 = vmatpush1.bf16.msra.mxu0 0
  %1355 = vmatprep.subr.bf16.mxu0 0
  %1356 = vmatpush1.bf16.msra.mxu0 0
  %1357 = vmatprep.subr.bf16.mxu0 0
  %1358 = vmatpush1.bf16.msra.mxu0 0
  %1359 = vmatprep.subr.bf16.mxu0 0
  %1360 = vmatpush1.bf16.msra.mxu0 %v1344
  %1361 = vmatprep.subr.bf16.mxu0 0
  %1362 = vmatpush1.bf16.msra.mxu0 %v1343
  %1363 = vmatprep.subr.bf16.mxu0 0
  %1364 = vmatpush2.bf16.msra.mxu0 0
  %1365 = vmatprep.subr.bf16.mxu0 0
  %1366 = vmatpush2.bf16.msra.mxu0 0
  %1367 = vmatprep.subr.bf16.mxu0 0
  %1368 = vmatpush2.bf16.msra.mxu0 0
  %1369 = vmatprep.subr.bf16.mxu0 0
  %1370 = vmatpush2.bf16.msra.mxu0 0
  %1371 = vmatprep.subr.bf16.mxu0 0
  %1372 = vmatpush2.bf16.msra.mxu0 0
  %1373 = vmatprep.subr.bf16.mxu0 0
  %1374 = vmatpush2.bf16.msra.mxu0 0
  %1375 = vmatprep.subr.bf16.mxu0 0
  %1376 = vmatpush2.bf16.msra.mxu0 0
  %1377 = vmatprep.subr.bf16.mxu0 0
  %1378 = vmatpush2.bf16.msra.mxu0 0
  %1379 = vmatprep.mubr.bf16.mxu0 0
  %1380 = vmatmul.mubr.bf16.gmra.mxu0 %v1269
  %v1381 = vpop.f32.mrf.mxu0
  %v1382 = vadd.f32 %v1333, %v1381
  %v1383 = vpop.f32.mrf.mxu0
  %v1384 = vpop.f32.mrf.mxu0
  %v1385 = vadd.f32 %v1333, %v1384
  %v1386 = vpop.f32.mrf.mxu0
  %1387 = vmatprep.mubr.bf16.mxu0 0
  %1388 = vmatmul.mubr.bf16.gmra.mxu0 %v1272
  %v1389 = vpop.f32.mrf.mxu0
  %v1390 = vadd.f32 %v1333, %v1389
  %v1391 = vpop.f32.mrf.mxu0
  %v1392 = vpop.f32.mrf.mxu0
  %v1393 = vpop.f32.mrf.mxu0
  %1394 = vdwg.mxu0
  %v1395 = vxor.u32 %v1309, 2147483648
  %v1396 = vxor.u32 %v1312, 2147483648
  %v1397 = vxor.u32 %v1317, 2147483648
  %v1398 = vmul.f32 %v1395, 1.442695
  %v1399 = vpow.pop %v1398
  %v1400 = vmul.f32 %v1396, 1.442695
  %v1401 = vpow.pop %v1400
  %v1402 = vmul.f32 %v1397, 1.442695
  %v1403 = vpow.pop %v1402
  %v1404 = vadd.f32 %v1399, 1.0
  %v1405 = vadd.f32 %v1401, 1.0
  %v1406 = vadd.f32 %v1403, 1.0
  %v1407 = vrcp.pop %v1404
  %v1408 = vmul.f32 1.0, %v1407
  %v1409 = vrcp.pop %v1405
  %v1410 = vmul.f32 1.0, %v1409
  %v1411 = vrcp.pop %v1406
  %v1412 = vmul.f32 1.0, %v1411
  %v1413 = vmul.f32 %v1309, %v1408
  %v1414 = vmul.f32 %v1312, %v1410
  %v1415 = vmul.f32 %v1317, %v1412
  %v1416 = vmul.f32 %v1413, %v1382
  %v1417 = vmul.f32 %v1414, %v1385
  %v1418 = vmul.f32 %v1415, %v1390
  %v1419 = vpack.c.bf16 %v1417, %v1416
  %v1420 = vpack.c.bf16 %v1418, %v1418
  %v1421 = vld [vmem:[%s9] sm:$0xf]
  %v1422 = vld [vmem:[%s9 + $0x4] sm:$0xf]
  %v1423 = vld [vmem:[%s9 + $0x8] sm:$0xf]
  %v1424 = vld [vmem:[%s9 + $0xc] sm:$0xf]
  %v1425 = vld [vmem:[%s9 + $0x10] sm:$0xf]
  %v1426 = vld [vmem:[%s9 + $0x14] sm:$0xf]
  %v1427 = vld [vmem:[%s9 + $0x18] sm:$0xf]
  %v1428 = vld [vmem:[%s9 + $0x1c] sm:$0xf]
  %v1437 = vunpack.c.l.b16 %v1421
  %v1438 = vunpack.c.l.b16 %v1422
  %v1439 = vunpack.c.l.b16 %v1423
  %v1440 = vunpack.c.l.b16 %v1424
  %v1441 = vunpack.c.l.b16 %v1425
  %v1442 = vunpack.c.l.b16 %v1426
  %v1443 = vunpack.c.l.b16 %v1427
  %v1444 = vunpack.c.l.b16 %v1428
  %v1445 = vpack.c.b16 %v1438, %v1437
  %v1446 = vpack.c.b16 %v1440, %v1439
  %v1447 = vpack.c.b16 %v1442, %v1441
  %v1448 = vpack.c.b16 %v1444, %v1443
  %v1454 = vsel %vm155, %v1419, 0
  %v1457 = vsel %vm155, %v1420, 0
  %1459 = vmatprep.subr.bf16.mxu0 0
  %1460 = vmatpush1.bf16.msra.mxu0 0
  %1461 = vmatprep.subr.bf16.mxu0 0
  %1462 = vmatpush1.bf16.msra.mxu0 0
  %1463 = vmatprep.subr.bf16.mxu0 0
  %1464 = vmatpush1.bf16.msra.mxu0 0
  %1465 = vmatprep.subr.bf16.mxu0 0
  %1466 = vmatpush1.bf16.msra.mxu0 0
  %1467 = vmatprep.subr.bf16.mxu0 0
  %1468 = vmatpush1.bf16.msra.mxu0 %v1448
  %1469 = vmatprep.subr.bf16.mxu0 0
  %1470 = vmatpush1.bf16.msra.mxu0 %v1447
  %1471 = vmatprep.subr.bf16.mxu0 0
  %1472 = vmatpush1.bf16.msra.mxu0 %v1446
  %1473 = vmatprep.subr.bf16.mxu0 0
  %1474 = vmatpush1.bf16.msra.mxu0 %v1445
  %1475 = vmatprep.subr.bf16.mxu0 0
  %1476 = vmatpush2.bf16.msra.mxu0 0
  %1477 = vmatprep.subr.bf16.mxu0 0
  %1478 = vmatpush2.bf16.msra.mxu0 0
  %1479 = vmatprep.subr.bf16.mxu0 0
  %1480 = vmatpush2.bf16.msra.mxu0 0
  %1481 = vmatprep.subr.bf16.mxu0 0
  %1482 = vmatpush2.bf16.msra.mxu0 0
  %1483 = vmatprep.subr.bf16.mxu0 0
  %1484 = vmatpush2.bf16.msra.mxu0 0
  %1485 = vmatprep.subr.bf16.mxu0 0
  %1486 = vmatpush2.bf16.msra.mxu0 0
  %1487 = vmatprep.subr.bf16.mxu0 0
  %1488 = vmatpush2.bf16.msra.mxu0 0
  %1489 = vmatprep.subr.bf16.mxu0 0
  %1490 = vmatpush2.bf16.msra.mxu0 0
  %1491 = vmatprep.mubr.bf16.mxu0 0
  %1492 = vmatmul.mubr.bf16.gmra.mxu0 %v1454
  %v1493 = vpop.f32.mrf.mxu0
  %v1494 = vadd.f32 0.0, %v1493
  %v1495 = vpop.f32.mrf.mxu0
  %v1496 = vpop.f32.mrf.mxu0
  %v1497 = vadd.f32 0.0, %v1496
  %v1498 = vpop.f32.mrf.mxu0
  %1499 = vmatprep.mubr.bf16.mxu0 0
  %1500 = vmatmul.mubr.bf16.gmra.mxu0 %v1457
  %v1501 = vpop.f32.mrf.mxu0
  %v1502 = vadd.f32 0.0, %v1501
  %v1503 = vpop.f32.mrf.mxu0
  %v1504 = vpop.f32.mrf.mxu0
  %v1505 = vpop.f32.mrf.mxu0
  %1506 = vdwg.mxu0
  %v1507 = vadd.f32 %v1201, %v1494
  %v1508 = vadd.f32 %v1202, %v1497
  %v1509 = vadd.f32 %v1203, %v1502
  %s1510 = scalar_lea.vmem %s6, 1
  %v1511 = vld [vmem:[%s1510] sm:$0x1]
  %v1513 = vlaneseq
  %v1514 = vshrl.u32 %v1513, 7
  %v1515 = vsub.s32 0, %v1514
  %v1516 = vrot.slane %v1511, %v1515
  %v1518 = vadd.f32 %v1507, %v1516
  %v1519 = vadd.f32 %v1508, %v1516
  %v1520 = vadd.f32 %v1509, %v1516
  %v1521 = vsel %vm256, %v1518, 0.0
  %1522 = vadd.xlane.f32.xlu0 %v1521
  %v1523 = vpop.xlane.xlu0 %1522
  %v1524 = vsel %vm256, %v1519, 0.0
  %1525 = vadd.xlane.f32.xlu0 %v1524
  %v1526 = vpop.xlane.xlu0 %1525
  %v1527 = vsel %vm263, %v1520, 0.0
  %1528 = vadd.xlane.f32.xlu0 %v1527
  %v1529 = vpop.xlane.xlu0 %1528
  %v1530 = vmul.f32 %v1523, %v267
  %v1531 = vmul.f32 %v1526, %v267
  %v1532 = vmul.f32 %v1529, %v267
  %v1533 = vsub.f32 %v1518, %v1530
  %v1534 = vsub.f32 %v1519, %v1531
  %v1535 = vsub.f32 %v1520, %v1532
  %v1536 = vmul.f32 %v1533, %v1533
  %v1537 = vmul.f32 %v1534, %v1534
  %v1538 = vmul.f32 %v1535, %v1535
  %v1539 = vsel %vm256, %v1536, 0.0
  %1540 = vadd.xlane.f32.xlu0 %v1539
  %v1541 = vpop.xlane.xlu0 %1540
  %v1542 = vsel %vm256, %v1537, 0.0
  %1543 = vadd.xlane.f32.xlu0 %v1542
  %v1544 = vpop.xlane.xlu0 %1543
  %v1545 = vsel %vm263, %v1538, 0.0
  %1546 = vadd.xlane.f32.xlu0 %v1545
  %v1547 = vpop.xlane.xlu0 %1546
  %v1548 = vmul.f32 %v1541, %v267
  %v1549 = vmul.f32 %v1544, %v267
  %v1550 = vmul.f32 %v1547, %v267
  %v1551 = vadd.f32 %v1548, 1e-06
  %v1552 = vadd.f32 %v1549, 1e-06
  %v1553 = vadd.f32 %v1550, 1e-06
  %v1554 = vrsqrt.pop %v1551
  %v1555 = vrsqrt.pop %v1552
  %v1556 = vrsqrt.pop %v1553
  %v1557 = vmul.f32 %v1533, %v1554
  %v1558 = vmul.f32 %v1534, %v1555
  %v1559 = vmul.f32 %v1535, %v1556
  %v1560 = vpack.c.bf16 %v1558, %v1557
  %v1561 = vpack.c.bf16 %v1559, %v1559
  %s1562 = scalar_lea.vmem %s3, 96
  %v1563 = vld [vmem:[%s1562] sm:$0xf]
  %v1564 = vld [vmem:[%s1562 + $0x4] sm:$0xf]
  %v1565 = vld [vmem:[%s1562 + $0x8] sm:$0xf]
  %v1566 = vld [vmem:[%s1562 + $0xc] sm:$0xf]
  %s1567 = scalar_lea.vmem %s4, 6
  %v1568 = vld [vmem:[%s1567] sm:$0x1]
  %v1570 = vlaneseq
  %v1571 = vshrl.u32 %v1570, 7
  %v1572 = vsub.s32 0, %v1571
  %v1573 = vrot.slane %v1568, %v1572
  %v1579 = vunpack.c.l.b16 %v1563
  %v1580 = vunpack.c.l.b16 %v1564
  %v1581 = vunpack.c.l.b16 %v1565
  %v1582 = vunpack.c.l.b16 %v1566
  %v1583 = vpack.c.b16 %v1580, %v1579
  %v1584 = vpack.c.b16 %v1582, %v1581
  %v1588 = vsel %vm256, %v1560, 0
  %v1591 = vsel %vm256, %v1561, 0
  %1593 = vmatprep.subr.bf16.mxu0 0
  %1594 = vmatpush1.bf16.msra.mxu0 0
  %1595 = vmatprep.subr.bf16.mxu0 0
  %1596 = vmatpush1.bf16.msra.mxu0 0
  %1597 = vmatprep.subr.bf16.mxu0 0
  %1598 = vmatpush1.bf16.msra.mxu0 0
  %1599 = vmatprep.subr.bf16.mxu0 0
  %1600 = vmatpush1.bf16.msra.mxu0 0
  %1601 = vmatprep.subr.bf16.mxu0 0
  %1602 = vmatpush1.bf16.msra.mxu0 0
  %1603 = vmatprep.subr.bf16.mxu0 0
  %1604 = vmatpush1.bf16.msra.mxu0 0
  %1605 = vmatprep.subr.bf16.mxu0 0
  %1606 = vmatpush1.bf16.msra.mxu0 %v1584
  %1607 = vmatprep.subr.bf16.mxu0 0
  %1608 = vmatpush1.bf16.msra.mxu0 %v1583
  %1609 = vmatprep.subr.bf16.mxu0 0
  %1610 = vmatpush2.bf16.msra.mxu0 0
  %1611 = vmatprep.subr.bf16.mxu0 0
  %1612 = vmatpush2.bf16.msra.mxu0 0
  %1613 = vmatprep.subr.bf16.mxu0 0
  %1614 = vmatpush2.bf16.msra.mxu0 0
  %1615 = vmatprep.subr.bf16.mxu0 0
  %1616 = vmatpush2.bf16.msra.mxu0 0
  %1617 = vmatprep.subr.bf16.mxu0 0
  %1618 = vmatpush2.bf16.msra.mxu0 0
  %1619 = vmatprep.subr.bf16.mxu0 0
  %1620 = vmatpush2.bf16.msra.mxu0 0
  %1621 = vmatprep.subr.bf16.mxu0 0
  %1622 = vmatpush2.bf16.msra.mxu0 0
  %1623 = vmatprep.subr.bf16.mxu0 0
  %1624 = vmatpush2.bf16.msra.mxu0 0
  %1625 = vmatprep.mubr.bf16.mxu0 0
  %1626 = vmatmul.mubr.bf16.gmra.mxu0 %v1588
  %v1627 = vpop.f32.mrf.mxu0
  %v1628 = vadd.f32 %v1573, %v1627
  %v1629 = vpop.f32.mrf.mxu0
  %v1630 = vpop.f32.mrf.mxu0
  %v1631 = vadd.f32 %v1573, %v1630
  %v1632 = vpop.f32.mrf.mxu0
  %1633 = vmatprep.mubr.bf16.mxu0 0
  %1634 = vmatmul.mubr.bf16.gmra.mxu0 %v1591
  %v1635 = vpop.f32.mrf.mxu0
  %v1636 = vadd.f32 %v1573, %v1635
  %v1637 = vpop.f32.mrf.mxu0
  %v1638 = vpop.f32.mrf.mxu0
  %v1639 = vpop.f32.mrf.mxu0
  %1640 = vdwg.mxu0
  %s1641 = scalar_lea.vmem %s3, 128
  %v1642 = vld [vmem:[%s1641] sm:$0xf]
  %v1643 = vld [vmem:[%s1641 + $0x4] sm:$0xf]
  %v1644 = vld [vmem:[%s1641 + $0x8] sm:$0xf]
  %v1645 = vld [vmem:[%s1641 + $0xc] sm:$0xf]
  %s1646 = scalar_lea.vmem %s4, 8
  %v1647 = vld [vmem:[%s1646] sm:$0x1]
  %v1649 = vlaneseq
  %v1650 = vshrl.u32 %v1649, 7
  %v1651 = vsub.s32 0, %v1650
  %v1652 = vrot.slane %v1647, %v1651
  %v1658 = vunpack.c.l.b16 %v1642
  %v1659 = vunpack.c.l.b16 %v1643
  %v1660 = vunpack.c.l.b16 %v1644
  %v1661 = vunpack.c.l.b16 %v1645
  %v1662 = vpack.c.b16 %v1659, %v1658
  %v1663 = vpack.c.b16 %v1661, %v1660
  %1666 = vmatprep.subr.bf16.mxu0 0
  %1667 = vmatpush1.bf16.msra.mxu0 0
  %1668 = vmatprep.subr.bf16.mxu0 0
  %1669 = vmatpush1.bf16.msra.mxu0 0
  %1670 = vmatprep.subr.bf16.mxu0 0
  %1671 = vmatpush1.bf16.msra.mxu0 0
  %1672 = vmatprep.subr.bf16.mxu0 0
  %1673 = vmatpush1.bf16.msra.mxu0 0
  %1674 = vmatprep.subr.bf16.mxu0 0
  %1675 = vmatpush1.bf16.msra.mxu0 0
  %1676 = vmatprep.subr.bf16.mxu0 0
  %1677 = vmatpush1.bf16.msra.mxu0 0
  %1678 = vmatprep.subr.bf16.mxu0 0
  %1679 = vmatpush1.bf16.msra.mxu0 %v1663
  %1680 = vmatprep.subr.bf16.mxu0 0
  %1681 = vmatpush1.bf16.msra.mxu0 %v1662
  %1682 = vmatprep.subr.bf16.mxu0 0
  %1683 = vmatpush2.bf16.msra.mxu0 0
  %1684 = vmatprep.subr.bf16.mxu0 0
  %1685 = vmatpush2.bf16.msra.mxu0 0
  %1686 = vmatprep.subr.bf16.mxu0 0
  %1687 = vmatpush2.bf16.msra.mxu0 0
  %1688 = vmatprep.subr.bf16.mxu0 0
  %1689 = vmatpush2.bf16.msra.mxu0 0
  %1690 = vmatprep.subr.bf16.mxu0 0
  %1691 = vmatpush2.bf16.msra.mxu0 0
  %1692 = vmatprep.subr.bf16.mxu0 0
  %1693 = vmatpush2.bf16.msra.mxu0 0
  %1694 = vmatprep.subr.bf16.mxu0 0
  %1695 = vmatpush2.bf16.msra.mxu0 0
  %1696 = vmatprep.subr.bf16.mxu0 0
  %1697 = vmatpush2.bf16.msra.mxu0 0
  %1698 = vmatprep.mubr.bf16.mxu0 0
  %1699 = vmatmul.mubr.bf16.gmra.mxu0 %v1588
  %v1700 = vpop.f32.mrf.mxu0
  %v1701 = vadd.f32 %v1652, %v1700
  %v1702 = vpop.f32.mrf.mxu0
  %v1703 = vpop.f32.mrf.mxu0
  %v1704 = vadd.f32 %v1652, %v1703
  %v1705 = vpop.f32.mrf.mxu0
  %1706 = vmatprep.mubr.bf16.mxu0 0
  %1707 = vmatmul.mubr.bf16.gmra.mxu0 %v1591
  %v1708 = vpop.f32.mrf.mxu0
  %v1709 = vadd.f32 %v1652, %v1708
  %v1710 = vpop.f32.mrf.mxu0
  %v1711 = vpop.f32.mrf.mxu0
  %v1712 = vpop.f32.mrf.mxu0
  %1713 = vdwg.mxu0
  %s1714 = scalar_lea.vmem %s3, 160
  %v1715 = vld [vmem:[%s1714] sm:$0xf]
  %v1716 = vld [vmem:[%s1714 + $0x4] sm:$0xf]
  %v1717 = vld [vmem:[%s1714 + $0x8] sm:$0xf]
  %v1718 = vld [vmem:[%s1714 + $0xc] sm:$0xf]
  %s1719 = scalar_lea.vmem %s4, 10
  %v1720 = vld [vmem:[%s1719] sm:$0x1]
  %v1722 = vlaneseq
  %v1723 = vshrl.u32 %v1722, 7
  %v1724 = vsub.s32 0, %v1723
  %v1725 = vrot.slane %v1720, %v1724
  %v1731 = vunpack.c.l.b16 %v1715
  %v1732 = vunpack.c.l.b16 %v1716
  %v1733 = vunpack.c.l.b16 %v1717
  %v1734 = vunpack.c.l.b16 %v1718
  %v1735 = vpack.c.b16 %v1732, %v1731
  %v1736 = vpack.c.b16 %v1734, %v1733
  %1739 = vmatprep.subr.bf16.mxu0 0
  %1740 = vmatpush1.bf16.msra.mxu0 0
  %1741 = vmatprep.subr.bf16.mxu0 0
  %1742 = vmatpush1.bf16.msra.mxu0 0
  %1743 = vmatprep.subr.bf16.mxu0 0
  %1744 = vmatpush1.bf16.msra.mxu0 0
  %1745 = vmatprep.subr.bf16.mxu0 0
  %1746 = vmatpush1.bf16.msra.mxu0 0
  %1747 = vmatprep.subr.bf16.mxu0 0
  %1748 = vmatpush1.bf16.msra.mxu0 0
  %1749 = vmatprep.subr.bf16.mxu0 0
  %1750 = vmatpush1.bf16.msra.mxu0 0
  %1751 = vmatprep.subr.bf16.mxu0 0
  %1752 = vmatpush1.bf16.msra.mxu0 %v1736
  %1753 = vmatprep.subr.bf16.mxu0 0
  %1754 = vmatpush1.bf16.msra.mxu0 %v1735
  %1755 = vmatprep.subr.bf16.mxu0 0
  %1756 = vmatpush2.bf16.msra.mxu0 0
  %1757 = vmatprep.subr.bf16.mxu0 0
  %1758 = vmatpush2.bf16.msra.mxu0 0
  %1759 = vmatprep.subr.bf16.mxu0 0
  %1760 = vmatpush2.bf16.msra.mxu0 0
  %1761 = vmatprep.subr.bf16.mxu0 0
  %1762 = vmatpush2.bf16.msra.mxu0 0
  %1763 = vmatprep.subr.bf16.mxu0 0
  %1764 = vmatpush2.bf16.msra.mxu0 0
  %1765 = vmatprep.subr.bf16.mxu0 0
  %1766 = vmatpush2.bf16.msra.mxu0 0
  %1767 = vmatprep.subr.bf16.mxu0 0
  %1768 = vmatpush2.bf16.msra.mxu0 0
  %1769 = vmatprep.subr.bf16.mxu0 0
  %1770 = vmatpush2.bf16.msra.mxu0 0
  %1771 = vmatprep.mubr.bf16.mxu0 0
  %1772 = vmatmul.mubr.bf16.gmra.mxu0 %v1588
  %v1773 = vpop.f32.mrf.mxu0
  %v1774 = vadd.f32 %v1725, %v1773
  %v1775 = vpop.f32.mrf.mxu0
  %v1776 = vpop.f32.mrf.mxu0
  %v1777 = vadd.f32 %v1725, %v1776
  %v1778 = vpop.f32.mrf.mxu0
  %1779 = vmatprep.mubr.bf16.mxu0 0
  %1780 = vmatmul.mubr.bf16.gmra.mxu0 %v1591
  %v1781 = vpop.f32.mrf.mxu0
  %v1782 = vadd.f32 %v1725, %v1781
  %v1783 = vpop.f32.mrf.mxu0
  %v1784 = vpop.f32.mrf.mxu0
  %v1785 = vpop.f32.mrf.mxu0
  %1786 = vdwg.mxu0
  %v1787 = vpack.c.bf16 %v1631, %v1628
  %v1788 = vpack.c.bf16 %v1636, %v1636
  %v1789 = vpack.c.bf16 %v1704, %v1701
  %v1790 = vpack.c.bf16 %v1709, %v1709
  %v1792 = vsel %vm527, %v1787, 0
  %v1795 = vsel %vm527, %v1788, 0
  %v1798 = vsel %vm527, %v1789, 0
  %v1801 = vsel %vm527, %v1790, 0
  %1803 = vmatprep.subr.bf16.mxu0 0
  %1804 = vmatpush1.bf16.xpose.msra.mxu0 0
  %1805 = vmatprep.subr.bf16.mxu0 0
  %1806 = vmatpush1.bf16.xpose.msra.mxu0 0
  %1807 = vmatprep.subr.bf16.mxu0 0
  %1808 = vmatpush1.bf16.xpose.msra.mxu0 0
  %1809 = vmatprep.subr.bf16.mxu0 0
  %1810 = vmatpush1.bf16.xpose.msra.mxu0 0
  %1811 = vmatprep.subr.bf16.mxu0 0
  %1812 = vmatpush1.bf16.xpose.msra.mxu0 0
  %1813 = vmatprep.subr.bf16.mxu0 0
  %1814 = vmatpush1.bf16.xpose.msra.mxu0 0
  %1815 = vmatprep.subr.bf16.mxu0 0
  %1816 = vmatpush1.bf16.xpose.msra.mxu0 %v1801
  %1817 = vmatprep.subr.bf16.mxu0 0
  %1818 = vmatpush1.bf16.xpose.msra.mxu0 %v1798
  %1819 = vmatprep.subr.bf16.mxu0 0
  %1820 = vmatpush2.bf16.xpose.msra.mxu0 0
  %1821 = vmatprep.subr.bf16.mxu0 0
  %1822 = vmatpush2.bf16.xpose.msra.mxu0 0
  %1823 = vmatprep.subr.bf16.mxu0 0
  %1824 = vmatpush2.bf16.xpose.msra.mxu0 0
  %1825 = vmatprep.subr.bf16.mxu0 0
  %1826 = vmatpush2.bf16.xpose.msra.mxu0 0
  %1827 = vmatprep.subr.bf16.mxu0 0
  %1828 = vmatpush2.bf16.xpose.msra.mxu0 0
  %1829 = vmatprep.subr.bf16.mxu0 0
  %1830 = vmatpush2.bf16.xpose.msra.mxu0 0
  %1831 = vmatprep.subr.bf16.mxu0 0
  %1832 = vmatpush2.bf16.xpose.msra.mxu0 0
  %1833 = vmatprep.subr.bf16.mxu0 0
  %1834 = vmatpush2.bf16.xpose.msra.mxu0 0
  %1835 = vmatprep.mubr.bf16.mxu0 0
  %1836 = vmatmul.mubr.bf16.gmra.mxu0 %v1792
  %v1837 = vpop.f32.mrf.mxu0
  %v1838 = vadd.f32 %v253, %v1837
  %v1839 = vpop.f32.mrf.mxu0
  %v1840 = vpop.f32.mrf.mxu0
  %v1841 = vadd.f32 %v254, %v1840
  %v1842 = vpop.f32.mrf.mxu0
  %1843 = vmatprep.mubr.bf16.mxu0 0
  %1844 = vmatmul.mubr.bf16.gmra.mxu0 %v1795
  %v1845 = vpop.f32.mrf.mxu0
  %v1846 = vadd.f32 %v255, %v1845
  %v1847 = vpop.f32.mrf.mxu0
  %v1848 = vpop.f32.mrf.mxu0
  %v1849 = vpop.f32.mrf.mxu0
  %1850 = vdwg.mxu0
  %v1851 = vsel %vm588, %v1838, -inf
  %1852 = vmax.xlane.f32.xlu0 %v1851
  %v1853 = vpop.xlane.xlu0 %1852
  %v1854 = vsel %vm588, %v1841, -inf
  %1855 = vmax.xlane.f32.xlu0 %v1854
  %v1856 = vpop.xlane.xlu0 %1855
  %v1857 = vsel %vm595, %v1846, -inf
  %1858 = vmax.xlane.f32.xlu0 %v1857
  %v1859 = vpop.xlane.xlu0 %1858
  %v1860 = vsub.f32 %v1838, %v1853
  %v1861 = vsub.f32 %v1841, %v1856
  %v1862 = vsub.f32 %v1846, %v1859
  %v1863 = vmul.f32 %v1860, 1.442695
  %v1864 = vpow.pop %v1863
  %v1865 = vmul.f32 %v1861, 1.442695
  %v1866 = vpow.pop %v1865
  %v1867 = vmul.f32 %v1862, 1.442695
  %v1868 = vpow.pop %v1867
  %v1869 = vsel %vm588, %v1864, 0.0
  %1870 = vadd.xlane.f32.xlu0 %v1869
  %v1871 = vpop.xlane.xlu0 %1870
  %v1872 = vsel %vm588, %v1866, 0.0
  %1873 = vadd.xlane.f32.xlu0 %v1872
  %v1874 = vpop.xlane.xlu0 %1873
  %v1875 = vsel %vm595, %v1868, 0.0
  %1876 = vadd.xlane.f32.xlu0 %v1875
  %v1877 = vpop.xlane.xlu0 %1876
  %v1878 = vrcp.pop %v1871
  %v1879 = vmul.f32 %v1864, %v1878
  %v1880 = vrcp.pop %v1874
  %v1881 = vmul.f32 %v1866, %v1880
  %v1882 = vrcp.pop %v1877
  %v1883 = vmul.f32 %v1868, %v1882
  %v1884 = vpack.c.bf16 %v1881, %v1879
  %v1885 = vpack.c.bf16 %v1883, %v1883
  %v1886 = vpack.c.bf16 %v1777, %v1774
  %v1887 = vpack.c.bf16 %v1782, %v1782
  %v1889 = vsel %vm588, %v1884, 0
  %v1892 = vsel %vm588, %v1885, 0
  %v1895 = vsel %vm633, %v1887, 0
  %1897 = vmatprep.subr.bf16.mxu0 0
  %1898 = vmatpush1.bf16.msra.mxu0 0
  %1899 = vmatprep.subr.bf16.mxu0 0
  %1900 = vmatpush1.bf16.msra.mxu0 0
  %1901 = vmatprep.subr.bf16.mxu0 0
  %1902 = vmatpush1.bf16.msra.mxu0 0
  %1903 = vmatprep.subr.bf16.mxu0 0
  %1904 = vmatpush1.bf16.msra.mxu0 0
  %1905 = vmatprep.subr.bf16.mxu0 0
  %1906 = vmatpush1.bf16.msra.mxu0 0
  %1907 = vmatprep.subr.bf16.mxu0 0
  %1908 = vmatpush1.bf16.msra.mxu0 0
  %1909 = vmatprep.subr.bf16.mxu0 0
  %1910 = vmatpush1.bf16.msra.mxu0 %v1895
  %1911 = vmatprep.subr.bf16.mxu0 0
  %1912 = vmatpush1.bf16.msra.mxu0 %v1886
  %1913 = vmatprep.subr.bf16.mxu0 0
  %1914 = vmatpush2.bf16.msra.mxu0 0
  %1915 = vmatprep.subr.bf16.mxu0 0
  %1916 = vmatpush2.bf16.msra.mxu0 0
  %1917 = vmatprep.subr.bf16.mxu0 0
  %1918 = vmatpush2.bf16.msra.mxu0 0
  %1919 = vmatprep.subr.bf16.mxu0 0
  %1920 = vmatpush2.bf16.msra.mxu0 0
  %1921 = vmatprep.subr.bf16.mxu0 0
  %1922 = vmatpush2.bf16.msra.mxu0 0
  %1923 = vmatprep.subr.bf16.mxu0 0
  %1924 = vmatpush2.bf16.msra.mxu0 0
  %1925 = vmatprep.subr.bf16.mxu0 0
  %1926 = vmatpush2.bf16.msra.mxu0 0
  %1927 = vmatprep.subr.bf16.mxu0 0
  %1928 = vmatpush2.bf16.msra.mxu0 0
  %1929 = vmatprep.mubr.bf16.mxu0 0
  %1930 = vmatmul.mubr.bf16.gmra.mxu0 %v1889
  %v1931 = vpop.f32.mrf.mxu0
  %v1932 = vadd.f32 0.0, %v1931
  %v1933 = vpop.f32.mrf.mxu0
  %v1934 = vpop.f32.mrf.mxu0
  %v1935 = vadd.f32 0.0, %v1934
  %v1936 = vpop.f32.mrf.mxu0
  %1937 = vmatprep.mubr.bf16.mxu0 0
  %1938 = vmatmul.mubr.bf16.gmra.mxu0 %v1892
  %v1939 = vpop.f32.mrf.mxu0
  %v1940 = vadd.f32 0.0, %v1939
  %v1941 = vpop.f32.mrf.mxu0
  %v1942 = vpop.f32.mrf.mxu0
  %v1943 = vpop.f32.mrf.mxu0
  %1944 = vdwg.mxu0
  %v1945 = vpack.c.bf16 %v1935, %v1932
  %v1946 = vpack.c.bf16 %v1940, %v1940
  %s1947 = scalar_lea.vmem %s5, 16
  %v1948 = vld [vmem:[%s1947] sm:$0xf]
  %v1949 = vld [vmem:[%s1947 + $0x4] sm:$0xf]
  %s1950 = scalar_lea.vmem %s3, 112
  %v1951 = vld [vmem:[%s1950] sm:$0xf]
  %v1952 = vld [vmem:[%s1950 + $0x4] sm:$0xf]
  %v1953 = vld [vmem:[%s1950 + $0x8] sm:$0xf]
  %v1954 = vld [vmem:[%s1950 + $0xc] sm:$0xf]
  %s1955 = scalar_lea.vmem %s4, 7
  %v1956 = vld [vmem:[%s1955] sm:$0x1]
  %v1958 = vlaneseq
  %v1959 = vshrl.u32 %v1958, 7
  %v1960 = vsub.s32 0, %v1959
  %v1961 = vrot.slane %v1956, %v1960
  %v1967 = vunpack.c.l.b16 %v1951
  %v1968 = vunpack.c.l.b16 %v1952
  %v1969 = vunpack.c.l.b16 %v1953
  %v1970 = vunpack.c.l.b16 %v1954
  %v1971 = vpack.c.b16 %v1968, %v1967
  %v1972 = vpack.c.b16 %v1970, %v1969
  %1975 = vmatprep.subr.bf16.mxu0 0
  %1976 = vmatpush1.bf16.msra.mxu0 0
  %1977 = vmatprep.subr.bf16.mxu0 0
  %1978 = vmatpush1.bf16.msra.mxu0 0
  %1979 = vmatprep.subr.bf16.mxu0 0
  %1980 = vmatpush1.bf16.msra.mxu0 0
  %1981 = vmatprep.subr.bf16.mxu0 0
  %1982 = vmatpush1.bf16.msra.mxu0 0
  %1983 = vmatprep.subr.bf16.mxu0 0
  %1984 = vmatpush1.bf16.msra.mxu0 0
  %1985 = vmatprep.subr.bf16.mxu0 0
  %1986 = vmatpush1.bf16.msra.mxu0 0
  %1987 = vmatprep.subr.bf16.mxu0 0
  %1988 = vmatpush1.bf16.msra.mxu0 %v1972
  %1989 = vmatprep.subr.bf16.mxu0 0
  %1990 = vmatpush1.bf16.msra.mxu0 %v1971
  %1991 = vmatprep.subr.bf16.mxu0 0
  %1992 = vmatpush2.bf16.msra.mxu0 0
  %1993 = vmatprep.subr.bf16.mxu0 0
  %1994 = vmatpush2.bf16.msra.mxu0 0
  %1995 = vmatprep.subr.bf16.mxu0 0
  %1996 = vmatpush2.bf16.msra.mxu0 0
  %1997 = vmatprep.subr.bf16.mxu0 0
  %1998 = vmatpush2.bf16.msra.mxu0 0
  %1999 = vmatprep.subr.bf16.mxu0 0
  %2000 = vmatpush2.bf16.msra.mxu0 0
  %2001 = vmatprep.subr.bf16.mxu0 0
  %2002 = vmatpush2.bf16.msra.mxu0 0
  %2003 = vmatprep.subr.bf16.mxu0 0
  %2004 = vmatpush2.bf16.msra.mxu0 0
  %2005 = vmatprep.subr.bf16.mxu0 0
  %2006 = vmatpush2.bf16.msra.mxu0 0
  %2007 = vmatprep.mubr.bf16.mxu0 0
  %2008 = vmatmul.mubr.bf16.gmra.mxu0 %v1588
  %v2009 = vpop.f32.mrf.mxu0
  %v2010 = vadd.f32 %v1961, %v2009
  %v2011 = vpop.f32.mrf.mxu0
  %v2012 = vpop.f32.mrf.mxu0
  %v2013 = vadd.f32 %v1961, %v2012
  %v2014 = vpop.f32.mrf.mxu0
  %2015 = vmatprep.mubr.bf16.mxu0 0
  %2016 = vmatmul.mubr.bf16.gmra.mxu0 %v1591
  %v2017 = vpop.f32.mrf.mxu0
  %v2018 = vadd.f32 %v1961, %v2017
  %v2019 = vpop.f32.mrf.mxu0
  %v2020 = vpop.f32.mrf.mxu0
  %v2021 = vpop.f32.mrf.mxu0
  %2022 = vdwg.mxu0
  %s2023 = scalar_lea.vmem %s3, 144
  %v2024 = vld [vmem:[%s2023] sm:$0xf]
  %v2025 = vld [vmem:[%s2023 + $0x4] sm:$0xf]
  %v2026 = vld [vmem:[%s2023 + $0x8] sm:$0xf]
  %v2027 = vld [vmem:[%s2023 + $0xc] sm:$0xf]
  %s2028 = scalar_lea.vmem %s4, 9
  %v2029 = vld [vmem:[%s2028] sm:$0x1]
  %v2031 = vlaneseq
  %v2032 = vshrl.u32 %v2031, 7
  %v2033 = vsub.s32 0, %v2032
  %v2034 = vrot.slane %v2029, %v2033
  %v2040 = vunpack.c.l.b16 %v2024
  %v2041 = vunpack.c.l.b16 %v2025
  %v2042 = vunpack.c.l.b16 %v2026
  %v2043 = vunpack.c.l.b16 %v2027
  %v2044 = vpack.c.b16 %v2041, %v2040
  %v2045 = vpack.c.b16 %v2043, %v2042
  %2048 = vmatprep.subr.bf16.mxu0 0
  %2049 = vmatpush1.bf16.msra.mxu0 0
  %2050 = vmatprep.subr.bf16.mxu0 0
  %2051 = vmatpush1.bf16.msra.mxu0 0
  %2052 = vmatprep.subr.bf16.mxu0 0
  %2053 = vmatpush1.bf16.msra.mxu0 0
  %2054 = vmatprep.subr.bf16.mxu0 0
  %2055 = vmatpush1.bf16.msra.mxu0 0
  %2056 = vmatprep.subr.bf16.mxu0 0
  %2057 = vmatpush1.bf16.msra.mxu0 0
  %2058 = vmatprep.subr.bf16.mxu0 0
  %2059 = vmatpush1.bf16.msra.mxu0 0
  %2060 = vmatprep.subr.bf16.mxu0 0
  %2061 = vmatpush1.bf16.msra.mxu0 %v2045
  %2062 = vmatprep.subr.bf16.mxu0 0
  %2063 = vmatpush1.bf16.msra.mxu0 %v2044
  %2064 = vmatprep.subr.bf16.mxu0 0
  %2065 = vmatpush2.bf16.msra.mxu0 0
  %2066 = vmatprep.subr.bf16.mxu0 0
  %2067 = vmatpush2.bf16.msra.mxu0 0
  %2068 = vmatprep.subr.bf16.mxu0 0
  %2069 = vmatpush2.bf16.msra.mxu0 0
  %2070 = vmatprep.subr.bf16.mxu0 0
  %2071 = vmatpush2.bf16.msra.mxu0 0
  %2072 = vmatprep.subr.bf16.mxu0 0
  %2073 = vmatpush2.bf16.msra.mxu0 0
  %2074 = vmatprep.subr.bf16.mxu0 0
  %2075 = vmatpush2.bf16.msra.mxu0 0
  %2076 = vmatprep.subr.bf16.mxu0 0
  %2077 = vmatpush2.bf16.msra.mxu0 0
  %2078 = vmatprep.subr.bf16.mxu0 0
  %2079 = vmatpush2.bf16.msra.mxu0 0
  %2080 = vmatprep.mubr.bf16.mxu0 0
  %2081 = vmatmul.mubr.bf16.gmra.mxu0 %v1588
  %v2082 = vpop.f32.mrf.mxu0
  %v2083 = vadd.f32 %v2034, %v2082
  %v2084 = vpop.f32.mrf.mxu0
  %v2085 = vpop.f32.mrf.mxu0
  %v2086 = vadd.f32 %v2034, %v2085
  %v2087 = vpop.f32.mrf.mxu0
  %2088 = vmatprep.mubr.bf16.mxu0 0
  %2089 = vmatmul.mubr.bf16.gmra.mxu0 %v1591
  %v2090 = vpop.f32.mrf.mxu0
  %v2091 = vadd.f32 %v2034, %v2090
  %v2092 = vpop.f32.mrf.mxu0
  %v2093 = vpop.f32.mrf.mxu0
  %v2094 = vpop.f32.mrf.mxu0
  %2095 = vdwg.mxu0
  %s2096 = scalar_lea.vmem %s3, 176
  %v2097 = vld [vmem:[%s2096] sm:$0xf]
  %v2098 = vld [vmem:[%s2096 + $0x4] sm:$0xf]
  %v2099 = vld [vmem:[%s2096 + $0x8] sm:$0xf]
  %v2100 = vld [vmem:[%s2096 + $0xc] sm:$0xf]
  %s2101 = scalar_lea.vmem %s4, 11
  %v2102 = vld [vmem:[%s2101] sm:$0x1]
  %v2104 = vlaneseq
  %v2105 = vshrl.u32 %v2104, 7
  %v2106 = vsub.s32 0, %v2105
  %v2107 = vrot.slane %v2102, %v2106
  %v2113 = vunpack.c.l.b16 %v2097
  %v2114 = vunpack.c.l.b16 %v2098
  %v2115 = vunpack.c.l.b16 %v2099
  %v2116 = vunpack.c.l.b16 %v2100
  %v2117 = vpack.c.b16 %v2114, %v2113
  %v2118 = vpack.c.b16 %v2116, %v2115
  %2121 = vmatprep.subr.bf16.mxu0 0
  %2122 = vmatpush1.bf16.msra.mxu0 0
  %2123 = vmatprep.subr.bf16.mxu0 0
  %2124 = vmatpush1.bf16.msra.mxu0 0
  %2125 = vmatprep.subr.bf16.mxu0 0
  %2126 = vmatpush1.bf16.msra.mxu0 0
  %2127 = vmatprep.subr.bf16.mxu0 0
  %2128 = vmatpush1.bf16.msra.mxu0 0
  %2129 = vmatprep.subr.bf16.mxu0 0
  %2130 = vmatpush1.bf16.msra.mxu0 0
  %2131 = vmatprep.subr.bf16.mxu0 0
  %2132 = vmatpush1.bf16.msra.mxu0 0
  %2133 = vmatprep.subr.bf16.mxu0 0
  %2134 = vmatpush1.bf16.msra.mxu0 %v2118
  %2135 = vmatprep.subr.bf16.mxu0 0
  %2136 = vmatpush1.bf16.msra.mxu0 %v2117
  %2137 = vmatprep.subr.bf16.mxu0 0
  %2138 = vmatpush2.bf16.msra.mxu0 0
  %2139 = vmatprep.subr.bf16.mxu0 0
  %2140 = vmatpush2.bf16.msra.mxu0 0
  %2141 = vmatprep.subr.bf16.mxu0 0
  %2142 = vmatpush2.bf16.msra.mxu0 0
  %2143 = vmatprep.subr.bf16.mxu0 0
  %2144 = vmatpush2.bf16.msra.mxu0 0
  %2145 = vmatprep.subr.bf16.mxu0 0
  %2146 = vmatpush2.bf16.msra.mxu0 0
  %2147 = vmatprep.subr.bf16.mxu0 0
  %2148 = vmatpush2.bf16.msra.mxu0 0
  %2149 = vmatprep.subr.bf16.mxu0 0
  %2150 = vmatpush2.bf16.msra.mxu0 0
  %2151 = vmatprep.subr.bf16.mxu0 0
  %2152 = vmatpush2.bf16.msra.mxu0 0
  %2153 = vmatprep.mubr.bf16.mxu0 0
  %2154 = vmatmul.mubr.bf16.gmra.mxu0 %v1588
  %v2155 = vpop.f32.mrf.mxu0
  %v2156 = vadd.f32 %v2107, %v2155
  %v2157 = vpop.f32.mrf.mxu0
  %v2158 = vpop.f32.mrf.mxu0
  %v2159 = vadd.f32 %v2107, %v2158
  %v2160 = vpop.f32.mrf.mxu0
  %2161 = vmatprep.mubr.bf16.mxu0 0
  %2162 = vmatmul.mubr.bf16.gmra.mxu0 %v1591
  %v2163 = vpop.f32.mrf.mxu0
  %v2164 = vadd.f32 %v2107, %v2163
  %v2165 = vpop.f32.mrf.mxu0
  %v2166 = vpop.f32.mrf.mxu0
  %v2167 = vpop.f32.mrf.mxu0
  %2168 = vdwg.mxu0
  %v2169 = vpack.c.bf16 %v2013, %v2010
  %v2170 = vpack.c.bf16 %v2018, %v2018
  %v2171 = vpack.c.bf16 %v2086, %v2083
  %v2172 = vpack.c.bf16 %v2091, %v2091
  %v2174 = vsel %vm527, %v2169, 0
  %v2177 = vsel %vm527, %v2170, 0
  %v2180 = vsel %vm527, %v2171, 0
  %v2183 = vsel %vm527, %v2172, 0
  %2185 = vmatprep.subr.bf16.mxu0 0
  %2186 = vmatpush1.bf16.xpose.msra.mxu0 0
  %2187 = vmatprep.subr.bf16.mxu0 0
  %2188 = vmatpush1.bf16.xpose.msra.mxu0 0
  %2189 = vmatprep.subr.bf16.mxu0 0
  %2190 = vmatpush1.bf16.xpose.msra.mxu0 0
  %2191 = vmatprep.subr.bf16.mxu0 0
  %2192 = vmatpush1.bf16.xpose.msra.mxu0 0
  %2193 = vmatprep.subr.bf16.mxu0 0
  %2194 = vmatpush1.bf16.xpose.msra.mxu0 0
  %2195 = vmatprep.subr.bf16.mxu0 0
  %2196 = vmatpush1.bf16.xpose.msra.mxu0 0
  %2197 = vmatprep.subr.bf16.mxu0 0
  %2198 = vmatpush1.bf16.xpose.msra.mxu0 %v2183
  %2199 = vmatprep.subr.bf16.mxu0 0
  %2200 = vmatpush1.bf16.xpose.msra.mxu0 %v2180
  %2201 = vmatprep.subr.bf16.mxu0 0
  %2202 = vmatpush2.bf16.xpose.msra.mxu0 0
  %2203 = vmatprep.subr.bf16.mxu0 0
  %2204 = vmatpush2.bf16.xpose.msra.mxu0 0
  %2205 = vmatprep.subr.bf16.mxu0 0
  %2206 = vmatpush2.bf16.xpose.msra.mxu0 0
  %2207 = vmatprep.subr.bf16.mxu0 0
  %2208 = vmatpush2.bf16.xpose.msra.mxu0 0
  %2209 = vmatprep.subr.bf16.mxu0 0
  %2210 = vmatpush2.bf16.xpose.msra.mxu0 0
  %2211 = vmatprep.subr.bf16.mxu0 0
  %2212 = vmatpush2.bf16.xpose.msra.mxu0 0
  %2213 = vmatprep.subr.bf16.mxu0 0
  %2214 = vmatpush2.bf16.xpose.msra.mxu0 0
  %2215 = vmatprep.subr.bf16.mxu0 0
  %2216 = vmatpush2.bf16.xpose.msra.mxu0 0
  %2217 = vmatprep.mubr.bf16.mxu0 0
  %2218 = vmatmul.mubr.bf16.gmra.mxu0 %v2174
  %v2219 = vpop.f32.mrf.mxu0
  %v2220 = vadd.f32 %v253, %v2219
  %v2221 = vpop.f32.mrf.mxu0
  %v2222 = vpop.f32.mrf.mxu0
  %v2223 = vadd.f32 %v254, %v2222
  %v2224 = vpop.f32.mrf.mxu0
  %2225 = vmatprep.mubr.bf16.mxu0 0
  %2226 = vmatmul.mubr.bf16.gmra.mxu0 %v2177
  %v2227 = vpop.f32.mrf.mxu0
  %v2228 = vadd.f32 %v255, %v2227
  %v2229 = vpop.f32.mrf.mxu0
  %v2230 = vpop.f32.mrf.mxu0
  %v2231 = vpop.f32.mrf.mxu0
  %2232 = vdwg.mxu0
  %v2233 = vsel %vm588, %v2220, -inf
  %2234 = vmax.xlane.f32.xlu0 %v2233
  %v2235 = vpop.xlane.xlu0 %2234
  %v2236 = vsel %vm588, %v2223, -inf
  %2237 = vmax.xlane.f32.xlu0 %v2236
  %v2238 = vpop.xlane.xlu0 %2237
  %v2239 = vsel %vm595, %v2228, -inf
  %2240 = vmax.xlane.f32.xlu0 %v2239
  %v2241 = vpop.xlane.xlu0 %2240
  %v2242 = vsub.f32 %v2220, %v2235
  %v2243 = vsub.f32 %v2223, %v2238
  %v2244 = vsub.f32 %v2228, %v2241
  %v2245 = vmul.f32 %v2242, 1.442695
  %v2246 = vpow.pop %v2245
  %v2247 = vmul.f32 %v2243, 1.442695
  %v2248 = vpow.pop %v2247
  %v2249 = vmul.f32 %v2244, 1.442695
  %v2250 = vpow.pop %v2249
  %v2251 = vsel %vm588, %v2246, 0.0
  %2252 = vadd.xlane.f32.xlu0 %v2251
  %v2253 = vpop.xlane.xlu0 %2252
  %v2254 = vsel %vm588, %v2248, 0.0
  %2255 = vadd.xlane.f32.xlu0 %v2254
  %v2256 = vpop.xlane.xlu0 %2255
  %v2257 = vsel %vm595, %v2250, 0.0
  %2258 = vadd.xlane.f32.xlu0 %v2257
  %v2259 = vpop.xlane.xlu0 %2258
  %v2260 = vrcp.pop %v2253
  %v2261 = vmul.f32 %v2246, %v2260
  %v2262 = vrcp.pop %v2256
  %v2263 = vmul.f32 %v2248, %v2262
  %v2264 = vrcp.pop %v2259
  %v2265 = vmul.f32 %v2250, %v2264
  %v2266 = vpack.c.bf16 %v2263, %v2261
  %v2267 = vpack.c.bf16 %v2265, %v2265
  %v2268 = vpack.c.bf16 %v2159, %v2156
  %v2269 = vpack.c.bf16 %v2164, %v2164
  %v2271 = vsel %vm588, %v2266, 0
  %v2274 = vsel %vm588, %v2267, 0
  %v2277 = vsel %vm633, %v2269, 0
  %2279 = vmatprep.subr.bf16.mxu0 0
  %2280 = vmatpush1.bf16.msra.mxu0 0
  %2281 = vmatprep.subr.bf16.mxu0 0
  %2282 = vmatpush1.bf16.msra.mxu0 0
  %2283 = vmatprep.subr.bf16.mxu0 0
  %2284 = vmatpush1.bf16.msra.mxu0 0
  %2285 = vmatprep.subr.bf16.mxu0 0
  %2286 = vmatpush1.bf16.msra.mxu0 0
  %2287 = vmatprep.subr.bf16.mxu0 0
  %2288 = vmatpush1.bf16.msra.mxu0 0
  %2289 = vmatprep.subr.bf16.mxu0 0
  %2290 = vmatpush1.bf16.msra.mxu0 0
  %2291 = vmatprep.subr.bf16.mxu0 0
  %2292 = vmatpush1.bf16.msra.mxu0 %v2277
  %2293 = vmatprep.subr.bf16.mxu0 0
  %2294 = vmatpush1.bf16.msra.mxu0 %v2268
  %2295 = vmatprep.subr.bf16.mxu0 0
  %2296 = vmatpush2.bf16.msra.mxu0 0
  %2297 = vmatprep.subr.bf16.mxu0 0
  %2298 = vmatpush2.bf16.msra.mxu0 0
  %2299 = vmatprep.subr.bf16.mxu0 0
  %2300 = vmatpush2.bf16.msra.mxu0 0
  %2301 = vmatprep.subr.bf16.mxu0 0
  %2302 = vmatpush2.bf16.msra.mxu0 0
  %2303 = vmatprep.subr.bf16.mxu0 0
  %2304 = vmatpush2.bf16.msra.mxu0 0
  %2305 = vmatprep.subr.bf16.mxu0 0
  %2306 = vmatpush2.bf16.msra.mxu0 0
  %2307 = vmatprep.subr.bf16.mxu0 0
  %2308 = vmatpush2.bf16.msra.mxu0 0
  %2309 = vmatprep.subr.bf16.mxu0 0
  %2310 = vmatpush2.bf16.msra.mxu0 0
  %2311 = vmatprep.mubr.bf16.mxu0 0
  %2312 = vmatmul.mubr.bf16.gmra.mxu0 %v2271
  %v2313 = vpop.f32.mrf.mxu0
  %v2314 = vadd.f32 0.0, %v2313
  %v2315 = vpop.f32.mrf.mxu0
  %v2316 = vpop.f32.mrf.mxu0
  %v2317 = vadd.f32 0.0, %v2316
  %v2318 = vpop.f32.mrf.mxu0
  %2319 = vmatprep.mubr.bf16.mxu0 0
  %2320 = vmatmul.mubr.bf16.gmra.mxu0 %v2274
  %v2321 = vpop.f32.mrf.mxu0
  %v2322 = vadd.f32 0.0, %v2321
  %v2323 = vpop.f32.mrf.mxu0
  %v2324 = vpop.f32.mrf.mxu0
  %v2325 = vpop.f32.mrf.mxu0
  %2326 = vdwg.mxu0
  %v2327 = vpack.c.bf16 %v2317, %v2314
  %v2328 = vpack.c.bf16 %v2322, %v2322
  %s2329 = scalar_lea.vmem %s5, 24
  %v2330 = vld [vmem:[%s2329] sm:$0xf]
  %v2331 = vld [vmem:[%s2329 + $0x4] sm:$0xf]
  %v2334 = vunpack.c.l.b16 %v2330
  %v2335 = vunpack.c.l.b16 %v2331
  %v2336 = vpack.c.b16 %v2335, %v2334
  %v2339 = vsel %vm527, %v2327, 0
  %v2342 = vsel %vm527, %v2328, 0
  %2344 = vmatprep.subr.bf16.mxu0 0
  %2345 = vmatpush1.bf16.msra.mxu0 0
  %2346 = vmatprep.subr.bf16.mxu0 0
  %2347 = vmatpush1.bf16.msra.mxu0 0
  %2348 = vmatprep.subr.bf16.mxu0 0
  %2349 = vmatpush1.bf16.msra.mxu0 0
  %2350 = vmatprep.subr.bf16.mxu0 0
  %2351 = vmatpush1.bf16.msra.mxu0 0
  %2352 = vmatprep.subr.bf16.mxu0 0
  %2353 = vmatpush1.bf16.msra.mxu0 0
  %2354 = vmatprep.subr.bf16.mxu0 0
  %2355 = vmatpush1.bf16.msra.mxu0 0
  %2356 = vmatprep.subr.bf16.mxu0 0
  %2357 = vmatpush1.bf16.msra.mxu0 0
  %2358 = vmatprep.subr.bf16.mxu0 0
  %2359 = vmatpush1.bf16.msra.mxu0 %v2336
  %2360 = vmatprep.subr.bf16.mxu0 0
  %2361 = vmatpush2.bf16.msra.mxu0 0
  %2362 = vmatprep.subr.bf16.mxu0 0
  %2363 = vmatpush2.bf16.msra.mxu0 0
  %2364 = vmatprep.subr.bf16.mxu0 0
  %2365 = vmatpush2.bf16.msra.mxu0 0
  %2366 = vmatprep.subr.bf16.mxu0 0
  %2367 = vmatpush2.bf16.msra.mxu0 0
  %2368 = vmatprep.subr.bf16.mxu0 0
  %2369 = vmatpush2.bf16.msra.mxu0 0
  %2370 = vmatprep.subr.bf16.mxu0 0
  %2371 = vmatpush2.bf16.msra.mxu0 0
  %2372 = vmatprep.subr.bf16.mxu0 0
  %2373 = vmatpush2.bf16.msra.mxu0 0
  %2374 = vmatprep.subr.bf16.mxu0 0
  %2375 = vmatpush2.bf16.msra.mxu0 0
  %2376 = vmatprep.mubr.bf16.mxu0 0
  %2377 = vmatmul.mubr.bf16.gmra.mxu0 %v2339
  %v2378 = vpop.f32.mrf.mxu0
  %v2379 = vadd.f32 0.0, %v2378
  %v2380 = vpop.f32.mrf.mxu0
  %v2381 = vpop.f32.mrf.mxu0
  %v2382 = vadd.f32 0.0, %v2381
  %v2383 = vpop.f32.mrf.mxu0
  %2384 = vmatprep.mubr.bf16.mxu0 0
  %2385 = vmatmul.mubr.bf16.gmra.mxu0 %v2342
  %v2386 = vpop.f32.mrf.mxu0
  %v2387 = vadd.f32 0.0, %v2386
  %v2388 = vpop.f32.mrf.mxu0
  %v2389 = vpop.f32.mrf.mxu0
  %v2390 = vpop.f32.mrf.mxu0
  %2391 = vdwg.mxu0
  %v2394 = vunpack.c.l.b16 %v1948
  %v2395 = vunpack.c.l.b16 %v1949
  %v2396 = vpack.c.b16 %v2395, %v2394
  %v2399 = vsel %vm527, %v1945, 0
  %v2402 = vsel %vm527, %v1946, 0
  %2404 = vmatprep.subr.bf16.mxu0 0
  %2405 = vmatpush1.bf16.msra.mxu0 0
  %2406 = vmatprep.subr.bf16.mxu0 0
  %2407 = vmatpush1.bf16.msra.mxu0 0
  %2408 = vmatprep.subr.bf16.mxu0 0
  %2409 = vmatpush1.bf16.msra.mxu0 0
  %2410 = vmatprep.subr.bf16.mxu0 0
  %2411 = vmatpush1.bf16.msra.mxu0 0
  %2412 = vmatprep.subr.bf16.mxu0 0
  %2413 = vmatpush1.bf16.msra.mxu0 0
  %2414 = vmatprep.subr.bf16.mxu0 0
  %2415 = vmatpush1.bf16.msra.mxu0 0
  %2416 = vmatprep.subr.bf16.mxu0 0
  %2417 = vmatpush1.bf16.msra.mxu0 0
  %2418 = vmatprep.subr.bf16.mxu0 0
  %2419 = vmatpush1.bf16.msra.mxu0 %v2396
  %2420 = vmatprep.subr.bf16.mxu0 0
  %2421 = vmatpush2.bf16.msra.mxu0 0
  %2422 = vmatprep.subr.bf16.mxu0 0
  %2423 = vmatpush2.bf16.msra.mxu0 0
  %2424 = vmatprep.subr.bf16.mxu0 0
  %2425 = vmatpush2.bf16.msra.mxu0 0
  %2426 = vmatprep.subr.bf16.mxu0 0
  %2427 = vmatpush2.bf16.msra.mxu0 0
  %2428 = vmatprep.subr.bf16.mxu0 0
  %2429 = vmatpush2.bf16.msra.mxu0 0
  %2430 = vmatprep.subr.bf16.mxu0 0
  %2431 = vmatpush2.bf16.msra.mxu0 0
  %2432 = vmatprep.subr.bf16.mxu0 0
  %2433 = vmatpush2.bf16.msra.mxu0 0
  %2434 = vmatprep.subr.bf16.mxu0 0
  %2435 = vmatpush2.bf16.msra.mxu0 0
  %2436 = vmatprep.mubr.bf16.mxu0 0
  %2437 = vmatmul.mubr.bf16.gmra.mxu0 %v2399
  %v2438 = vpop.f32.mrf.mxu0
  %v2439 = vadd.f32 %v2379, %v2438
  %v2440 = vpop.f32.mrf.mxu0
  %v2441 = vpop.f32.mrf.mxu0
  %v2442 = vadd.f32 %v2382, %v2441
  %v2443 = vpop.f32.mrf.mxu0
  %2444 = vmatprep.mubr.bf16.mxu0 0
  %2445 = vmatmul.mubr.bf16.gmra.mxu0 %v2402
  %v2446 = vpop.f32.mrf.mxu0
  %v2447 = vadd.f32 %v2387, %v2446
  %v2448 = vpop.f32.mrf.mxu0
  %v2449 = vpop.f32.mrf.mxu0
  %v2450 = vpop.f32.mrf.mxu0
  %2451 = vdwg.mxu0
  %v2452 = vadd.f32 %v1518, %v2439
  %v2453 = vadd.f32 %v1519, %v2442
  %v2454 = vadd.f32 %v1520, %v2447
  %s2455 = scalar_lea.vmem %s6, 2
  %v2456 = vld [vmem:[%s2455] sm:$0x1]
  %v2458 = vlaneseq
  %v2459 = vshrl.u32 %v2458, 7
  %v2460 = vsub.s32 0, %v2459
  %v2461 = vrot.slane %v2456, %v2460
  %v2463 = vadd.f32 %v2452, %v2461
  %v2464 = vadd.f32 %v2453, %v2461
  %v2465 = vadd.f32 %v2454, %v2461
  %v2466 = vsel %vm256, %v2463, 0.0
  %2467 = vadd.xlane.f32.xlu0 %v2466
  %v2468 = vpop.xlane.xlu0 %2467
  %v2469 = vsel %vm256, %v2464, 0.0
  %2470 = vadd.xlane.f32.xlu0 %v2469
  %v2471 = vpop.xlane.xlu0 %2470
  %v2472 = vsel %vm263, %v2465, 0.0
  %2473 = vadd.xlane.f32.xlu0 %v2472
  %v2474 = vpop.xlane.xlu0 %2473
  %v2475 = vmul.f32 %v2468, %v267
  %v2476 = vmul.f32 %v2471, %v267
  %v2477 = vmul.f32 %v2474, %v267
  %v2478 = vsub.f32 %v2463, %v2475
  %v2479 = vsub.f32 %v2464, %v2476
  %v2480 = vsub.f32 %v2465, %v2477
  %v2481 = vmul.f32 %v2478, %v2478
  %v2482 = vmul.f32 %v2479, %v2479
  %v2483 = vmul.f32 %v2480, %v2480
  %v2484 = vsel %vm256, %v2481, 0.0
  %2485 = vadd.xlane.f32.xlu0 %v2484
  %v2486 = vpop.xlane.xlu0 %2485
  %v2487 = vsel %vm256, %v2482, 0.0
  %2488 = vadd.xlane.f32.xlu0 %v2487
  %v2489 = vpop.xlane.xlu0 %2488
  %v2490 = vsel %vm263, %v2483, 0.0
  %2491 = vadd.xlane.f32.xlu0 %v2490
  %v2492 = vpop.xlane.xlu0 %2491
  %v2493 = vmul.f32 %v2486, %v267
  %v2494 = vmul.f32 %v2489, %v267
  %v2495 = vmul.f32 %v2492, %v267
  %v2496 = vadd.f32 %v2493, 1e-06
  %v2497 = vadd.f32 %v2494, 1e-06
  %v2498 = vadd.f32 %v2495, 1e-06
  %v2499 = vrsqrt.pop %v2496
  %v2500 = vrsqrt.pop %v2497
  %v2501 = vrsqrt.pop %v2498
  %v2502 = vmul.f32 %v2478, %v2499
  %v2503 = vmul.f32 %v2479, %v2500
  %v2504 = vmul.f32 %v2480, %v2501
  %v2505 = vpack.c.bf16 %v2503, %v2502
  %v2506 = vpack.c.bf16 %v2504, %v2504
  %s2507 = scalar_lea.vmem %s7, 32
  %v2508 = vld [vmem:[%s2507] sm:$0xf]
  %v2509 = vld [vmem:[%s2507 + $0x4] sm:$0xf]
  %v2510 = vld [vmem:[%s2507 + $0x8] sm:$0xf]
  %v2511 = vld [vmem:[%s2507 + $0xc] sm:$0xf]
  %s2512 = scalar_lea.vmem %s8, 2
  %v2513 = vld [vmem:[%s2512] sm:$0x1]
  %v2515 = vlaneseq
  %v2516 = vshrl.u32 %v2515, 7
  %v2517 = vsub.s32 0, %v2516
  %v2518 = vrot.slane %v2513, %v2517
  %v2524 = vunpack.c.l.b16 %v2508
  %v2525 = vunpack.c.l.b16 %v2509
  %v2526 = vunpack.c.l.b16 %v2510
  %v2527 = vunpack.c.l.b16 %v2511
  %v2528 = vpack.c.b16 %v2525, %v2524
  %v2529 = vpack.c.b16 %v2527, %v2526
  %v2533 = vsel %vm256, %v2505, 0
  %v2536 = vsel %vm256, %v2506, 0
  %2538 = vmatprep.subr.bf16.mxu0 0
  %2539 = vmatpush1.bf16.msra.mxu0 0
  %2540 = vmatprep.subr.bf16.mxu0 0
  %2541 = vmatpush1.bf16.msra.mxu0 0
  %2542 = vmatprep.subr.bf16.mxu0 0
  %2543 = vmatpush1.bf16.msra.mxu0 0
  %2544 = vmatprep.subr.bf16.mxu0 0
  %2545 = vmatpush1.bf16.msra.mxu0 0
  %2546 = vmatprep.subr.bf16.mxu0 0
  %2547 = vmatpush1.bf16.msra.mxu0 0
  %2548 = vmatprep.subr.bf16.mxu0 0
  %2549 = vmatpush1.bf16.msra.mxu0 0
  %2550 = vmatprep.subr.bf16.mxu0 0
  %2551 = vmatpush1.bf16.msra.mxu0 %v2529
  %2552 = vmatprep.subr.bf16.mxu0 0
  %2553 = vmatpush1.bf16.msra.mxu0 %v2528
  %2554 = vmatprep.subr.bf16.mxu0 0
  %2555 = vmatpush2.bf16.msra.mxu0 0
  %2556 = vmatprep.subr.bf16.mxu0 0
  %2557 = vmatpush2.bf16.msra.mxu0 0
  %2558 = vmatprep.subr.bf16.mxu0 0
  %2559 = vmatpush2.bf16.msra.mxu0 0
  %2560 = vmatprep.subr.bf16.mxu0 0
  %2561 = vmatpush2.bf16.msra.mxu0 0
  %2562 = vmatprep.subr.bf16.mxu0 0
  %2563 = vmatpush2.bf16.msra.mxu0 0
  %2564 = vmatprep.subr.bf16.mxu0 0
  %2565 = vmatpush2.bf16.msra.mxu0 0
  %2566 = vmatprep.subr.bf16.mxu0 0
  %2567 = vmatpush2.bf16.msra.mxu0 0
  %2568 = vmatprep.subr.bf16.mxu0 0
  %2569 = vmatpush2.bf16.msra.mxu0 0
  %2570 = vmatprep.mubr.bf16.mxu0 0
  %2571 = vmatmul.mubr.bf16.gmra.mxu0 %v2533
  %v2572 = vpop.f32.mrf.mxu0
  %v2573 = vadd.f32 %v2518, %v2572
  %v2574 = vpop.f32.mrf.mxu0
  %v2575 = vpop.f32.mrf.mxu0
  %v2576 = vadd.f32 %v2518, %v2575
  %v2577 = vpop.f32.mrf.mxu0
  %2578 = vmatprep.mubr.bf16.mxu0 0
  %2579 = vmatmul.mubr.bf16.gmra.mxu0 %v2536
  %v2580 = vpop.f32.mrf.mxu0
  %v2581 = vadd.f32 %v2518, %v2580
  %v2582 = vpop.f32.mrf.mxu0
  %v2583 = vpop.f32.mrf.mxu0
  %v2584 = vpop.f32.mrf.mxu0
  %2585 = vdwg.mxu0
  %s2586 = scalar_lea.vmem %s7, 48
  %v2587 = vld [vmem:[%s2586] sm:$0xf]
  %v2588 = vld [vmem:[%s2586 + $0x4] sm:$0xf]
  %v2589 = vld [vmem:[%s2586 + $0x8] sm:$0xf]
  %v2590 = vld [vmem:[%s2586 + $0xc] sm:$0xf]
  %s2591 = scalar_lea.vmem %s8, 3
  %v2592 = vld [vmem:[%s2591] sm:$0x1]
  %v2594 = vlaneseq
  %v2595 = vshrl.u32 %v2594, 7
  %v2596 = vsub.s32 0, %v2595
  %v2597 = vrot.slane %v2592, %v2596
  %v2603 = vunpack.c.l.b16 %v2587
  %v2604 = vunpack.c.l.b16 %v2588
  %v2605 = vunpack.c.l.b16 %v2589
  %v2606 = vunpack.c.l.b16 %v2590
  %v2607 = vpack.c.b16 %v2604, %v2603
  %v2608 = vpack.c.b16 %v2606, %v2605
  %2611 = vmatprep.subr.bf16.mxu0 0
  %2612 = vmatpush1.bf16.msra.mxu0 0
  %2613 = vmatprep.subr.bf16.mxu0 0
  %2614 = vmatpush1.bf16.msra.mxu0 0
  %2615 = vmatprep.subr.bf16.mxu0 0
  %2616 = vmatpush1.bf16.msra.mxu0 0
  %2617 = vmatprep.subr.bf16.mxu0 0
  %2618 = vmatpush1.bf16.msra.mxu0 0
  %2619 = vmatprep.subr.bf16.mxu0 0
  %2620 = vmatpush1.bf16.msra.mxu0 0
  %2621 = vmatprep.subr.bf16.mxu0 0
  %2622 = vmatpush1.bf16.msra.mxu0 0
  %2623 = vmatprep.subr.bf16.mxu0 0
  %2624 = vmatpush1.bf16.msra.mxu0 %v2608
  %2625 = vmatprep.subr.bf16.mxu0 0
  %2626 = vmatpush1.bf16.msra.mxu0 %v2607
  %2627 = vmatprep.subr.bf16.mxu0 0
  %2628 = vmatpush2.bf16.msra.mxu0 0
  %2629 = vmatprep.subr.bf16.mxu0 0
  %2630 = vmatpush2.bf16.msra.mxu0 0
  %2631 = vmatprep.subr.bf16.mxu0 0
  %2632 = vmatpush2.bf16.msra.mxu0 0
  %2633 = vmatprep.subr.bf16.mxu0 0
  %2634 = vmatpush2.bf16.msra.mxu0 0
  %2635 = vmatprep.subr.bf16.mxu0 0
  %2636 = vmatpush2.bf16.msra.mxu0 0
  %2637 = vmatprep.subr.bf16.mxu0 0
  %2638 = vmatpush2.bf16.msra.mxu0 0
  %2639 = vmatprep.subr.bf16.mxu0 0
  %2640 = vmatpush2.bf16.msra.mxu0 0
  %2641 = vmatprep.subr.bf16.mxu0 0
  %2642 = vmatpush2.bf16.msra.mxu0 0
  %2643 = vmatprep.mubr.bf16.mxu0 0
  %2644 = vmatmul.mubr.bf16.gmra.mxu0 %v2533
  %v2645 = vpop.f32.mrf.mxu0
  %v2646 = vadd.f32 %v2597, %v2645
  %v2647 = vpop.f32.mrf.mxu0
  %v2648 = vpop.f32.mrf.mxu0
  %v2649 = vadd.f32 %v2597, %v2648
  %v2650 = vpop.f32.mrf.mxu0
  %2651 = vmatprep.mubr.bf16.mxu0 0
  %2652 = vmatmul.mubr.bf16.gmra.mxu0 %v2536
  %v2653 = vpop.f32.mrf.mxu0
  %v2654 = vadd.f32 %v2597, %v2653
  %v2655 = vpop.f32.mrf.mxu0
  %v2656 = vpop.f32.mrf.mxu0
  %v2657 = vpop.f32.mrf.mxu0
  %2658 = vdwg.mxu0
  %v2659 = vxor.u32 %v2573, 2147483648
  %v2660 = vxor.u32 %v2576, 2147483648
  %v2661 = vxor.u32 %v2581, 2147483648
  %v2662 = vmul.f32 %v2659, 1.442695
  %v2663 = vpow.pop %v2662
  %v2664 = vmul.f32 %v2660, 1.442695
  %v2665 = vpow.pop %v2664
  %v2666 = vmul.f32 %v2661, 1.442695
  %v2667 = vpow.pop %v2666
  %v2668 = vadd.f32 %v2663, 1.0
  %v2669 = vadd.f32 %v2665, 1.0
  %v2670 = vadd.f32 %v2667, 1.0
  %v2671 = vrcp.pop %v2668
  %v2672 = vmul.f32 1.0, %v2671
  %v2673 = vrcp.pop %v2669
  %v2674 = vmul.f32 1.0, %v2673
  %v2675 = vrcp.pop %v2670
  %v2676 = vmul.f32 1.0, %v2675
  %v2677 = vmul.f32 %v2573, %v2672
  %v2678 = vmul.f32 %v2576, %v2674
  %v2679 = vmul.f32 %v2581, %v2676
  %v2680 = vmul.f32 %v2677, %v2646
  %v2681 = vmul.f32 %v2678, %v2649
  %v2682 = vmul.f32 %v2679, %v2654
  %v2683 = vpack.c.bf16 %v2681, %v2680
  %v2684 = vpack.c.bf16 %v2682, %v2682
  %s2685 = scalar_lea.vmem %s9, 32
  %v2686 = vld [vmem:[%s2685] sm:$0xf]
  %v2687 = vld [vmem:[%s2685 + $0x4] sm:$0xf]
  %v2688 = vld [vmem:[%s2685 + $0x8] sm:$0xf]
  %v2689 = vld [vmem:[%s2685 + $0xc] sm:$0xf]
  %v2690 = vld [vmem:[%s2685 + $0x10] sm:$0xf]
  %v2691 = vld [vmem:[%s2685 + $0x14] sm:$0xf]
  %v2692 = vld [vmem:[%s2685 + $0x18] sm:$0xf]
  %v2693 = vld [vmem:[%s2685 + $0x1c] sm:$0xf]
  %v2702 = vunpack.c.l.b16 %v2686
  %v2703 = vunpack.c.l.b16 %v2687
  %v2704 = vunpack.c.l.b16 %v2688
  %v2705 = vunpack.c.l.b16 %v2689
  %v2706 = vunpack.c.l.b16 %v2690
  %v2707 = vunpack.c.l.b16 %v2691
  %v2708 = vunpack.c.l.b16 %v2692
  %v2709 = vunpack.c.l.b16 %v2693
  %v2710 = vpack.c.b16 %v2703, %v2702
  %v2711 = vpack.c.b16 %v2705, %v2704
  %v2712 = vpack.c.b16 %v2707, %v2706
  %v2713 = vpack.c.b16 %v2709, %v2708
  %v2719 = vsel %vm155, %v2683, 0
  %v2722 = vsel %vm155, %v2684, 0
  %2724 = vmatprep.subr.bf16.mxu0 0
  %2725 = vmatpush1.bf16.msra.mxu0 0
  %2726 = vmatprep.subr.bf16.mxu0 0
  %2727 = vmatpush1.bf16.msra.mxu0 0
  %2728 = vmatprep.subr.bf16.mxu0 0
  %2729 = vmatpush1.bf16.msra.mxu0 0
  %2730 = vmatprep.subr.bf16.mxu0 0
  %2731 = vmatpush1.bf16.msra.mxu0 0
  %2732 = vmatprep.subr.bf16.mxu0 0
  %2733 = vmatpush1.bf16.msra.mxu0 %v2713
  %2734 = vmatprep.subr.bf16.mxu0 0
  %2735 = vmatpush1.bf16.msra.mxu0 %v2712
  %2736 = vmatprep.subr.bf16.mxu0 0
  %2737 = vmatpush1.bf16.msra.mxu0 %v2711
  %2738 = vmatprep.subr.bf16.mxu0 0
  %2739 = vmatpush1.bf16.msra.mxu0 %v2710
  %2740 = vmatprep.subr.bf16.mxu0 0
  %2741 = vmatpush2.bf16.msra.mxu0 0
  %2742 = vmatprep.subr.bf16.mxu0 0
  %2743 = vmatpush2.bf16.msra.mxu0 0
  %2744 = vmatprep.subr.bf16.mxu0 0
  %2745 = vmatpush2.bf16.msra.mxu0 0
  %2746 = vmatprep.subr.bf16.mxu0 0
  %2747 = vmatpush2.bf16.msra.mxu0 0
  %2748 = vmatprep.subr.bf16.mxu0 0
  %2749 = vmatpush2.bf16.msra.mxu0 0
  %2750 = vmatprep.subr.bf16.mxu0 0
  %2751 = vmatpush2.bf16.msra.mxu0 0
  %2752 = vmatprep.subr.bf16.mxu0 0
  %2753 = vmatpush2.bf16.msra.mxu0 0
  %2754 = vmatprep.subr.bf16.mxu0 0
  %2755 = vmatpush2.bf16.msra.mxu0 0
  %2756 = vmatprep.mubr.bf16.mxu0 0
  %2757 = vmatmul.mubr.bf16.gmra.mxu0 %v2719
  %v2758 = vpop.f32.mrf.mxu0
  %v2759 = vadd.f32 0.0, %v2758
  %v2760 = vpop.f32.mrf.mxu0
  %v2761 = vpop.f32.mrf.mxu0
  %v2762 = vadd.f32 0.0, %v2761
  %v2763 = vpop.f32.mrf.mxu0
  %2764 = vmatprep.mubr.bf16.mxu0 0
  %2765 = vmatmul.mubr.bf16.gmra.mxu0 %v2722
  %v2766 = vpop.f32.mrf.mxu0
  %v2767 = vadd.f32 0.0, %v2766
  %v2768 = vpop.f32.mrf.mxu0
  %v2769 = vpop.f32.mrf.mxu0
  %v2770 = vpop.f32.mrf.mxu0
  %2771 = vdwg.mxu0
  %v2772 = vadd.f32 %v2463, %v2759
  %v2773 = vadd.f32 %v2464, %v2762
  %v2774 = vadd.f32 %v2465, %v2767
  %s2775 = scalar_lea.vmem %s6, 3
  %v2776 = vld [vmem:[%s2775] sm:$0x1]
  %v2778 = vlaneseq
  %v2779 = vshrl.u32 %v2778, 7
  %v2780 = vsub.s32 0, %v2779
  %v2781 = vrot.slane %v2776, %v2780
  %v2783 = vadd.f32 %v2772, %v2781
  %v2784 = vadd.f32 %v2773, %v2781
  %v2785 = vadd.f32 %v2774, %v2781
  %v2786 = vsel %vm256, %v2783, 0.0
  %2787 = vadd.xlane.f32.xlu0 %v2786
  %v2788 = vpop.xlane.xlu0 %2787
  %v2789 = vsel %vm256, %v2784, 0.0
  %2790 = vadd.xlane.f32.xlu0 %v2789
  %v2791 = vpop.xlane.xlu0 %2790
  %v2792 = vsel %vm263, %v2785, 0.0
  %2793 = vadd.xlane.f32.xlu0 %v2792
  %v2794 = vpop.xlane.xlu0 %2793
  %v2795 = vmul.f32 %v2788, %v267
  %v2796 = vmul.f32 %v2791, %v267
  %v2797 = vmul.f32 %v2794, %v267
  %v2798 = vsub.f32 %v2783, %v2795
  %v2799 = vsub.f32 %v2784, %v2796
  %v2800 = vsub.f32 %v2785, %v2797
  %v2801 = vmul.f32 %v2798, %v2798
  %v2802 = vmul.f32 %v2799, %v2799
  %v2803 = vmul.f32 %v2800, %v2800
  %v2804 = vsel %vm256, %v2801, 0.0
  %2805 = vadd.xlane.f32.xlu0 %v2804
  %v2806 = vpop.xlane.xlu0 %2805
  %v2807 = vsel %vm256, %v2802, 0.0
  %2808 = vadd.xlane.f32.xlu0 %v2807
  %v2809 = vpop.xlane.xlu0 %2808
  %v2810 = vsel %vm263, %v2803, 0.0
  %2811 = vadd.xlane.f32.xlu0 %v2810
  %v2812 = vpop.xlane.xlu0 %2811
  %v2813 = vmul.f32 %v2806, %v267
  %v2814 = vmul.f32 %v2809, %v267
  %v2815 = vmul.f32 %v2812, %v267
  %v2816 = vadd.f32 %v2813, 1e-06
  %v2817 = vadd.f32 %v2814, 1e-06
  %v2818 = vadd.f32 %v2815, 1e-06
  %v2819 = vrsqrt.pop %v2816
  %v2820 = vrsqrt.pop %v2817
  %v2821 = vrsqrt.pop %v2818
  %v2822 = vmul.f32 %v2798, %v2819
  %v2823 = vmul.f32 %v2799, %v2820
  %v2824 = vmul.f32 %v2800, %v2821
  %v2825 = vlaneseq
  %v2826 = vshrl.u32 %v2825, 7
  %v2827 = vsub.s32 0, %v2826
  %v2828 = vrot.slane %v39, %v2827
  %v2829 = vmul.f32 %v2822, %v2828
  %v2830 = vmul.f32 %v2823, %v2828
  %v2831 = vmul.f32 %v2824, %v2828
  %v2832 = vlaneseq
  %v2833 = vshrl.u32 %v2832, 7
  %v2834 = vsub.s32 0, %v2833
  %v2835 = vrot.slane %v40, %v2834
  %v2836 = vadd.f32 %v2829, %v2835
  %v2837 = vadd.f32 %v2830, %v2835
  %v2838 = vadd.f32 %v2831, %v2835
  %2839 = vst.msk [vmem:[%s10] sm:$0xff] %vm256, %v2836
  %2840 = vst.msk [vmem:[%s10 + $0x8] sm:$0xff] %vm256, %v2837
  %2841 = vst.msk [vmem:[%s10 + $0x10] sm:$0x3] %vm263, %v2838
  // Predicated region
  $region42: #{hoptimus_forward.1} parent=0 // pred_check
    _
  $region43: #{hoptimus_forward.1} parent=0 // pred_check_branch
    %2843 = sbr.rel (0) target = $region45
  $region44: #{hoptimus_forward.1} parent=0 // pred_region
    _
  $region45: #{hoptimus_forward.1} parent=0 // pred_fallthru
    _
  // Predicated region
  $region46: #{hoptimus_forward.1} parent=0 // pred_check
    _
  $region47: #{hoptimus_forward.1} parent=0 // pred_check_branch
    %2845 = sbr.rel (0) target = $region49
  $region48: #{hoptimus_forward.1} parent=0 // pred_region
    _
  $region49: #{hoptimus_forward.1} parent=0 // pred_fallthru
    _

</llo_original>
